<compile_context>
chip_gen: v6e
topology: v6e:2x2x1
jax: 0.10.0
libtpu: 0.0.40
codegen_flags: <defaults>
</compile_context>

<pallas_src>
import functools
import math

import jax
import jax.numpy as jnp
from jax.experimental import pallas as pl
from jax.experimental.pallas import tpu as pltpu


# ---------------------------------------------------------------------------
# Fused-column layout (8 blocks of H columns each):
#   [ i_f | i_b | f_f | f_b | o_f | o_b | g_f | g_b ]
# so sigmoid acts on cols [0:6H) and tanh on [6H:8H), and each gate pair lines
# up with the fused state layout h_cat = [h_f | h_b], c_cat = [c_f | c_b].
# ---------------------------------------------------------------------------
_GATE_ORDER = (0, 1, 3, 2)  # PyTorch gate indices: i=0, f=1, g=2, o=3 -> i,f,o,g


def _fuse_cols(mat_f, mat_b, H):
    """mat_f/mat_b: (rows, 4H) with PyTorch gate-column order [i,f,g,o].
    Returns (rows, 8H) in the fused column layout above (forward gate columns
    taken from mat_f, backward gate columns from mat_b)."""
    blocks = []
    for g in _GATE_ORDER:
        blocks.append(mat_f[:, g * H:(g + 1) * H])
        blocks.append(mat_b[:, g * H:(g + 1) * H])
    return jnp.concatenate(blocks, axis=1)


def _pad_rows(m, mult=8):
    pad = (-m.shape[0]) % mult
    if pad:
        m = jnp.concatenate([m, jnp.zeros((pad, m.shape[1]), m.dtype)], axis=0)
    return m


# ---------------------------------------------------------------------------
# Single fused kernel: 3-layer biLSTM + mean-over-time + fc + sigmoid
# ---------------------------------------------------------------------------
def _fused_lstm_head_kernel(xs_ref, slab0_ref, slab12_ref, head_ref,
                            out_ref, hbuf, *, T, Bp, H, l0_hh_off):
    """xs_ref    : (T*Bp, ru(2D,8))  step-major fused input [x(t) | x(T-1-t)]
    slab0_ref : (l0_hh_off+2H+8, 8H)  layer-0 [W_ih_step ; W_hh_cat ; bias]
    slab12_ref: (2, 6H+8, 8H)         layers 1/2 packed the same way
    head_ref  : (2H+8, 1)             rows 0:2H = fc_w^T, row 2H = fc_b
    out_ref   : (Bp, 1)               sigmoid(fc(mean_t(output)))
    hbuf      : VMEM (T*Bp, 4H) scratch: row-block t holds the next layer's
                fused input [h_f(t) | h_b(T-1-t) | h_f(T-1-t) | h_b(t)].
    """
    f32 = jnp.float32
    H2, H4, H6, H8 = 2 * H, 4 * H, 6 * H, 8 * H
    inv_t = 1.0 / T

    def recurrence(proj, whh, last):
        # proj: (T*Bp, 8H) hoisted input projection (+bias); whh: (2H, 8H)
        # block-structured so forward cols see h_f and backward cols see h_b.
        h = jnp.zeros((Bp, H2), f32)      # [h_f(s-1) | h_b(T-s)]
        c = jnp.zeros((Bp, H2), f32)
        hsum = jnp.zeros((Bp, H2), f32)
        for s in range(T):                # fully unrolled (T static, small)
            gates = proj[s * Bp:(s + 1) * Bp, :] + jnp.dot(
                h, whh, preferred_element_type=f32)          # (Bp, 8H)
            sig = jax.nn.sigmoid(gates[:, 0:H6])             # i,f,o (both dirs)
            g = jnp.tanh(gates[:, H6:H8])                    # g     (both dirs)
            c = sig[:, H2:H4] * c + sig[:, 0:H2] * g
            h = sig[:, H4:H6] * jnp.tanh(c)                  # [h_f(s) | h_b(T-1-s)]
            if last:
                hsum = hsum + h           # time order is irrelevant for the mean
            else:
                # off-dependency-chain, sublane-aligned stores (Bp = 8k rows)
                hbuf[s * Bp:(s + 1) * Bp, 0:H2] = h
                hbuf[(T - 1 - s) * Bp:(T - s) * Bp, H2:H4] = h
        return hsum

    # ---------------- layer 0: projection from the raw fused input ----------
    wih0 = slab0_ref[0:l0_hh_off, :]
    whh0 = slab0_ref[l0_hh_off:l0_hh_off + H2, :]
    b0 = slab0_ref[l0_hh_off + H2:l0_hh_off + H2 + 1, :]
    proj = jnp.dot(xs_ref[...], wih0, preferred_element_type=f32) + b0
    recurrence(proj, whh0, last=False)

    # ---------------- layers 1 and 2 ----------------------------------------
    # TODO(synk): inter-layer dropout (p=0.2) is a train-time op; eval-mode
    #             semantics (identity) are implemented here.
    hsum = None
    for L in range(2):
        wih = slab12_ref[L, 0:H4, :]
        whh = slab12_ref[L, H4:H4 + H2, :]
        b = slab12_ref[L, H4 + H2:H4 + H2 + 1, :]
        proj = jnp.dot(hbuf[...], wih, preferred_element_type=f32) + b
        hsum = recurrence(proj, whh, last=(L == 1))

    # ---------------- head: mean over time -> fc(2H -> 1) -> sigmoid --------
    logits = jnp.dot(hsum, head_ref[0:H2, :],
                     preferred_element_type=f32) * inv_t + head_ref[H2:H2 + 1, :]
    out_ref[...] = jax.nn.sigmoid(logits)


# ---------------------------------------------------------------------------
# Parameter init (PyTorch-layout weights, uniform(-1/sqrt(H), 1/sqrt(H)))
# ---------------------------------------------------------------------------
def init_params(key, input_dim, hidden_dim, num_layers=3):
    H = hidden_dim
    k = 1.0 / math.sqrt(H)
    raw = []
    for layer in range(num_layers):
        d_in = input_dim if layer == 0 else 2 * H
        dirs = []
        for _ in range(2):  # forward, backward
            key, k1, k2, k3, k4 = jax.random.split(key, 5)
            w_ih = jax.random.uniform(k1, (4 * H, d_in), jnp.float32, -k, k)
            w_hh = jax.random.uniform(k2, (4 * H, H), jnp.float32, -k, k)
            b_ih = jax.random.uniform(k3, (4 * H,), jnp.float32, -k, k)
            b_hh = jax.random.uniform(k4, (4 * H,), jnp.float32, -k, k)
            dirs.append((w_ih, w_hh, b_ih, b_hh))
        raw.append(tuple(dirs))
    key, k1, k2 = jax.random.split(key, 3)
    kf = 1.0 / math.sqrt(2 * H)
    fc_w = jax.random.uniform(k1, (1, 2 * H), jnp.float32, -kf, kf)
    fc_b = jax.random.uniform(k2, (1,), jnp.float32, -kf, kf)
    return raw, fc_w, fc_b


# ---------------------------------------------------------------------------
# Offline packing into fused, 8-row-padded slabs (one per layer + head)
# ---------------------------------------------------------------------------
def pack_params(raw, fc_w, fc_b, hidden_dim):
    H = hidden_dim
    z = lambda r: jnp.zeros((r, 4 * H), jnp.float32)
    slabs = []
    for layer, (dir_f, dir_b) in enumerate(raw):
        wih_f, whh_f, bih_f, bhh_f = dir_f
        wih_b, whh_b, bih_b, bhh_b = dir_b
        wih_f_t, wih_b_t = wih_f.T, wih_b.T          # (d_in, 4H)
        whh_f_t, whh_b_t = whh_f.T, whh_b.T          # (H, 4H)
        if layer == 0:
            # fused input features per step: [x(t) | x(T-1-t)]
            d_in = wih_f_t.shape[0]
            mat_f = jnp.concatenate([wih_f_t, z(d_in)], axis=0)
            mat_b = jnp.concatenate([z(d_in), wih_b_t], axis=0)
        else:
            # fused input features per step (hbuf row layout):
            #   [h_f(t) | h_b(T-1-t) | h_f(T-1-t) | h_b(t)]
            mat_f = jnp.concatenate(
                [wih_f_t[0:H], z(H), z(H), wih_f_t[H:2 * H]], axis=0)
            mat_b = jnp.concatenate(
                [z(H), wih_b_t[H:2 * H], wih_b_t[0:H], z(H)], axis=0)
        wih_step = _fuse_cols(mat_f, mat_b, H)                       # (in, 8H)
        whh_cat = _fuse_cols(jnp.concatenate([whh_f_t, z(H)], axis=0),
                             jnp.concatenate([z(H), whh_b_t], axis=0), H)
        bias = _fuse_cols((bih_f + bhh_f)[None, :],
                          (bih_b + bhh_b)[None, :], H)               # (1, 8H)
        slabs.append(jnp.concatenate(
            [_pad_rows(wih_step), _pad_rows(whh_cat), _pad_rows(bias)], axis=0))
    slab0 = slabs[0]                       # (ru(2D,8)+2H+8, 8H)
    slab12 = jnp.stack(slabs[1:])          # (2, 6H+8, 8H)
    head = _pad_rows(jnp.concatenate([fc_w.T, fc_b[None, :]], axis=0))  # (2H+8, 1)
    return slab0, slab12, head


# ---------------------------------------------------------------------------
# Full forward pass (matches LSTM.forward for 2-D / 3-D input, eval mode)
# ---------------------------------------------------------------------------
@jax.jit
def lstm_model_forward(x, slab0, slab12, head):
    if x.ndim == 2:
        x = x[None, ...]                                   # (1, T, D)
    B, T, D = x.shape
    H = slab12.shape[2] // 8
    Bp = ((B + 7) // 8) * 8                                # sublane-aligned batch
    l0_hh_off = slab0.shape[0] - (2 * H + 8)               # = ru(2D, 8)

    x = x.astype(jnp.float32)
    x_tm = jnp.transpose(x, (1, 0, 2))                     # (T, B, D) time-major
    if Bp != B:
        x_tm = jnp.pad(x_tm, ((0, 0), (0, Bp - B), (0, 0)))
    # fused step-major input: row-block s = [x(s) | x(T-1-s)]
    x_step = jnp.concatenate([x_tm, x_tm[::-1]], axis=-1).reshape(T * Bp, 2 * D)
    if l0_hh_off != 2 * D:                                 # match zero-padded W rows
        x_step = jnp.pad(x_step, ((0, 0), (0, l0_hh_off - 2 * D)))

    kernel = functools.partial(_fused_lstm_head_kernel,
                               T=T, Bp=Bp, H=H, l0_hh_off=l0_hh_off)
    out = pl.pallas_call(
        kernel,
        out_shape=jax.ShapeDtypeStruct((Bp, 1), jnp.float32),
        scratch_shapes=[pltpu.VMEM((T * Bp, 4 * H), jnp.float32)],
    )(x_step, slab0, slab12, head)
    return out[:B, 0]                                      # squeeze(1) -> (B,)


# ---------------------------------------------------------------------------
# Pure-JAX reference (direct transcription of the PyTorch module, eval mode)
# ---------------------------------------------------------------------------
def _reference_forward(x, raw, fc_w, fc_b):
    if x.ndim == 2:
        x = x[None, ...]
    B, T, _ = x.shape
    H = raw[0][0][1].shape[1]

    def cell(xt, h, c, w_ih, w_hh, b_ih, b_hh):
        g = xt @ w_ih.T + h @ w_hh.T + b_ih + b_hh
        i = jax.nn.sigmoid(g[:, 0:H])
        f = jax.nn.sigmoid(g[:, H:2 * H])
        gg = jnp.tanh(g[:, 2 * H:3 * H])
        o = jax.nn.sigmoid(g[:, 3 * H:4 * H])
        c = f * c + i * gg
        return o * jnp.tanh(c), c

    inp = x
    for dir_f, dir_b in raw:
        h = jnp.zeros((B, H)); c = jnp.zeros((B, H)); outs_f = []
        for t in range(T):
            h, c = cell(inp[:, t], h, c, *dir_f)
            outs_f.append(h)
        h = jnp.zeros((B, H)); c = jnp.zeros((B, H)); outs_b = [None] * T
        for t in range(T - 1, -1, -1):
            h, c = cell(inp[:, t], h, c, *dir_b)
            outs_b[t] = h
        inp = jnp.stack([jnp.concatenate([outs_f[t], outs_b[t]], axis=-1)
                         for t in range(T)], axis=1)
    mean = jnp.mean(inp, axis=1)
    return jax.nn.sigmoid(mean @ fc_w.T + fc_b)[:, 0]


if __name__ == "__main__":
    B, T, D, H = 2, 8, 12, 16   # batch, seq-len, input_dim, hidden_dim
    key = jax.random.PRNGKey(0)
    key, kx = jax.random.split(key)
    x = jax.random.normal(kx, (B, T, D), jnp.float32)

    raw, fc_w, fc_b = init_params(key, D, H, num_layers=3)
    slab0, slab12, head = pack_params(raw, fc_w, fc_b, H)

    out = lstm_model_forward(x, slab0, slab12, head)
    out = jax.block_until_ready(out)
    assert out.shape == (B,), out.shape
    assert bool(jnp.all((out >= 0.0) & (out <= 1.0)))

    ref = _reference_forward(x, raw, fc_w, fc_b)
    max_err = float(jnp.max(jnp.abs(out - ref)))
    assert max_err < 1e-3, f"kernel/reference mismatch: {max_err}"
    print("KERNEL_OK")
</pallas_src>

<mosaic_0001>
module attributes {stable_mosaic.version = 11 : i64} {
  func.func @_fused_lstm_head_kernel(%arg0: memref<64x24xf32, #tpu.memory_space<vmem>>, %arg1: memref<64x128xf32, #tpu.memory_space<vmem>>, %arg2: memref<2x104x128xf32, #tpu.memory_space<vmem>>, %arg3: memref<40x1xf32, #tpu.memory_space<vmem>>, %arg4: memref<8x1xf32, #tpu.memory_space<vmem>>, %arg5: memref<64x64xf32, #tpu.memory_space<vmem>>) attributes {dimension_semantics = [], scalar_prefetch = 0 : i64, scratch_operands = 1 : i64, tpu.core_type = #tpu.core_type<tc>} {
    %c0 = arith.constant 0 : index
    %c0_0 = arith.constant 0 : index
    %0 = vector.load %arg1[%c0, %c0_0] : memref<64x128xf32, #tpu.memory_space<vmem>>, vector<24x128xf32>
    %c24 = arith.constant 24 : index
    %c0_1 = arith.constant 0 : index
    %1 = vector.load %arg1[%c24, %c0_1] : memref<64x128xf32, #tpu.memory_space<vmem>>, vector<32x128xf32>
    %c56 = arith.constant 56 : index
    %c0_2 = arith.constant 0 : index
    %2 = vector.load %arg1[%c56, %c0_2] : memref<64x128xf32, #tpu.memory_space<vmem>>, vector<1x128xf32>
    %c0_3 = arith.constant 0 : index
    %c0_4 = arith.constant 0 : index
    %3 = vector.load %arg0[%c0_3, %c0_4] : memref<64x24xf32, #tpu.memory_space<vmem>>, vector<64x24xf32>
    %cst = arith.constant dense<0.000000e+00> : vector<64x128xf32>
    %4 = tpu.matmul %3, %0, %cst {dimension_numbers = #tpu.dot_dimension_numbers<[1], [0], [0], [1], [0, 0, 1, 1], [], []>} : vector<64x24xf32>, vector<24x128xf32>, vector<64x128xf32> -> vector<64x128xf32>
    %5 = vector.broadcast %2 : vector<1x128xf32> to vector<64x128xf32>
    %6 = arith.addf %4, %5 : vector<64x128xf32>
    %cst_5 = arith.constant 0.000000e+00 : f32
    %7 = vector.broadcast %cst_5 : f32 to vector<8x32xf32>
    %cst_6 = arith.constant 0.000000e+00 : f32
    %8 = vector.broadcast %cst_6 : f32 to vector<8x32xf32>
    %9 = vector.extract_strided_slice %6 {offsets = [0, 0], sizes = [8, 128], strides = [1, 1]} : vector<64x128xf32> to vector<8x128xf32>
    %cst_7 = arith.constant dense<0.000000e+00> : vector<8x128xf32>
    %10 = tpu.matmul %7, %1, %cst_7 {dimension_numbers = #tpu.dot_dimension_numbers<[1], [0], [0], [1], [0, 0, 1, 1], [], []>} : vector<8x32xf32>, vector<32x128xf32>, vector<8x128xf32> -> vector<8x128xf32>
    %11 = arith.addf %9, %10 : vector<8x128xf32>
    %12 = vector.extract_strided_slice %11 {offsets = [0, 0], sizes = [8, 96], strides = [1, 1]} : vector<8x128xf32> to vector<8x96xf32>
    %13 = arith.negf %12 : vector<8x96xf32>
    %14 = math.exp %13 : vector<8x96xf32>
    %cst_8 = arith.constant 1.000000e+00 : f32
    %15 = vector.broadcast %cst_8 : f32 to vector<8x96xf32>
    %16 = arith.addf %15, %14 : vector<8x96xf32>
    %17 = arith.divf %15, %16 : vector<8x96xf32>
    %18 = vector.extract_strided_slice %11 {offsets = [0, 96], sizes = [8, 32], strides = [1, 1]} : vector<8x128xf32> to vector<8x32xf32>
    %19 = math.tanh %18 : vector<8x32xf32>
    %20 = vector.extract_strided_slice %17 {offsets = [0, 32], sizes = [8, 32], strides = [1, 1]} : vector<8x96xf32> to vector<8x32xf32>
    %21 = arith.mulf %20, %8 : vector<8x32xf32>
    %22 = vector.extract_strided_slice %17 {offsets = [0, 0], sizes = [8, 32], strides = [1, 1]} : vector<8x96xf32> to vector<8x32xf32>
    %23 = arith.mulf %22, %19 : vector<8x32xf32>
    %24 = arith.addf %21, %23 : vector<8x32xf32>
    %25 = vector.extract_strided_slice %17 {offsets = [0, 64], sizes = [8, 32], strides = [1, 1]} : vector<8x96xf32> to vector<8x32xf32>
    %26 = math.tanh %24 : vector<8x32xf32>
    %27 = arith.mulf %25, %26 : vector<8x32xf32>
    %c0_9 = arith.constant 0 : index
    %c0_10 = arith.constant 0 : index
    %28 = vector.load %arg5[%c0_9, %c0_10] : memref<64x64xf32, #tpu.memory_space<vmem>>, vector<8x32xf32>
    tpu.vector_store %arg5[%c0_9, %c0_10], %27 {strides = array<i32>} : memref<64x64xf32, #tpu.memory_space<vmem>>, vector<8x32xf32>,
    %c56_11 = arith.constant 56 : index
    %c32 = arith.constant 32 : index
    %29 = vector.load %arg5[%c56_11, %c32] : memref<64x64xf32, #tpu.memory_space<vmem>>, vector<8x32xf32>
    tpu.vector_store %arg5[%c56_11, %c32], %27 {strides = array<i32>} : memref<64x64xf32, #tpu.memory_space<vmem>>, vector<8x32xf32>,
    %30 = vector.extract_strided_slice %6 {offsets = [8, 0], sizes = [8, 128], strides = [1, 1]} : vector<64x128xf32> to vector<8x128xf32>
    %cst_12 = arith.constant dense<0.000000e+00> : vector<8x128xf32>
    %31 = tpu.matmul %27, %1, %cst_12 {dimension_numbers = #tpu.dot_dimension_numbers<[1], [0], [0], [1], [0, 0, 1, 1], [], []>} : vector<8x32xf32>, vector<32x128xf32>, vector<8x128xf32> -> vector<8x128xf32>
    %32 = arith.addf %30, %31 : vector<8x128xf32>
    %33 = vector.extract_strided_slice %32 {offsets = [0, 0], sizes = [8, 96], strides = [1, 1]} : vector<8x128xf32> to vector<8x96xf32>
    %34 = arith.negf %33 : vector<8x96xf32>
    %35 = math.exp %34 : vector<8x96xf32>
    %cst_13 = arith.constant 1.000000e+00 : f32
    %36 = vector.broadcast %cst_13 : f32 to vector<8x96xf32>
    %37 = arith.addf %36, %35 : vector<8x96xf32>
    %38 = arith.divf %36, %37 : vector<8x96xf32>
    %39 = vector.extract_strided_slice %32 {offsets = [0, 96], sizes = [8, 32], strides = [1, 1]} : vector<8x128xf32> to vector<8x32xf32>
    %40 = math.tanh %39 : vector<8x32xf32>
    %41 = vector.extract_strided_slice %38 {offsets = [0, 32], sizes = [8, 32], strides = [1, 1]} : vector<8x96xf32> to vector<8x32xf32>
    %42 = arith.mulf %41, %24 : vector<8x32xf32>
    %43 = vector.extract_strided_slice %38 {offsets = [0, 0], sizes = [8, 32], strides = [1, 1]} : vector<8x96xf32> to vector<8x32xf32>
    %44 = arith.mulf %43, %40 : vector<8x32xf32>
    %45 = arith.addf %42, %44 : vector<8x32xf32>
    %46 = vector.extract_strided_slice %38 {offsets = [0, 64], sizes = [8, 32], strides = [1, 1]} : vector<8x96xf32> to vector<8x32xf32>
    %47 = math.tanh %45 : vector<8x32xf32>
    %48 = arith.mulf %46, %47 : vector<8x32xf32>
    %c8 = arith.constant 8 : index
    %c0_14 = arith.constant 0 : index
    %49 = vector.load %arg5[%c8, %c0_14] : memref<64x64xf32, #tpu.memory_space<vmem>>, vector<8x32xf32>
    tpu.vector_store %arg5[%c8, %c0_14], %48 {strides = array<i32>} : memref<64x64xf32, #tpu.memory_space<vmem>>, vector<8x32xf32>,
    %c48 = arith.constant 48 : index
    %c32_15 = arith.constant 32 : index
    %50 = vector.load %arg5[%c48, %c32_15] : memref<64x64xf32, #tpu.memory_space<vmem>>, vector<8x32xf32>
    tpu.vector_store %arg5[%c48, %c32_15], %48 {strides = array<i32>} : memref<64x64xf32, #tpu.memory_space<vmem>>, vector<8x32xf32>,
    %51 = vector.extract_strided_slice %6 {offsets = [16, 0], sizes = [8, 128], strides = [1, 1]} : vector<64x128xf32> to vector<8x128xf32>
    %cst_16 = arith.constant dense<0.000000e+00> : vector<8x128xf32>
    %52 = tpu.matmul %48, %1, %cst_16 {dimension_numbers = #tpu.dot_dimension_numbers<[1], [0], [0], [1], [0, 0, 1, 1], [], []>} : vector<8x32xf32>, vector<32x128xf32>, vector<8x128xf32> -> vector<8x128xf32>
    %53 = arith.addf %51, %52 : vector<8x128xf32>
    %54 = vector.extract_strided_slice %53 {offsets = [0, 0], sizes = [8, 96], strides = [1, 1]} : vector<8x128xf32> to vector<8x96xf32>
    %55 = arith.negf %54 : vector<8x96xf32>
    %56 = math.exp %55 : vector<8x96xf32>
    %cst_17 = arith.constant 1.000000e+00 : f32
    %57 = vector.broadcast %cst_17 : f32 to vector<8x96xf32>
    %58 = arith.addf %57, %56 : vector<8x96xf32>
    %59 = arith.divf %57, %58 : vector<8x96xf32>
    %60 = vector.extract_strided_slice %53 {offsets = [0, 96], sizes = [8, 32], strides = [1, 1]} : vector<8x128xf32> to vector<8x32xf32>
    %61 = math.tanh %60 : vector<8x32xf32>
    %62 = vector.extract_strided_slice %59 {offsets = [0, 32], sizes = [8, 32], strides = [1, 1]} : vector<8x96xf32> to vector<8x32xf32>
    %63 = arith.mulf %62, %45 : vector<8x32xf32>
    %64 = vector.extract_strided_slice %59 {offsets = [0, 0], sizes = [8, 32], strides = [1, 1]} : vector<8x96xf32> to vector<8x32xf32>
    %65 = arith.mulf %64, %61 : vector<8x32xf32>
    %66 = arith.addf %63, %65 : vector<8x32xf32>
    %67 = vector.extract_strided_slice %59 {offsets = [0, 64], sizes = [8, 32], strides = [1, 1]} : vector<8x96xf32> to vector<8x32xf32>
    %68 = math.tanh %66 : vector<8x32xf32>
    %69 = arith.mulf %67, %68 : vector<8x32xf32>
    %c16 = arith.constant 16 : index
    %c0_18 = arith.constant 0 : index
    %70 = vector.load %arg5[%c16, %c0_18] : memref<64x64xf32, #tpu.memory_space<vmem>>, vector<8x32xf32>
    tpu.vector_store %arg5[%c16, %c0_18], %69 {strides = array<i32>} : memref<64x64xf32, #tpu.memory_space<vmem>>, vector<8x32xf32>,
    %c40 = arith.constant 40 : index
    %c32_19 = arith.constant 32 : index
    %71 = vector.load %arg5[%c40, %c32_19] : memref<64x64xf32, #tpu.memory_space<vmem>>, vector<8x32xf32>
    tpu.vector_store %arg5[%c40, %c32_19], %69 {strides = array<i32>} : memref<64x64xf32, #tpu.memory_space<vmem>>, vector<8x32xf32>,
    %72 = vector.extract_strided_slice %6 {offsets = [24, 0], sizes = [8, 128], strides = [1, 1]} : vector<64x128xf32> to vector<8x128xf32>
    %cst_20 = arith.constant dense<0.000000e+00> : vector<8x128xf32>
    %73 = tpu.matmul %69, %1, %cst_20 {dimension_numbers = #tpu.dot_dimension_numbers<[1], [0], [0], [1], [0, 0, 1, 1], [], []>} : vector<8x32xf32>, vector<32x128xf32>, vector<8x128xf32> -> vector<8x128xf32>
    %74 = arith.addf %72, %73 : vector<8x128xf32>
    %75 = vector.extract_strided_slice %74 {offsets = [0, 0], sizes = [8, 96], strides = [1, 1]} : vector<8x128xf32> to vector<8x96xf32>
    %76 = arith.negf %75 : vector<8x96xf32>
    %77 = math.exp %76 : vector<8x96xf32>
    %cst_21 = arith.constant 1.000000e+00 : f32
    %78 = vector.broadcast %cst_21 : f32 to vector<8x96xf32>
    %79 = arith.addf %78, %77 : vector<8x96xf32>
    %80 = arith.divf %78, %79 : vector<8x96xf32>
    %81 = vector.extract_strided_slice %74 {offsets = [0, 96], sizes = [8, 32], strides = [1, 1]} : vector<8x128xf32> to vector<8x32xf32>
    %82 = math.tanh %81 : vector<8x32xf32>
    %83 = vector.extract_strided_slice %80 {offsets = [0, 32], sizes = [8, 32], strides = [1, 1]} : vector<8x96xf32> to vector<8x32xf32>
    %84 = arith.mulf %83, %66 : vector<8x32xf32>
    %85 = vector.extract_strided_slice %80 {offsets = [0, 0], sizes = [8, 32], strides = [1, 1]} : vector<8x96xf32> to vector<8x32xf32>
    %86 = arith.mulf %85, %82 : vector<8x32xf32>
    %87 = arith.addf %84, %86 : vector<8x32xf32>
    %88 = vector.extract_strided_slice %80 {offsets = [0, 64], sizes = [8, 32], strides = [1, 1]} : vector<8x96xf32> to vector<8x32xf32>
    %89 = math.tanh %87 : vector<8x32xf32>
    %90 = arith.mulf %88, %89 : vector<8x32xf32>
    %c24_22 = arith.constant 24 : index
    %c0_23 = arith.constant 0 : index
    %91 = vector.load %arg5[%c24_22, %c0_23] : memref<64x64xf32, #tpu.memory_space<vmem>>, vector<8x32xf32>
    tpu.vector_store %arg5[%c24_22, %c0_23], %90 {strides = array<i32>} : memref<64x64xf32, #tpu.memory_space<vmem>>, vector<8x32xf32>,
    %c32_24 = arith.constant 32 : index
    %c32_25 = arith.constant 32 : index
    %92 = vector.load %arg5[%c32_24, %c32_25] : memref<64x64xf32, #tpu.memory_space<vmem>>, vector<8x32xf32>
    tpu.vector_store %arg5[%c32_24, %c32_25], %90 {strides = array<i32>} : memref<64x64xf32, #tpu.memory_space<vmem>>, vector<8x32xf32>,
    %93 = vector.extract_strided_slice %6 {offsets = [32, 0], sizes = [8, 128], strides = [1, 1]} : vector<64x128xf32> to vector<8x128xf32>
    %cst_26 = arith.constant dense<0.000000e+00> : vector<8x128xf32>
    %94 = tpu.matmul %90, %1, %cst_26 {dimension_numbers = #tpu.dot_dimension_numbers<[1], [0], [0], [1], [0, 0, 1, 1], [], []>} : vector<8x32xf32>, vector<32x128xf32>, vector<8x128xf32> -> vector<8x128xf32>
    %95 = arith.addf %93, %94 : vector<8x128xf32>
    %96 = vector.extract_strided_slice %95 {offsets = [0, 0], sizes = [8, 96], strides = [1, 1]} : vector<8x128xf32> to vector<8x96xf32>
    %97 = arith.negf %96 : vector<8x96xf32>
    %98 = math.exp %97 : vector<8x96xf32>
    %cst_27 = arith.constant 1.000000e+00 : f32
    %99 = vector.broadcast %cst_27 : f32 to vector<8x96xf32>
    %100 = arith.addf %99, %98 : vector<8x96xf32>
    %101 = arith.divf %99, %100 : vector<8x96xf32>
    %102 = vector.extract_strided_slice %95 {offsets = [0, 96], sizes = [8, 32], strides = [1, 1]} : vector<8x128xf32> to vector<8x32xf32>
    %103 = math.tanh %102 : vector<8x32xf32>
    %104 = vector.extract_strided_slice %101 {offsets = [0, 32], sizes = [8, 32], strides = [1, 1]} : vector<8x96xf32> to vector<8x32xf32>
    %105 = arith.mulf %104, %87 : vector<8x32xf32>
    %106 = vector.extract_strided_slice %101 {offsets = [0, 0], sizes = [8, 32], strides = [1, 1]} : vector<8x96xf32> to vector<8x32xf32>
    %107 = arith.mulf %106, %103 : vector<8x32xf32>
    %108 = arith.addf %105, %107 : vector<8x32xf32>
    %109 = vector.extract_strided_slice %101 {offsets = [0, 64], sizes = [8, 32], strides = [1, 1]} : vector<8x96xf32> to vector<8x32xf32>
    %110 = math.tanh %108 : vector<8x32xf32>
    %111 = arith.mulf %109, %110 : vector<8x32xf32>
    %c32_28 = arith.constant 32 : index
    %c0_29 = arith.constant 0 : index
    %112 = vector.load %arg5[%c32_28, %c0_29] : memref<64x64xf32, #tpu.memory_space<vmem>>, vector<8x32xf32>
    tpu.vector_store %arg5[%c32_28, %c0_29], %111 {strides = array<i32>} : memref<64x64xf32, #tpu.memory_space<vmem>>, vector<8x32xf32>,
    %c24_30 = arith.constant 24 : index
    %c32_31 = arith.constant 32 : index
    %113 = vector.load %arg5[%c24_30, %c32_31] : memref<64x64xf32, #tpu.memory_space<vmem>>, vector<8x32xf32>
    tpu.vector_store %arg5[%c24_30, %c32_31], %111 {strides = array<i32>} : memref<64x64xf32, #tpu.memory_space<vmem>>, vector<8x32xf32>,
    %114 = vector.extract_strided_slice %6 {offsets = [40, 0], sizes = [8, 128], strides = [1, 1]} : vector<64x128xf32> to vector<8x128xf32>
    %cst_32 = arith.constant dense<0.000000e+00> : vector<8x128xf32>
    %115 = tpu.matmul %111, %1, %cst_32 {dimension_numbers = #tpu.dot_dimension_numbers<[1], [0], [0], [1], [0, 0, 1, 1], [], []>} : vector<8x32xf32>, vector<32x128xf32>, vector<8x128xf32> -> vector<8x128xf32>
    %116 = arith.addf %114, %115 : vector<8x128xf32>
    %117 = vector.extract_strided_slice %116 {offsets = [0, 0], sizes = [8, 96], strides = [1, 1]} : vector<8x128xf32> to vector<8x96xf32>
    %118 = arith.negf %117 : vector<8x96xf32>
    %119 = math.exp %118 : vector<8x96xf32>
    %cst_33 = arith.constant 1.000000e+00 : f32
    %120 = vector.broadcast %cst_33 : f32 to vector<8x96xf32>
    %121 = arith.addf %120, %119 : vector<8x96xf32>
    %122 = arith.divf %120, %121 : vector<8x96xf32>
    %123 = vector.extract_strided_slice %116 {offsets = [0, 96], sizes = [8, 32], strides = [1, 1]} : vector<8x128xf32> to vector<8x32xf32>
    %124 = math.tanh %123 : vector<8x32xf32>
    %125 = vector.extract_strided_slice %122 {offsets = [0, 32], sizes = [8, 32], strides = [1, 1]} : vector<8x96xf32> to vector<8x32xf32>
    %126 = arith.mulf %125, %108 : vector<8x32xf32>
    %127 = vector.extract_strided_slice %122 {offsets = [0, 0], sizes = [8, 32], strides = [1, 1]} : vector<8x96xf32> to vector<8x32xf32>
    %128 = arith.mulf %127, %124 : vector<8x32xf32>
    %129 = arith.addf %126, %128 : vector<8x32xf32>
    %130 = vector.extract_strided_slice %122 {offsets = [0, 64], sizes = [8, 32], strides = [1, 1]} : vector<8x96xf32> to vector<8x32xf32>
    %131 = math.tanh %129 : vector<8x32xf32>
    %132 = arith.mulf %130, %131 : vector<8x32xf32>
    %c40_34 = arith.constant 40 : index
    %c0_35 = arith.constant 0 : index
    %133 = vector.load %arg5[%c40_34, %c0_35] : memref<64x64xf32, #tpu.memory_space<vmem>>, vector<8x32xf32>
    tpu.vector_store %arg5[%c40_34, %c0_35], %132 {strides = array<i32>} : memref<64x64xf32, #tpu.memory_space<vmem>>, vector<8x32xf32>,
    %c16_36 = arith.constant 16 : index
    %c32_37 = arith.constant 32 : index
    %134 = vector.load %arg5[%c16_36, %c32_37] : memref<64x64xf32, #tpu.memory_space<vmem>>, vector<8x32xf32>
    tpu.vector_store %arg5[%c16_36, %c32_37], %132 {strides = array<i32>} : memref<64x64xf32, #tpu.memory_space<vmem>>, vector<8x32xf32>,
    %135 = vector.extract_strided_slice %6 {offsets = [48, 0], sizes = [8, 128], strides = [1, 1]} : vector<64x128xf32> to vector<8x128xf32>
    %cst_38 = arith.constant dense<0.000000e+00> : vector<8x128xf32>
    %136 = tpu.matmul %132, %1, %cst_38 {dimension_numbers = #tpu.dot_dimension_numbers<[1], [0], [0], [1], [0, 0, 1, 1], [], []>} : vector<8x32xf32>, vector<32x128xf32>, vector<8x128xf32> -> vector<8x128xf32>
    %137 = arith.addf %135, %136 : vector<8x128xf32>
    %138 = vector.extract_strided_slice %137 {offsets = [0, 0], sizes = [8, 96], strides = [1, 1]} : vector<8x128xf32> to vector<8x96xf32>
    %139 = arith.negf %138 : vector<8x96xf32>
    %140 = math.exp %139 : vector<8x96xf32>
    %cst_39 = arith.constant 1.000000e+00 : f32
    %141 = vector.broadcast %cst_39 : f32 to vector<8x96xf32>
    %142 = arith.addf %141, %140 : vector<8x96xf32>
    %143 = arith.divf %141, %142 : vector<8x96xf32>
    %144 = vector.extract_strided_slice %137 {offsets = [0, 96], sizes = [8, 32], strides = [1, 1]} : vector<8x128xf32> to vector<8x32xf32>
    %145 = math.tanh %144 : vector<8x32xf32>
    %146 = vector.extract_strided_slice %143 {offsets = [0, 32], sizes = [8, 32], strides = [1, 1]} : vector<8x96xf32> to vector<8x32xf32>
    %147 = arith.mulf %146, %129 : vector<8x32xf32>
    %148 = vector.extract_strided_slice %143 {offsets = [0, 0], sizes = [8, 32], strides = [1, 1]} : vector<8x96xf32> to vector<8x32xf32>
    %149 = arith.mulf %148, %145 : vector<8x32xf32>
    %150 = arith.addf %147, %149 : vector<8x32xf32>
    %151 = vector.extract_strided_slice %143 {offsets = [0, 64], sizes = [8, 32], strides = [1, 1]} : vector<8x96xf32> to vector<8x32xf32>
    %152 = math.tanh %150 : vector<8x32xf32>
    %153 = arith.mulf %151, %152 : vector<8x32xf32>
    %c48_40 = arith.constant 48 : index
    %c0_41 = arith.constant 0 : index
    %154 = vector.load %arg5[%c48_40, %c0_41] : memref<64x64xf32, #tpu.memory_space<vmem>>, vector<8x32xf32>
    tpu.vector_store %arg5[%c48_40, %c0_41], %153 {strides = array<i32>} : memref<64x64xf32, #tpu.memory_space<vmem>>, vector<8x32xf32>,
    %c8_42 = arith.constant 8 : index
    %c32_43 = arith.constant 32 : index
    %155 = vector.load %arg5[%c8_42, %c32_43] : memref<64x64xf32, #tpu.memory_space<vmem>>, vector<8x32xf32>
    tpu.vector_store %arg5[%c8_42, %c32_43], %153 {strides = array<i32>} : memref<64x64xf32, #tpu.memory_space<vmem>>, vector<8x32xf32>,
    %156 = vector.extract_strided_slice %6 {offsets = [56, 0], sizes = [8, 128], strides = [1, 1]} : vector<64x128xf32> to vector<8x128xf32>
    %cst_44 = arith.constant dense<0.000000e+00> : vector<8x128xf32>
    %157 = tpu.matmul %153, %1, %cst_44 {dimension_numbers = #tpu.dot_dimension_numbers<[1], [0], [0], [1], [0, 0, 1, 1], [], []>} : vector<8x32xf32>, vector<32x128xf32>, vector<8x128xf32> -> vector<8x128xf32>
    %158 = arith.addf %156, %157 : vector<8x128xf32>
    %159 = vector.extract_strided_slice %158 {offsets = [0, 0], sizes = [8, 96], strides = [1, 1]} : vector<8x128xf32> to vector<8x96xf32>
    %160 = arith.negf %159 : vector<8x96xf32>
    %161 = math.exp %160 : vector<8x96xf32>
    %cst_45 = arith.constant 1.000000e+00 : f32
    %162 = vector.broadcast %cst_45 : f32 to vector<8x96xf32>
    %163 = arith.addf %162, %161 : vector<8x96xf32>
    %164 = arith.divf %162, %163 : vector<8x96xf32>
    %165 = vector.extract_strided_slice %158 {offsets = [0, 96], sizes = [8, 32], strides = [1, 1]} : vector<8x128xf32> to vector<8x32xf32>
    %166 = math.tanh %165 : vector<8x32xf32>
    %167 = vector.extract_strided_slice %164 {offsets = [0, 32], sizes = [8, 32], strides = [1, 1]} : vector<8x96xf32> to vector<8x32xf32>
    %168 = arith.mulf %167, %150 : vector<8x32xf32>
    %169 = vector.extract_strided_slice %164 {offsets = [0, 0], sizes = [8, 32], strides = [1, 1]} : vector<8x96xf32> to vector<8x32xf32>
    %170 = arith.mulf %169, %166 : vector<8x32xf32>
    %171 = arith.addf %168, %170 : vector<8x32xf32>
    %172 = vector.extract_strided_slice %164 {offsets = [0, 64], sizes = [8, 32], strides = [1, 1]} : vector<8x96xf32> to vector<8x32xf32>
    %173 = math.tanh %171 : vector<8x32xf32>
    %174 = arith.mulf %172, %173 : vector<8x32xf32>
    %c56_46 = arith.constant 56 : index
    %c0_47 = arith.constant 0 : index
    %175 = vector.load %arg5[%c56_46, %c0_47] : memref<64x64xf32, #tpu.memory_space<vmem>>, vector<8x32xf32>
    tpu.vector_store %arg5[%c56_46, %c0_47], %174 {strides = array<i32>} : memref<64x64xf32, #tpu.memory_space<vmem>>, vector<8x32xf32>,
    %c0_48 = arith.constant 0 : index
    %c32_49 = arith.constant 32 : index
    %176 = vector.load %arg5[%c0_48, %c32_49] : memref<64x64xf32, #tpu.memory_space<vmem>>, vector<8x32xf32>
    tpu.vector_store %arg5[%c0_48, %c32_49], %174 {strides = array<i32>} : memref<64x64xf32, #tpu.memory_space<vmem>>, vector<8x32xf32>,
    %c0_50 = arith.constant 0 : index
    %c0_51 = arith.constant 0 : index
    %c0_52 = arith.constant 0 : index
    %177 = vector.load %arg2[%c0_50, %c0_51, %c0_52] : memref<2x104x128xf32, #tpu.memory_space<vmem>>, vector<1x64x128xf32>
    %178 = vector.shape_cast %177 : vector<1x64x128xf32> to vector<64x128xf32>
    %c0_53 = arith.constant 0 : index
    %c64 = arith.constant 64 : index
    %c0_54 = arith.constant 0 : index
    %179 = vector.load %arg2[%c0_53, %c64, %c0_54] : memref<2x104x128xf32, #tpu.memory_space<vmem>>, vector<1x32x128xf32>
    %180 = vector.shape_cast %179 : vector<1x32x128xf32> to vector<32x128xf32>
    %c0_55 = arith.constant 0 : index
    %c96 = arith.constant 96 : index
    %c0_56 = arith.constant 0 : index
    %181 = vector.load %arg2[%c0_55, %c96, %c0_56] : memref<2x104x128xf32, #tpu.memory_space<vmem>>, vector<1x1x128xf32>
    %182 = vector.shape_cast %181 : vector<1x1x128xf32> to vector<1x128xf32>
    %c0_57 = arith.constant 0 : index
    %c0_58 = arith.constant 0 : index
    %183 = vector.load %arg5[%c0_57, %c0_58] : memref<64x64xf32, #tpu.memory_space<vmem>>, vector<64x64xf32>
    %cst_59 = arith.constant dense<0.000000e+00> : vector<64x128xf32>
    %184 = tpu.matmul %183, %178, %cst_59 {dimension_numbers = #tpu.dot_dimension_numbers<[1], [0], [0], [1], [0, 0, 1, 1], [], []>} : vector<64x64xf32>, vector<64x128xf32>, vector<64x128xf32> -> vector<64x128xf32>
    %185 = vector.broadcast %182 : vector<1x128xf32> to vector<64x128xf32>
    %186 = arith.addf %184, %185 : vector<64x128xf32>
    %cst_60 = arith.constant 0.000000e+00 : f32
    %187 = vector.broadcast %cst_60 : f32 to vector<8x32xf32>
    %cst_61 = arith.constant 0.000000e+00 : f32
    %188 = vector.broadcast %cst_61 : f32 to vector<8x32xf32>
    %189 = vector.extract_strided_slice %186 {offsets = [0, 0], sizes = [8, 128], strides = [1, 1]} : vector<64x128xf32> to vector<8x128xf32>
    %cst_62 = arith.constant dense<0.000000e+00> : vector<8x128xf32>
    %190 = tpu.matmul %187, %180, %cst_62 {dimension_numbers = #tpu.dot_dimension_numbers<[1], [0], [0], [1], [0, 0, 1, 1], [], []>} : vector<8x32xf32>, vector<32x128xf32>, vector<8x128xf32> -> vector<8x128xf32>
    %191 = arith.addf %189, %190 : vector<8x128xf32>
    %192 = vector.extract_strided_slice %191 {offsets = [0, 0], sizes = [8, 96], strides = [1, 1]} : vector<8x128xf32> to vector<8x96xf32>
    %193 = arith.negf %192 : vector<8x96xf32>
    %194 = math.exp %193 : vector<8x96xf32>
    %cst_63 = arith.constant 1.000000e+00 : f32
    %195 = vector.broadcast %cst_63 : f32 to vector<8x96xf32>
    %196 = arith.addf %195, %194 : vector<8x96xf32>
    %197 = arith.divf %195, %196 : vector<8x96xf32>
    %198 = vector.extract_strided_slice %191 {offsets = [0, 96], sizes = [8, 32], strides = [1, 1]} : vector<8x128xf32> to vector<8x32xf32>
    %199 = math.tanh %198 : vector<8x32xf32>
    %200 = vector.extract_strided_slice %197 {offsets = [0, 32], sizes = [8, 32], strides = [1, 1]} : vector<8x96xf32> to vector<8x32xf32>
    %201 = arith.mulf %200, %188 : vector<8x32xf32>
    %202 = vector.extract_strided_slice %197 {offsets = [0, 0], sizes = [8, 32], strides = [1, 1]} : vector<8x96xf32> to vector<8x32xf32>
    %203 = arith.mulf %202, %199 : vector<8x32xf32>
    %204 = arith.addf %201, %203 : vector<8x32xf32>
    %205 = vector.extract_strided_slice %197 {offsets = [0, 64], sizes = [8, 32], strides = [1, 1]} : vector<8x96xf32> to vector<8x32xf32>
    %206 = math.tanh %204 : vector<8x32xf32>
    %207 = arith.mulf %205, %206 : vector<8x32xf32>
    %c0_64 = arith.constant 0 : index
    %c0_65 = arith.constant 0 : index
    %208 = vector.load %arg5[%c0_64, %c0_65] : memref<64x64xf32, #tpu.memory_space<vmem>>, vector<8x32xf32>
    tpu.vector_store %arg5[%c0_64, %c0_65], %207 {strides = array<i32>} : memref<64x64xf32, #tpu.memory_space<vmem>>, vector<8x32xf32>,
    %c56_66 = arith.constant 56 : index
    %c32_67 = arith.constant 32 : index
    %209 = vector.load %arg5[%c56_66, %c32_67] : memref<64x64xf32, #tpu.memory_space<vmem>>, vector<8x32xf32>
    tpu.vector_store %arg5[%c56_66, %c32_67], %207 {strides = array<i32>} : memref<64x64xf32, #tpu.memory_space<vmem>>, vector<8x32xf32>,
    %210 = vector.extract_strided_slice %186 {offsets = [8, 0], sizes = [8, 128], strides = [1, 1]} : vector<64x128xf32> to vector<8x128xf32>
    %cst_68 = arith.constant dense<0.000000e+00> : vector<8x128xf32>
    %211 = tpu.matmul %207, %180, %cst_68 {dimension_numbers = #tpu.dot_dimension_numbers<[1], [0], [0], [1], [0, 0, 1, 1], [], []>} : vector<8x32xf32>, vector<32x128xf32>, vector<8x128xf32> -> vector<8x128xf32>
    %212 = arith.addf %210, %211 : vector<8x128xf32>
    %213 = vector.extract_strided_slice %212 {offsets = [0, 0], sizes = [8, 96], strides = [1, 1]} : vector<8x128xf32> to vector<8x96xf32>
    %214 = arith.negf %213 : vector<8x96xf32>
    %215 = math.exp %214 : vector<8x96xf32>
    %cst_69 = arith.constant 1.000000e+00 : f32
    %216 = vector.broadcast %cst_69 : f32 to vector<8x96xf32>
    %217 = arith.addf %216, %215 : vector<8x96xf32>
    %218 = arith.divf %216, %217 : vector<8x96xf32>
    %219 = vector.extract_strided_slice %212 {offsets = [0, 96], sizes = [8, 32], strides = [1, 1]} : vector<8x128xf32> to vector<8x32xf32>
    %220 = math.tanh %219 : vector<8x32xf32>
    %221 = vector.extract_strided_slice %218 {offsets = [0, 32], sizes = [8, 32], strides = [1, 1]} : vector<8x96xf32> to vector<8x32xf32>
    %222 = arith.mulf %221, %204 : vector<8x32xf32>
    %223 = vector.extract_strided_slice %218 {offsets = [0, 0], sizes = [8, 32], strides = [1, 1]} : vector<8x96xf32> to vector<8x32xf32>
    %224 = arith.mulf %223, %220 : vector<8x32xf32>
    %225 = arith.addf %222, %224 : vector<8x32xf32>
    %226 = vector.extract_strided_slice %218 {offsets = [0, 64], sizes = [8, 32], strides = [1, 1]} : vector<8x96xf32> to vector<8x32xf32>
    %227 = math.tanh %225 : vector<8x32xf32>
    %228 = arith.mulf %226, %227 : vector<8x32xf32>
    %c8_70 = arith.constant 8 : index
    %c0_71 = arith.constant 0 : index
    %229 = vector.load %arg5[%c8_70, %c0_71] : memref<64x64xf32, #tpu.memory_space<vmem>>, vector<8x32xf32>
    tpu.vector_store %arg5[%c8_70, %c0_71], %228 {strides = array<i32>} : memref<64x64xf32, #tpu.memory_space<vmem>>, vector<8x32xf32>,
    %c48_72 = arith.constant 48 : index
    %c32_73 = arith.constant 32 : index
    %230 = vector.load %arg5[%c48_72, %c32_73] : memref<64x64xf32, #tpu.memory_space<vmem>>, vector<8x32xf32>
    tpu.vector_store %arg5[%c48_72, %c32_73], %228 {strides = array<i32>} : memref<64x64xf32, #tpu.memory_space<vmem>>, vector<8x32xf32>,
    %231 = vector.extract_strided_slice %186 {offsets = [16, 0], sizes = [8, 128], strides = [1, 1]} : vector<64x128xf32> to vector<8x128xf32>
    %cst_74 = arith.constant dense<0.000000e+00> : vector<8x128xf32>
    %232 = tpu.matmul %228, %180, %cst_74 {dimension_numbers = #tpu.dot_dimension_numbers<[1], [0], [0], [1], [0, 0, 1, 1], [], []>} : vector<8x32xf32>, vector<32x128xf32>, vector<8x128xf32> -> vector<8x128xf32>
    %233 = arith.addf %231, %232 : vector<8x128xf32>
    %234 = vector.extract_strided_slice %233 {offsets = [0, 0], sizes = [8, 96], strides = [1, 1]} : vector<8x128xf32> to vector<8x96xf32>
    %235 = arith.negf %234 : vector<8x96xf32>
    %236 = math.exp %235 : vector<8x96xf32>
    %cst_75 = arith.constant 1.000000e+00 : f32
    %237 = vector.broadcast %cst_75 : f32 to vector<8x96xf32>
    %238 = arith.addf %237, %236 : vector<8x96xf32>
    %239 = arith.divf %237, %238 : vector<8x96xf32>
    %240 = vector.extract_strided_slice %233 {offsets = [0, 96], sizes = [8, 32], strides = [1, 1]} : vector<8x128xf32> to vector<8x32xf32>
    %241 = math.tanh %240 : vector<8x32xf32>
    %242 = vector.extract_strided_slice %239 {offsets = [0, 32], sizes = [8, 32], strides = [1, 1]} : vector<8x96xf32> to vector<8x32xf32>
    %243 = arith.mulf %242, %225 : vector<8x32xf32>
    %244 = vector.extract_strided_slice %239 {offsets = [0, 0], sizes = [8, 32], strides = [1, 1]} : vector<8x96xf32> to vector<8x32xf32>
    %245 = arith.mulf %244, %241 : vector<8x32xf32>
    %246 = arith.addf %243, %245 : vector<8x32xf32>
    %247 = vector.extract_strided_slice %239 {offsets = [0, 64], sizes = [8, 32], strides = [1, 1]} : vector<8x96xf32> to vector<8x32xf32>
    %248 = math.tanh %246 : vector<8x32xf32>
    %249 = arith.mulf %247, %248 : vector<8x32xf32>
    %c16_76 = arith.constant 16 : index
    %c0_77 = arith.constant 0 : index
    %250 = vector.load %arg5[%c16_76, %c0_77] : memref<64x64xf32, #tpu.memory_space<vmem>>, vector<8x32xf32>
    tpu.vector_store %arg5[%c16_76, %c0_77], %249 {strides = array<i32>} : memref<64x64xf32, #tpu.memory_space<vmem>>, vector<8x32xf32>,
    %c40_78 = arith.constant 40 : index
    %c32_79 = arith.constant 32 : index
    %251 = vector.load %arg5[%c40_78, %c32_79] : memref<64x64xf32, #tpu.memory_space<vmem>>, vector<8x32xf32>
    tpu.vector_store %arg5[%c40_78, %c32_79], %249 {strides = array<i32>} : memref<64x64xf32, #tpu.memory_space<vmem>>, vector<8x32xf32>,
    %252 = vector.extract_strided_slice %186 {offsets = [24, 0], sizes = [8, 128], strides = [1, 1]} : vector<64x128xf32> to vector<8x128xf32>
    %cst_80 = arith.constant dense<0.000000e+00> : vector<8x128xf32>
    %253 = tpu.matmul %249, %180, %cst_80 {dimension_numbers = #tpu.dot_dimension_numbers<[1], [0], [0], [1], [0, 0, 1, 1], [], []>} : vector<8x32xf32>, vector<32x128xf32>, vector<8x128xf32> -> vector<8x128xf32>
    %254 = arith.addf %252, %253 : vector<8x128xf32>
    %255 = vector.extract_strided_slice %254 {offsets = [0, 0], sizes = [8, 96], strides = [1, 1]} : vector<8x128xf32> to vector<8x96xf32>
    %256 = arith.negf %255 : vector<8x96xf32>
    %257 = math.exp %256 : vector<8x96xf32>
    %cst_81 = arith.constant 1.000000e+00 : f32
    %258 = vector.broadcast %cst_81 : f32 to vector<8x96xf32>
    %259 = arith.addf %258, %257 : vector<8x96xf32>
    %260 = arith.divf %258, %259 : vector<8x96xf32>
    %261 = vector.extract_strided_slice %254 {offsets = [0, 96], sizes = [8, 32], strides = [1, 1]} : vector<8x128xf32> to vector<8x32xf32>
    %262 = math.tanh %261 : vector<8x32xf32>
    %263 = vector.extract_strided_slice %260 {offsets = [0, 32], sizes = [8, 32], strides = [1, 1]} : vector<8x96xf32> to vector<8x32xf32>
    %264 = arith.mulf %263, %246 : vector<8x32xf32>
    %265 = vector.extract_strided_slice %260 {offsets = [0, 0], sizes = [8, 32], strides = [1, 1]} : vector<8x96xf32> to vector<8x32xf32>
    %266 = arith.mulf %265, %262 : vector<8x32xf32>
    %267 = arith.addf %264, %266 : vector<8x32xf32>
    %268 = vector.extract_strided_slice %260 {offsets = [0, 64], sizes = [8, 32], strides = [1, 1]} : vector<8x96xf32> to vector<8x32xf32>
    %269 = math.tanh %267 : vector<8x32xf32>
    %270 = arith.mulf %268, %269 : vector<8x32xf32>
    %c24_82 = arith.constant 24 : index
    %c0_83 = arith.constant 0 : index
    %271 = vector.load %arg5[%c24_82, %c0_83] : memref<64x64xf32, #tpu.memory_space<vmem>>, vector<8x32xf32>
    tpu.vector_store %arg5[%c24_82, %c0_83], %270 {strides = array<i32>} : memref<64x64xf32, #tpu.memory_space<vmem>>, vector<8x32xf32>,
    %c32_84 = arith.constant 32 : index
    %c32_85 = arith.constant 32 : index
    %272 = vector.load %arg5[%c32_84, %c32_85] : memref<64x64xf32, #tpu.memory_space<vmem>>, vector<8x32xf32>
    tpu.vector_store %arg5[%c32_84, %c32_85], %270 {strides = array<i32>} : memref<64x64xf32, #tpu.memory_space<vmem>>, vector<8x32xf32>,
    %273 = vector.extract_strided_slice %186 {offsets = [32, 0], sizes = [8, 128], strides = [1, 1]} : vector<64x128xf32> to vector<8x128xf32>
    %cst_86 = arith.constant dense<0.000000e+00> : vector<8x128xf32>
    %274 = tpu.matmul %270, %180, %cst_86 {dimension_numbers = #tpu.dot_dimension_numbers<[1], [0], [0], [1], [0, 0, 1, 1], [], []>} : vector<8x32xf32>, vector<32x128xf32>, vector<8x128xf32> -> vector<8x128xf32>
    %275 = arith.addf %273, %274 : vector<8x128xf32>
    %276 = vector.extract_strided_slice %275 {offsets = [0, 0], sizes = [8, 96], strides = [1, 1]} : vector<8x128xf32> to vector<8x96xf32>
    %277 = arith.negf %276 : vector<8x96xf32>
    %278 = math.exp %277 : vector<8x96xf32>
    %cst_87 = arith.constant 1.000000e+00 : f32
    %279 = vector.broadcast %cst_87 : f32 to vector<8x96xf32>
    %280 = arith.addf %279, %278 : vector<8x96xf32>
    %281 = arith.divf %279, %280 : vector<8x96xf32>
    %282 = vector.extract_strided_slice %275 {offsets = [0, 96], sizes = [8, 32], strides = [1, 1]} : vector<8x128xf32> to vector<8x32xf32>
    %283 = math.tanh %282 : vector<8x32xf32>
    %284 = vector.extract_strided_slice %281 {offsets = [0, 32], sizes = [8, 32], strides = [1, 1]} : vector<8x96xf32> to vector<8x32xf32>
    %285 = arith.mulf %284, %267 : vector<8x32xf32>
    %286 = vector.extract_strided_slice %281 {offsets = [0, 0], sizes = [8, 32], strides = [1, 1]} : vector<8x96xf32> to vector<8x32xf32>
    %287 = arith.mulf %286, %283 : vector<8x32xf32>
    %288 = arith.addf %285, %287 : vector<8x32xf32>
    %289 = vector.extract_strided_slice %281 {offsets = [0, 64], sizes = [8, 32], strides = [1, 1]} : vector<8x96xf32> to vector<8x32xf32>
    %290 = math.tanh %288 : vector<8x32xf32>
    %291 = arith.mulf %289, %290 : vector<8x32xf32>
    %c32_88 = arith.constant 32 : index
    %c0_89 = arith.constant 0 : index
    %292 = vector.load %arg5[%c32_88, %c0_89] : memref<64x64xf32, #tpu.memory_space<vmem>>, vector<8x32xf32>
    tpu.vector_store %arg5[%c32_88, %c0_89], %291 {strides = array<i32>} : memref<64x64xf32, #tpu.memory_space<vmem>>, vector<8x32xf32>,
    %c24_90 = arith.constant 24 : index
    %c32_91 = arith.constant 32 : index
    %293 = vector.load %arg5[%c24_90, %c32_91] : memref<64x64xf32, #tpu.memory_space<vmem>>, vector<8x32xf32>
    tpu.vector_store %arg5[%c24_90, %c32_91], %291 {strides = array<i32>} : memref<64x64xf32, #tpu.memory_space<vmem>>, vector<8x32xf32>,
    %294 = vector.extract_strided_slice %186 {offsets = [40, 0], sizes = [8, 128], strides = [1, 1]} : vector<64x128xf32> to vector<8x128xf32>
    %cst_92 = arith.constant dense<0.000000e+00> : vector<8x128xf32>
    %295 = tpu.matmul %291, %180, %cst_92 {dimension_numbers = #tpu.dot_dimension_numbers<[1], [0], [0], [1], [0, 0, 1, 1], [], []>} : vector<8x32xf32>, vector<32x128xf32>, vector<8x128xf32> -> vector<8x128xf32>
    %296 = arith.addf %294, %295 : vector<8x128xf32>
    %297 = vector.extract_strided_slice %296 {offsets = [0, 0], sizes = [8, 96], strides = [1, 1]} : vector<8x128xf32> to vector<8x96xf32>
    %298 = arith.negf %297 : vector<8x96xf32>
    %299 = math.exp %298 : vector<8x96xf32>
    %cst_93 = arith.constant 1.000000e+00 : f32
    %300 = vector.broadcast %cst_93 : f32 to vector<8x96xf32>
    %301 = arith.addf %300, %299 : vector<8x96xf32>
    %302 = arith.divf %300, %301 : vector<8x96xf32>
    %303 = vector.extract_strided_slice %296 {offsets = [0, 96], sizes = [8, 32], strides = [1, 1]} : vector<8x128xf32> to vector<8x32xf32>
    %304 = math.tanh %303 : vector<8x32xf32>
    %305 = vector.extract_strided_slice %302 {offsets = [0, 32], sizes = [8, 32], strides = [1, 1]} : vector<8x96xf32> to vector<8x32xf32>
    %306 = arith.mulf %305, %288 : vector<8x32xf32>
    %307 = vector.extract_strided_slice %302 {offsets = [0, 0], sizes = [8, 32], strides = [1, 1]} : vector<8x96xf32> to vector<8x32xf32>
    %308 = arith.mulf %307, %304 : vector<8x32xf32>
    %309 = arith.addf %306, %308 : vector<8x32xf32>
    %310 = vector.extract_strided_slice %302 {offsets = [0, 64], sizes = [8, 32], strides = [1, 1]} : vector<8x96xf32> to vector<8x32xf32>
    %311 = math.tanh %309 : vector<8x32xf32>
    %312 = arith.mulf %310, %311 : vector<8x32xf32>
    %c40_94 = arith.constant 40 : index
    %c0_95 = arith.constant 0 : index
    %313 = vector.load %arg5[%c40_94, %c0_95] : memref<64x64xf32, #tpu.memory_space<vmem>>, vector<8x32xf32>
    tpu.vector_store %arg5[%c40_94, %c0_95], %312 {strides = array<i32>} : memref<64x64xf32, #tpu.memory_space<vmem>>, vector<8x32xf32>,
    %c16_96 = arith.constant 16 : index
    %c32_97 = arith.constant 32 : index
    %314 = vector.load %arg5[%c16_96, %c32_97] : memref<64x64xf32, #tpu.memory_space<vmem>>, vector<8x32xf32>
    tpu.vector_store %arg5[%c16_96, %c32_97], %312 {strides = array<i32>} : memref<64x64xf32, #tpu.memory_space<vmem>>, vector<8x32xf32>,
    %315 = vector.extract_strided_slice %186 {offsets = [48, 0], sizes = [8, 128], strides = [1, 1]} : vector<64x128xf32> to vector<8x128xf32>
    %cst_98 = arith.constant dense<0.000000e+00> : vector<8x128xf32>
    %316 = tpu.matmul %312, %180, %cst_98 {dimension_numbers = #tpu.dot_dimension_numbers<[1], [0], [0], [1], [0, 0, 1, 1], [], []>} : vector<8x32xf32>, vector<32x128xf32>, vector<8x128xf32> -> vector<8x128xf32>
    %317 = arith.addf %315, %316 : vector<8x128xf32>
    %318 = vector.extract_strided_slice %317 {offsets = [0, 0], sizes = [8, 96], strides = [1, 1]} : vector<8x128xf32> to vector<8x96xf32>
    %319 = arith.negf %318 : vector<8x96xf32>
    %320 = math.exp %319 : vector<8x96xf32>
    %cst_99 = arith.constant 1.000000e+00 : f32
    %321 = vector.broadcast %cst_99 : f32 to vector<8x96xf32>
    %322 = arith.addf %321, %320 : vector<8x96xf32>
    %323 = arith.divf %321, %322 : vector<8x96xf32>
    %324 = vector.extract_strided_slice %317 {offsets = [0, 96], sizes = [8, 32], strides = [1, 1]} : vector<8x128xf32> to vector<8x32xf32>
    %325 = math.tanh %324 : vector<8x32xf32>
    %326 = vector.extract_strided_slice %323 {offsets = [0, 32], sizes = [8, 32], strides = [1, 1]} : vector<8x96xf32> to vector<8x32xf32>
    %327 = arith.mulf %326, %309 : vector<8x32xf32>
    %328 = vector.extract_strided_slice %323 {offsets = [0, 0], sizes = [8, 32], strides = [1, 1]} : vector<8x96xf32> to vector<8x32xf32>
    %329 = arith.mulf %328, %325 : vector<8x32xf32>
    %330 = arith.addf %327, %329 : vector<8x32xf32>
    %331 = vector.extract_strided_slice %323 {offsets = [0, 64], sizes = [8, 32], strides = [1, 1]} : vector<8x96xf32> to vector<8x32xf32>
    %332 = math.tanh %330 : vector<8x32xf32>
    %333 = arith.mulf %331, %332 : vector<8x32xf32>
    %c48_100 = arith.constant 48 : index
    %c0_101 = arith.constant 0 : index
    %334 = vector.load %arg5[%c48_100, %c0_101] : memref<64x64xf32, #tpu.memory_space<vmem>>, vector<8x32xf32>
    tpu.vector_store %arg5[%c48_100, %c0_101], %333 {strides = array<i32>} : memref<64x64xf32, #tpu.memory_space<vmem>>, vector<8x32xf32>,
    %c8_102 = arith.constant 8 : index
    %c32_103 = arith.constant 32 : index
    %335 = vector.load %arg5[%c8_102, %c32_103] : memref<64x64xf32, #tpu.memory_space<vmem>>, vector<8x32xf32>
    tpu.vector_store %arg5[%c8_102, %c32_103], %333 {strides = array<i32>} : memref<64x64xf32, #tpu.memory_space<vmem>>, vector<8x32xf32>,
    %336 = vector.extract_strided_slice %186 {offsets = [56, 0], sizes = [8, 128], strides = [1, 1]} : vector<64x128xf32> to vector<8x128xf32>
    %cst_104 = arith.constant dense<0.000000e+00> : vector<8x128xf32>
    %337 = tpu.matmul %333, %180, %cst_104 {dimension_numbers = #tpu.dot_dimension_numbers<[1], [0], [0], [1], [0, 0, 1, 1], [], []>} : vector<8x32xf32>, vector<32x128xf32>, vector<8x128xf32> -> vector<8x128xf32>
    %338 = arith.addf %336, %337 : vector<8x128xf32>
    %339 = vector.extract_strided_slice %338 {offsets = [0, 0], sizes = [8, 96], strides = [1, 1]} : vector<8x128xf32> to vector<8x96xf32>
    %340 = arith.negf %339 : vector<8x96xf32>
    %341 = math.exp %340 : vector<8x96xf32>
    %cst_105 = arith.constant 1.000000e+00 : f32
    %342 = vector.broadcast %cst_105 : f32 to vector<8x96xf32>
    %343 = arith.addf %342, %341 : vector<8x96xf32>
    %344 = arith.divf %342, %343 : vector<8x96xf32>
    %345 = vector.extract_strided_slice %338 {offsets = [0, 96], sizes = [8, 32], strides = [1, 1]} : vector<8x128xf32> to vector<8x32xf32>
    %346 = math.tanh %345 : vector<8x32xf32>
    %347 = vector.extract_strided_slice %344 {offsets = [0, 32], sizes = [8, 32], strides = [1, 1]} : vector<8x96xf32> to vector<8x32xf32>
    %348 = arith.mulf %347, %330 : vector<8x32xf32>
    %349 = vector.extract_strided_slice %344 {offsets = [0, 0], sizes = [8, 32], strides = [1, 1]} : vector<8x96xf32> to vector<8x32xf32>
    %350 = arith.mulf %349, %346 : vector<8x32xf32>
    %351 = arith.addf %348, %350 : vector<8x32xf32>
    %352 = vector.extract_strided_slice %344 {offsets = [0, 64], sizes = [8, 32], strides = [1, 1]} : vector<8x96xf32> to vector<8x32xf32>
    %353 = math.tanh %351 : vector<8x32xf32>
    %354 = arith.mulf %352, %353 : vector<8x32xf32>
    %c56_106 = arith.constant 56 : index
    %c0_107 = arith.constant 0 : index
    %355 = vector.load %arg5[%c56_106, %c0_107] : memref<64x64xf32, #tpu.memory_space<vmem>>, vector<8x32xf32>
    tpu.vector_store %arg5[%c56_106, %c0_107], %354 {strides = array<i32>} : memref<64x64xf32, #tpu.memory_space<vmem>>, vector<8x32xf32>,
    %c0_108 = arith.constant 0 : index
    %c32_109 = arith.constant 32 : index
    %356 = vector.load %arg5[%c0_108, %c32_109] : memref<64x64xf32, #tpu.memory_space<vmem>>, vector<8x32xf32>
    tpu.vector_store %arg5[%c0_108, %c32_109], %354 {strides = array<i32>} : memref<64x64xf32, #tpu.memory_space<vmem>>, vector<8x32xf32>,
    %c1 = arith.constant 1 : index
    %c0_110 = arith.constant 0 : index
    %c0_111 = arith.constant 0 : index
    %357 = vector.load %arg2[%c1, %c0_110, %c0_111] : memref<2x104x128xf32, #tpu.memory_space<vmem>>, vector<1x64x128xf32>
    %358 = vector.shape_cast %357 : vector<1x64x128xf32> to vector<64x128xf32>
    %c1_112 = arith.constant 1 : index
    %c64_113 = arith.constant 64 : index
    %c0_114 = arith.constant 0 : index
    %359 = vector.load %arg2[%c1_112, %c64_113, %c0_114] : memref<2x104x128xf32, #tpu.memory_space<vmem>>, vector<1x32x128xf32>
    %360 = vector.shape_cast %359 : vector<1x32x128xf32> to vector<32x128xf32>
    %c1_115 = arith.constant 1 : index
    %c96_116 = arith.constant 96 : index
    %c0_117 = arith.constant 0 : index
    %361 = vector.load %arg2[%c1_115, %c96_116, %c0_117] : memref<2x104x128xf32, #tpu.memory_space<vmem>>, vector<1x1x128xf32>
    %362 = vector.shape_cast %361 : vector<1x1x128xf32> to vector<1x128xf32>
    %c0_118 = arith.constant 0 : index
    %c0_119 = arith.constant 0 : index
    %363 = vector.load %arg5[%c0_118, %c0_119] : memref<64x64xf32, #tpu.memory_space<vmem>>, vector<64x64xf32>
    %cst_120 = arith.constant dense<0.000000e+00> : vector<64x128xf32>
    %364 = tpu.matmul %363, %358, %cst_120 {dimension_numbers = #tpu.dot_dimension_numbers<[1], [0], [0], [1], [0, 0, 1, 1], [], []>} : vector<64x64xf32>, vector<64x128xf32>, vector<64x128xf32> -> vector<64x128xf32>
    %365 = vector.broadcast %362 : vector<1x128xf32> to vector<64x128xf32>
    %366 = arith.addf %364, %365 : vector<64x128xf32>
    %cst_121 = arith.constant 0.000000e+00 : f32
    %367 = vector.broadcast %cst_121 : f32 to vector<8x32xf32>
    %cst_122 = arith.constant 0.000000e+00 : f32
    %368 = vector.broadcast %cst_122 : f32 to vector<8x32xf32>
    %cst_123 = arith.constant 0.000000e+00 : f32
    %369 = vector.broadcast %cst_123 : f32 to vector<8x32xf32>
    %370 = vector.extract_strided_slice %366 {offsets = [0, 0], sizes = [8, 128], strides = [1, 1]} : vector<64x128xf32> to vector<8x128xf32>
    %cst_124 = arith.constant dense<0.000000e+00> : vector<8x128xf32>
    %371 = tpu.matmul %367, %360, %cst_124 {dimension_numbers = #tpu.dot_dimension_numbers<[1], [0], [0], [1], [0, 0, 1, 1], [], []>} : vector<8x32xf32>, vector<32x128xf32>, vector<8x128xf32> -> vector<8x128xf32>
    %372 = arith.addf %370, %371 : vector<8x128xf32>
    %373 = vector.extract_strided_slice %372 {offsets = [0, 0], sizes = [8, 96], strides = [1, 1]} : vector<8x128xf32> to vector<8x96xf32>
    %374 = arith.negf %373 : vector<8x96xf32>
    %375 = math.exp %374 : vector<8x96xf32>
    %cst_125 = arith.constant 1.000000e+00 : f32
    %376 = vector.broadcast %cst_125 : f32 to vector<8x96xf32>
    %377 = arith.addf %376, %375 : vector<8x96xf32>
    %378 = arith.divf %376, %377 : vector<8x96xf32>
    %379 = vector.extract_strided_slice %372 {offsets = [0, 96], sizes = [8, 32], strides = [1, 1]} : vector<8x128xf32> to vector<8x32xf32>
    %380 = math.tanh %379 : vector<8x32xf32>
    %381 = vector.extract_strided_slice %378 {offsets = [0, 32], sizes = [8, 32], strides = [1, 1]} : vector<8x96xf32> to vector<8x32xf32>
    %382 = arith.mulf %381, %368 : vector<8x32xf32>
    %383 = vector.extract_strided_slice %378 {offsets = [0, 0], sizes = [8, 32], strides = [1, 1]} : vector<8x96xf32> to vector<8x32xf32>
    %384 = arith.mulf %383, %380 : vector<8x32xf32>
    %385 = arith.addf %382, %384 : vector<8x32xf32>
    %386 = vector.extract_strided_slice %378 {offsets = [0, 64], sizes = [8, 32], strides = [1, 1]} : vector<8x96xf32> to vector<8x32xf32>
    %387 = math.tanh %385 : vector<8x32xf32>
    %388 = arith.mulf %386, %387 : vector<8x32xf32>
    %389 = arith.addf %369, %388 : vector<8x32xf32>
    %390 = vector.extract_strided_slice %366 {offsets = [8, 0], sizes = [8, 128], strides = [1, 1]} : vector<64x128xf32> to vector<8x128xf32>
    %cst_126 = arith.constant dense<0.000000e+00> : vector<8x128xf32>
    %391 = tpu.matmul %388, %360, %cst_126 {dimension_numbers = #tpu.dot_dimension_numbers<[1], [0], [0], [1], [0, 0, 1, 1], [], []>} : vector<8x32xf32>, vector<32x128xf32>, vector<8x128xf32> -> vector<8x128xf32>
    %392 = arith.addf %390, %391 : vector<8x128xf32>
    %393 = vector.extract_strided_slice %392 {offsets = [0, 0], sizes = [8, 96], strides = [1, 1]} : vector<8x128xf32> to vector<8x96xf32>
    %394 = arith.negf %393 : vector<8x96xf32>
    %395 = math.exp %394 : vector<8x96xf32>
    %cst_127 = arith.constant 1.000000e+00 : f32
    %396 = vector.broadcast %cst_127 : f32 to vector<8x96xf32>
    %397 = arith.addf %396, %395 : vector<8x96xf32>
    %398 = arith.divf %396, %397 : vector<8x96xf32>
    %399 = vector.extract_strided_slice %392 {offsets = [0, 96], sizes = [8, 32], strides = [1, 1]} : vector<8x128xf32> to vector<8x32xf32>
    %400 = math.tanh %399 : vector<8x32xf32>
    %401 = vector.extract_strided_slice %398 {offsets = [0, 32], sizes = [8, 32], strides = [1, 1]} : vector<8x96xf32> to vector<8x32xf32>
    %402 = arith.mulf %401, %385 : vector<8x32xf32>
    %403 = vector.extract_strided_slice %398 {offsets = [0, 0], sizes = [8, 32], strides = [1, 1]} : vector<8x96xf32> to vector<8x32xf32>
    %404 = arith.mulf %403, %400 : vector<8x32xf32>
    %405 = arith.addf %402, %404 : vector<8x32xf32>
    %406 = vector.extract_strided_slice %398 {offsets = [0, 64], sizes = [8, 32], strides = [1, 1]} : vector<8x96xf32> to vector<8x32xf32>
    %407 = math.tanh %405 : vector<8x32xf32>
    %408 = arith.mulf %406, %407 : vector<8x32xf32>
    %409 = arith.addf %389, %408 : vector<8x32xf32>
    %410 = vector.extract_strided_slice %366 {offsets = [16, 0], sizes = [8, 128], strides = [1, 1]} : vector<64x128xf32> to vector<8x128xf32>
    %cst_128 = arith.constant dense<0.000000e+00> : vector<8x128xf32>
    %411 = tpu.matmul %408, %360, %cst_128 {dimension_numbers = #tpu.dot_dimension_numbers<[1], [0], [0], [1], [0, 0, 1, 1], [], []>} : vector<8x32xf32>, vector<32x128xf32>, vector<8x128xf32> -> vector<8x128xf32>
    %412 = arith.addf %410, %411 : vector<8x128xf32>
    %413 = vector.extract_strided_slice %412 {offsets = [0, 0], sizes = [8, 96], strides = [1, 1]} : vector<8x128xf32> to vector<8x96xf32>
    %414 = arith.negf %413 : vector<8x96xf32>
    %415 = math.exp %414 : vector<8x96xf32>
    %cst_129 = arith.constant 1.000000e+00 : f32
    %416 = vector.broadcast %cst_129 : f32 to vector<8x96xf32>
    %417 = arith.addf %416, %415 : vector<8x96xf32>
    %418 = arith.divf %416, %417 : vector<8x96xf32>
    %419 = vector.extract_strided_slice %412 {offsets = [0, 96], sizes = [8, 32], strides = [1, 1]} : vector<8x128xf32> to vector<8x32xf32>
    %420 = math.tanh %419 : vector<8x32xf32>
    %421 = vector.extract_strided_slice %418 {offsets = [0, 32], sizes = [8, 32], strides = [1, 1]} : vector<8x96xf32> to vector<8x32xf32>
    %422 = arith.mulf %421, %405 : vector<8x32xf32>
    %423 = vector.extract_strided_slice %418 {offsets = [0, 0], sizes = [8, 32], strides = [1, 1]} : vector<8x96xf32> to vector<8x32xf32>
    %424 = arith.mulf %423, %420 : vector<8x32xf32>
    %425 = arith.addf %422, %424 : vector<8x32xf32>
    %426 = vector.extract_strided_slice %418 {offsets = [0, 64], sizes = [8, 32], strides = [1, 1]} : vector<8x96xf32> to vector<8x32xf32>
    %427 = math.tanh %425 : vector<8x32xf32>
    %428 = arith.mulf %426, %427 : vector<8x32xf32>
    %429 = arith.addf %409, %428 : vector<8x32xf32>
    %430 = vector.extract_strided_slice %366 {offsets = [24, 0], sizes = [8, 128], strides = [1, 1]} : vector<64x128xf32> to vector<8x128xf32>
    %cst_130 = arith.constant dense<0.000000e+00> : vector<8x128xf32>
    %431 = tpu.matmul %428, %360, %cst_130 {dimension_numbers = #tpu.dot_dimension_numbers<[1], [0], [0], [1], [0, 0, 1, 1], [], []>} : vector<8x32xf32>, vector<32x128xf32>, vector<8x128xf32> -> vector<8x128xf32>
    %432 = arith.addf %430, %431 : vector<8x128xf32>
    %433 = vector.extract_strided_slice %432 {offsets = [0, 0], sizes = [8, 96], strides = [1, 1]} : vector<8x128xf32> to vector<8x96xf32>
    %434 = arith.negf %433 : vector<8x96xf32>
    %435 = math.exp %434 : vector<8x96xf32>
    %cst_131 = arith.constant 1.000000e+00 : f32
    %436 = vector.broadcast %cst_131 : f32 to vector<8x96xf32>
    %437 = arith.addf %436, %435 : vector<8x96xf32>
    %438 = arith.divf %436, %437 : vector<8x96xf32>
    %439 = vector.extract_strided_slice %432 {offsets = [0, 96], sizes = [8, 32], strides = [1, 1]} : vector<8x128xf32> to vector<8x32xf32>
    %440 = math.tanh %439 : vector<8x32xf32>
    %441 = vector.extract_strided_slice %438 {offsets = [0, 32], sizes = [8, 32], strides = [1, 1]} : vector<8x96xf32> to vector<8x32xf32>
    %442 = arith.mulf %441, %425 : vector<8x32xf32>
    %443 = vector.extract_strided_slice %438 {offsets = [0, 0], sizes = [8, 32], strides = [1, 1]} : vector<8x96xf32> to vector<8x32xf32>
    %444 = arith.mulf %443, %440 : vector<8x32xf32>
    %445 = arith.addf %442, %444 : vector<8x32xf32>
    %446 = vector.extract_strided_slice %438 {offsets = [0, 64], sizes = [8, 32], strides = [1, 1]} : vector<8x96xf32> to vector<8x32xf32>
    %447 = math.tanh %445 : vector<8x32xf32>
    %448 = arith.mulf %446, %447 : vector<8x32xf32>
    %449 = arith.addf %429, %448 : vector<8x32xf32>
    %450 = vector.extract_strided_slice %366 {offsets = [32, 0], sizes = [8, 128], strides = [1, 1]} : vector<64x128xf32> to vector<8x128xf32>
    %cst_132 = arith.constant dense<0.000000e+00> : vector<8x128xf32>
    %451 = tpu.matmul %448, %360, %cst_132 {dimension_numbers = #tpu.dot_dimension_numbers<[1], [0], [0], [1], [0, 0, 1, 1], [], []>} : vector<8x32xf32>, vector<32x128xf32>, vector<8x128xf32> -> vector<8x128xf32>
    %452 = arith.addf %450, %451 : vector<8x128xf32>
    %453 = vector.extract_strided_slice %452 {offsets = [0, 0], sizes = [8, 96], strides = [1, 1]} : vector<8x128xf32> to vector<8x96xf32>
    %454 = arith.negf %453 : vector<8x96xf32>
    %455 = math.exp %454 : vector<8x96xf32>
    %cst_133 = arith.constant 1.000000e+00 : f32
    %456 = vector.broadcast %cst_133 : f32 to vector<8x96xf32>
    %457 = arith.addf %456, %455 : vector<8x96xf32>
    %458 = arith.divf %456, %457 : vector<8x96xf32>
    %459 = vector.extract_strided_slice %452 {offsets = [0, 96], sizes = [8, 32], strides = [1, 1]} : vector<8x128xf32> to vector<8x32xf32>
    %460 = math.tanh %459 : vector<8x32xf32>
    %461 = vector.extract_strided_slice %458 {offsets = [0, 32], sizes = [8, 32], strides = [1, 1]} : vector<8x96xf32> to vector<8x32xf32>
    %462 = arith.mulf %461, %445 : vector<8x32xf32>
    %463 = vector.extract_strided_slice %458 {offsets = [0, 0], sizes = [8, 32], strides = [1, 1]} : vector<8x96xf32> to vector<8x32xf32>
    %464 = arith.mulf %463, %460 : vector<8x32xf32>
    %465 = arith.addf %462, %464 : vector<8x32xf32>
    %466 = vector.extract_strided_slice %458 {offsets = [0, 64], sizes = [8, 32], strides = [1, 1]} : vector<8x96xf32> to vector<8x32xf32>
    %467 = math.tanh %465 : vector<8x32xf32>
    %468 = arith.mulf %466, %467 : vector<8x32xf32>
    %469 = arith.addf %449, %468 : vector<8x32xf32>
    %470 = vector.extract_strided_slice %366 {offsets = [40, 0], sizes = [8, 128], strides = [1, 1]} : vector<64x128xf32> to vector<8x128xf32>
    %cst_134 = arith.constant dense<0.000000e+00> : vector<8x128xf32>
    %471 = tpu.matmul %468, %360, %cst_134 {dimension_numbers = #tpu.dot_dimension_numbers<[1], [0], [0], [1], [0, 0, 1, 1], [], []>} : vector<8x32xf32>, vector<32x128xf32>, vector<8x128xf32> -> vector<8x128xf32>
    %472 = arith.addf %470, %471 : vector<8x128xf32>
    %473 = vector.extract_strided_slice %472 {offsets = [0, 0], sizes = [8, 96], strides = [1, 1]} : vector<8x128xf32> to vector<8x96xf32>
    %474 = arith.negf %473 : vector<8x96xf32>
    %475 = math.exp %474 : vector<8x96xf32>
    %cst_135 = arith.constant 1.000000e+00 : f32
    %476 = vector.broadcast %cst_135 : f32 to vector<8x96xf32>
    %477 = arith.addf %476, %475 : vector<8x96xf32>
    %478 = arith.divf %476, %477 : vector<8x96xf32>
    %479 = vector.extract_strided_slice %472 {offsets = [0, 96], sizes = [8, 32], strides = [1, 1]} : vector<8x128xf32> to vector<8x32xf32>
    %480 = math.tanh %479 : vector<8x32xf32>
    %481 = vector.extract_strided_slice %478 {offsets = [0, 32], sizes = [8, 32], strides = [1, 1]} : vector<8x96xf32> to vector<8x32xf32>
    %482 = arith.mulf %481, %465 : vector<8x32xf32>
    %483 = vector.extract_strided_slice %478 {offsets = [0, 0], sizes = [8, 32], strides = [1, 1]} : vector<8x96xf32> to vector<8x32xf32>
    %484 = arith.mulf %483, %480 : vector<8x32xf32>
    %485 = arith.addf %482, %484 : vector<8x32xf32>
    %486 = vector.extract_strided_slice %478 {offsets = [0, 64], sizes = [8, 32], strides = [1, 1]} : vector<8x96xf32> to vector<8x32xf32>
    %487 = math.tanh %485 : vector<8x32xf32>
    %488 = arith.mulf %486, %487 : vector<8x32xf32>
    %489 = arith.addf %469, %488 : vector<8x32xf32>
    %490 = vector.extract_strided_slice %366 {offsets = [48, 0], sizes = [8, 128], strides = [1, 1]} : vector<64x128xf32> to vector<8x128xf32>
    %cst_136 = arith.constant dense<0.000000e+00> : vector<8x128xf32>
    %491 = tpu.matmul %488, %360, %cst_136 {dimension_numbers = #tpu.dot_dimension_numbers<[1], [0], [0], [1], [0, 0, 1, 1], [], []>} : vector<8x32xf32>, vector<32x128xf32>, vector<8x128xf32> -> vector<8x128xf32>
    %492 = arith.addf %490, %491 : vector<8x128xf32>
    %493 = vector.extract_strided_slice %492 {offsets = [0, 0], sizes = [8, 96], strides = [1, 1]} : vector<8x128xf32> to vector<8x96xf32>
    %494 = arith.negf %493 : vector<8x96xf32>
    %495 = math.exp %494 : vector<8x96xf32>
    %cst_137 = arith.constant 1.000000e+00 : f32
    %496 = vector.broadcast %cst_137 : f32 to vector<8x96xf32>
    %497 = arith.addf %496, %495 : vector<8x96xf32>
    %498 = arith.divf %496, %497 : vector<8x96xf32>
    %499 = vector.extract_strided_slice %492 {offsets = [0, 96], sizes = [8, 32], strides = [1, 1]} : vector<8x128xf32> to vector<8x32xf32>
    %500 = math.tanh %499 : vector<8x32xf32>
    %501 = vector.extract_strided_slice %498 {offsets = [0, 32], sizes = [8, 32], strides = [1, 1]} : vector<8x96xf32> to vector<8x32xf32>
    %502 = arith.mulf %501, %485 : vector<8x32xf32>
    %503 = vector.extract_strided_slice %498 {offsets = [0, 0], sizes = [8, 32], strides = [1, 1]} : vector<8x96xf32> to vector<8x32xf32>
    %504 = arith.mulf %503, %500 : vector<8x32xf32>
    %505 = arith.addf %502, %504 : vector<8x32xf32>
    %506 = vector.extract_strided_slice %498 {offsets = [0, 64], sizes = [8, 32], strides = [1, 1]} : vector<8x96xf32> to vector<8x32xf32>
    %507 = math.tanh %505 : vector<8x32xf32>
    %508 = arith.mulf %506, %507 : vector<8x32xf32>
    %509 = arith.addf %489, %508 : vector<8x32xf32>
    %510 = vector.extract_strided_slice %366 {offsets = [56, 0], sizes = [8, 128], strides = [1, 1]} : vector<64x128xf32> to vector<8x128xf32>
    %cst_138 = arith.constant dense<0.000000e+00> : vector<8x128xf32>
    %511 = tpu.matmul %508, %360, %cst_138 {dimension_numbers = #tpu.dot_dimension_numbers<[1], [0], [0], [1], [0, 0, 1, 1], [], []>} : vector<8x32xf32>, vector<32x128xf32>, vector<8x128xf32> -> vector<8x128xf32>
    %512 = arith.addf %510, %511 : vector<8x128xf32>
    %513 = vector.extract_strided_slice %512 {offsets = [0, 0], sizes = [8, 96], strides = [1, 1]} : vector<8x128xf32> to vector<8x96xf32>
    %514 = arith.negf %513 : vector<8x96xf32>
    %515 = math.exp %514 : vector<8x96xf32>
    %cst_139 = arith.constant 1.000000e+00 : f32
    %516 = vector.broadcast %cst_139 : f32 to vector<8x96xf32>
    %517 = arith.addf %516, %515 : vector<8x96xf32>
    %518 = arith.divf %516, %517 : vector<8x96xf32>
    %519 = vector.extract_strided_slice %512 {offsets = [0, 96], sizes = [8, 32], strides = [1, 1]} : vector<8x128xf32> to vector<8x32xf32>
    %520 = math.tanh %519 : vector<8x32xf32>
    %521 = vector.extract_strided_slice %518 {offsets = [0, 32], sizes = [8, 32], strides = [1, 1]} : vector<8x96xf32> to vector<8x32xf32>
    %522 = arith.mulf %521, %505 : vector<8x32xf32>
    %523 = vector.extract_strided_slice %518 {offsets = [0, 0], sizes = [8, 32], strides = [1, 1]} : vector<8x96xf32> to vector<8x32xf32>
    %524 = arith.mulf %523, %520 : vector<8x32xf32>
    %525 = arith.addf %522, %524 : vector<8x32xf32>
    %526 = vector.extract_strided_slice %518 {offsets = [0, 64], sizes = [8, 32], strides = [1, 1]} : vector<8x96xf32> to vector<8x32xf32>
    %527 = math.tanh %525 : vector<8x32xf32>
    %528 = arith.mulf %526, %527 : vector<8x32xf32>
    %529 = arith.addf %509, %528 : vector<8x32xf32>
    %c0_140 = arith.constant 0 : index
    %c0_141 = arith.constant 0 : index
    %530 = vector.load %arg3[%c0_140, %c0_141] : memref<40x1xf32, #tpu.memory_space<vmem>>, vector<32x1xf32>
    %cst_142 = arith.constant dense<0.000000e+00> : vector<8x1xf32>
    %531 = tpu.matmul %529, %530, %cst_142 {dimension_numbers = #tpu.dot_dimension_numbers<[1], [0], [0], [1], [0, 0, 1, 1], [], []>} : vector<8x32xf32>, vector<32x1xf32>, vector<8x1xf32> -> vector<8x1xf32>
    %cst_143 = arith.constant 1.250000e-01 : f32
    %532 = vector.broadcast %cst_143 : f32 to vector<8x1xf32>
    %533 = arith.mulf %531, %532 : vector<8x1xf32>
    %c32_144 = arith.constant 32 : index
    %c0_145 = arith.constant 0 : index
    %534 = vector.load %arg3[%c32_144, %c0_145] : memref<40x1xf32, #tpu.memory_space<vmem>>, vector<1x1xf32>
    %535 = vector.broadcast %534 : vector<1x1xf32> to vector<8x1xf32>
    %536 = arith.addf %533, %535 : vector<8x1xf32>
    %537 = arith.negf %536 : vector<8x1xf32>
    %538 = math.exp %537 : vector<8x1xf32>
    %cst_146 = arith.constant 1.000000e+00 : f32
    %539 = vector.broadcast %cst_146 : f32 to vector<8x1xf32>
    %540 = arith.addf %539, %538 : vector<8x1xf32>
    %541 = arith.divf %539, %540 : vector<8x1xf32>
    %c0_147 = arith.constant 0 : index
    %c0_148 = arith.constant 0 : index
    %542 = vector.load %arg4[%c0_147, %c0_148] : memref<8x1xf32, #tpu.memory_space<vmem>>, vector<8x1xf32>
    tpu.vector_store %arg4[%c0_147, %c0_148], %541 {strides = array<i32>} : memref<8x1xf32, #tpu.memory_space<vmem>>, vector<8x1xf32>,
    return
  }
}

</mosaic_0001>

<llo_original>
// kernel: lstm_model_forward.1
$region0: #{lstm_model_forward.1}
  #allocation0 [shape = 'u32[]', space=smem, size = 0x4, offset = 0x4, fixed_abs, tag = 'smem constant byte address 0x4 - core index']
  #allocation1 [shape = 'u32[144,128]{1,0:T(1,128)}', space=vmem, size = 0x12000, scoped, tag = 'internal scratch']
  #allocation2 [shape = 'f32[64,64]{1,0:T(8,128)}', space=vmem, size = 0x8000, scoped, tag = 'scratch operand']
  %s0 = inlined_call_operand.vmem [shape: f32[64,24], index: 0, kind: input, shape index: {}]
  %s1 = inlined_call_operand.vmem [shape: f32[64,128], index: 1, kind: input, shape index: {}]
  %s2 = inlined_call_operand.vmem [shape: f32[2,104,128], index: 2, kind: input, shape index: {}]
  %s3 = inlined_call_operand.vmem [shape: f32[40,1], index: 3, kind: input, shape index: {}]
  %s4 = inlined_call_operand.vmem [shape: f32[8,1], index: 4, kind: output, shape index: {}]
  %s5 = sld [smem:[#allocation0]]
  $region26: #{lstm_model_forward.1} parent=0
    _
  %s7 = ssub.s32 1, %s5
  %s8 = scalar_select 0, %s7, %s5
  // Predicated region
  $region2: #{lstm_model_forward.1} parent=0 // pred_check
    _
  $region3: #{lstm_model_forward.1} parent=0 // pred_check_branch
    %10 = sbr.rel (0) target = $region5
  $region4: #{lstm_model_forward.1} parent=0 // pred_region
    _
  $region5: #{lstm_model_forward.1} parent=0 // pred_fallthru
    _
  // Predicated region
  $region6: #{lstm_model_forward.1} parent=0 // pred_check
    _
  $region7: #{lstm_model_forward.1} parent=0 // pred_check_branch
    %12 = sbr.rel (0) target = $region9
  $region8: #{lstm_model_forward.1} parent=0 // pred_region
    _
  $region9: #{lstm_model_forward.1} parent=0 // pred_fallthru
    _
  // Predicated region
  $region10: #{lstm_model_forward.1} parent=0 // pred_check
    _
  $region11: #{lstm_model_forward.1} parent=0 // pred_check_branch
    %14 = sbr.rel (0) target = $region13
  $region12: #{lstm_model_forward.1} parent=0 // pred_region
    _
  $region13: #{lstm_model_forward.1} parent=0 // pred_fallthru
    _
  // Predicated region
  $region14: #{lstm_model_forward.1} parent=0 // pred_check
    _
  $region15: #{lstm_model_forward.1} parent=0 // pred_check_branch
    %16 = sbr.rel (0) target = $region17
  $region16: #{lstm_model_forward.1} parent=0 // pred_region
    _
  $region17: #{lstm_model_forward.1} parent=0 // pred_fallthru
    _
  %v17 = vld [vmem:[%s1] sm:$0xff]
  %v18 = vld [vmem:[%s1 + $0x8] sm:$0xff]
  %v19 = vld [vmem:[%s1 + $0x10] sm:$0xff]
  %v20 = vld [vmem:[%s1 + $0x18] sm:$0xff]
  %v21 = vld [vmem:[%s1 + $0x20] sm:$0xff]
  %v22 = vld [vmem:[%s1 + $0x28] sm:$0xff]
  %v23 = vld [vmem:[%s1 + $0x30] sm:$0xff]
  %v24 = vld [vmem:[%s1 + $0x38] sm:$0x1]
  %v25 = vld [vmem:[%s0] sm:$0xff]
  %v26 = vld [vmem:[%s0 + $0x8] sm:$0xff]
  %v27 = vld [vmem:[%s0 + $0x10] sm:$0xff]
  %v28 = vld [vmem:[%s0 + $0x18] sm:$0xff]
  %v29 = vld [vmem:[%s0 + $0x20] sm:$0xff]
  %v30 = vld [vmem:[%s0 + $0x28] sm:$0xff]
  %v31 = vld [vmem:[%s0 + $0x30] sm:$0xff]
  %v32 = vld [vmem:[%s0 + $0x38] sm:$0xff]
  %v33 = vlaneseq
  %v34 = vshrl.u32 %v33, 7
  %v35 = vsub.s32 0, %v34
  %v36 = vrot.slane %v24, %v35
  %vm37 = vcmask 195584
  %v39 = vsel %vm37, %v25, 0
  %v42 = vsel %vm37, %v26, 0
  %v45 = vsel %vm37, %v27, 0
  %v48 = vsel %vm37, %v28, 0
  %v51 = vsel %vm37, %v29, 0
  %v54 = vsel %vm37, %v30, 0
  %v57 = vsel %vm37, %v31, 0
  %v60 = vsel %vm37, %v32, 0
  %62 = vmatprep.subr.mxu0 0.0
  %63 = vmatpush1.msra.mxu0 0.0
  %64 = vmatprep.subr.mxu0 0.0
  %65 = vmatpush1.msra.mxu0 0.0
  %66 = vmatprep.subr.mxu0 0.0
  %67 = vmatpush1.msra.mxu0 0.0
  %68 = vmatprep.subr.mxu0 0.0
  %69 = vmatpush1.msra.mxu0 0.0
  %70 = vmatprep.subr.mxu0 0.0
  %71 = vmatpush1.msra.mxu0 0.0
  %72 = vmatprep.subr.mxu0 0.0
  %73 = vmatpush1.msra.mxu0 0.0
  %74 = vmatprep.subr.mxu0 0.0
  %75 = vmatpush1.msra.mxu0 0.0
  %76 = vmatprep.subr.mxu0 0.0
  %77 = vmatpush1.msra.mxu0 0.0
  %78 = vmatprep.subr.mxu0 0.0
  %79 = vmatpush1.msra.mxu0 0.0
  %80 = vmatprep.subr.mxu0 0.0
  %81 = vmatpush1.msra.mxu0 0.0
  %82 = vmatprep.subr.mxu0 0.0
  %83 = vmatpush1.msra.mxu0 0.0
  %84 = vmatprep.subr.mxu0 0.0
  %85 = vmatpush1.msra.mxu0 0.0
  %86 = vmatprep.subr.mxu0 0.0
  %87 = vmatpush1.msra.mxu0 0.0
  %88 = vmatprep.subr.mxu0 0.0
  %89 = vmatpush1.msra.mxu0 %v19
  %90 = vmatprep.subr.mxu0 0.0
  %91 = vmatpush1.msra.mxu0 %v18
  %92 = vmatprep.subr.mxu0 0.0
  %93 = vmatpush1.msra.mxu0 %v17
  %94 = vmatprep.subr.mxu0 0.0
  %95 = vmatpush2.msra.mxu0 0.0
  %96 = vmatprep.subr.mxu0 0.0
  %97 = vmatpush2.msra.mxu0 0.0
  %98 = vmatprep.subr.mxu0 0.0
  %99 = vmatpush2.msra.mxu0 0.0
  %100 = vmatprep.subr.mxu0 0.0
  %101 = vmatpush2.msra.mxu0 0.0
  %102 = vmatprep.subr.mxu0 0.0
  %103 = vmatpush2.msra.mxu0 0.0
  %104 = vmatprep.subr.mxu0 0.0
  %105 = vmatpush2.msra.mxu0 0.0
  %106 = vmatprep.subr.mxu0 0.0
  %107 = vmatpush2.msra.mxu0 0.0
  %108 = vmatprep.subr.mxu0 0.0
  %109 = vmatpush2.msra.mxu0 0.0
  %110 = vmatprep.subr.mxu0 0.0
  %111 = vmatpush2.msra.mxu0 0.0
  %112 = vmatprep.subr.mxu0 0.0
  %113 = vmatpush2.msra.mxu0 0.0
  %114 = vmatprep.subr.mxu0 0.0
  %115 = vmatpush2.msra.mxu0 0.0
  %116 = vmatprep.subr.mxu0 0.0
  %117 = vmatpush2.msra.mxu0 0.0
  %118 = vmatprep.subr.mxu0 0.0
  %119 = vmatpush2.msra.mxu0 0.0
  %120 = vmatprep.subr.mxu0 0.0
  %121 = vmatpush2.msra.mxu0 0.0
  %122 = vmatprep.subr.mxu0 0.0
  %123 = vmatpush2.msra.mxu0 0.0
  %124 = vmatprep.subr.mxu0 0.0
  %125 = vmatpush2.msra.mxu0 0.0
  %126 = vmatprep.mubr.f32.mxu0 0.0
  %127 = vmatmul.mubr.f32.gmra.mxu0 %v39
  %v128 = vpop.f32.mrf.mxu0
  %v129 = vadd.f32 %v36, %v128
  %v130 = vpop.f32.mrf.mxu0
  %131 = vmatprep.mubr.f32.mxu0 0.0
  %132 = vmatmul.mubr.f32.gmra.mxu0 %v42
  %v133 = vpop.f32.mrf.mxu0
  %v134 = vadd.f32 %v36, %v133
  %v135 = vpop.f32.mrf.mxu0
  %136 = vmatprep.mubr.f32.mxu0 0.0
  %137 = vmatmul.mubr.f32.gmra.mxu0 %v45
  %v138 = vpop.f32.mrf.mxu0
  %v139 = vadd.f32 %v36, %v138
  %v140 = vpop.f32.mrf.mxu0
  %141 = vmatprep.mubr.f32.mxu0 0.0
  %142 = vmatmul.mubr.f32.gmra.mxu0 %v48
  %v143 = vpop.f32.mrf.mxu0
  %v144 = vadd.f32 %v36, %v143
  %v145 = vpop.f32.mrf.mxu0
  %146 = vmatprep.mubr.f32.mxu0 0.0
  %147 = vmatmul.mubr.f32.gmra.mxu0 %v51
  %v148 = vpop.f32.mrf.mxu0
  %v149 = vadd.f32 %v36, %v148
  %v150 = vpop.f32.mrf.mxu0
  %151 = vmatprep.mubr.f32.mxu0 0.0
  %152 = vmatmul.mubr.f32.gmra.mxu0 %v54
  %v153 = vpop.f32.mrf.mxu0
  %v154 = vadd.f32 %v36, %v153
  %v155 = vpop.f32.mrf.mxu0
  %156 = vmatprep.mubr.f32.mxu0 0.0
  %157 = vmatmul.mubr.f32.gmra.mxu0 %v57
  %v158 = vpop.f32.mrf.mxu0
  %v159 = vadd.f32 %v36, %v158
  %v160 = vpop.f32.mrf.mxu0
  %161 = vmatprep.mubr.f32.mxu0 0.0
  %162 = vmatmul.mubr.f32.gmra.mxu0 %v60
  %v163 = vpop.f32.mrf.mxu0
  %v164 = vadd.f32 %v36, %v163
  %v165 = vpop.f32.mrf.mxu0
  %166 = vdwg.mxu0
  %vm167 = vcmask 261120
  %v169 = vsel %vm167, 0.0, 0
  %171 = vmatprep.subr.mxu0 0.0
  %172 = vmatpush1.msra.mxu0 0.0
  %173 = vmatprep.subr.mxu0 0.0
  %174 = vmatpush1.msra.mxu0 0.0
  %175 = vmatprep.subr.mxu0 0.0
  %176 = vmatpush1.msra.mxu0 0.0
  %177 = vmatprep.subr.mxu0 0.0
  %178 = vmatpush1.msra.mxu0 0.0
  %179 = vmatprep.subr.mxu0 0.0
  %180 = vmatpush1.msra.mxu0 0.0
  %181 = vmatprep.subr.mxu0 0.0
  %182 = vmatpush1.msra.mxu0 0.0
  %183 = vmatprep.subr.mxu0 0.0
  %184 = vmatpush1.msra.mxu0 0.0
  %185 = vmatprep.subr.mxu0 0.0
  %186 = vmatpush1.msra.mxu0 0.0
  %187 = vmatprep.subr.mxu0 0.0
  %188 = vmatpush1.msra.mxu0 0.0
  %189 = vmatprep.subr.mxu0 0.0
  %190 = vmatpush1.msra.mxu0 0.0
  %191 = vmatprep.subr.mxu0 0.0
  %192 = vmatpush1.msra.mxu0 0.0
  %193 = vmatprep.subr.mxu0 0.0
  %194 = vmatpush1.msra.mxu0 0.0
  %195 = vmatprep.subr.mxu0 0.0
  %196 = vmatpush1.msra.mxu0 %v23
  %197 = vmatprep.subr.mxu0 0.0
  %198 = vmatpush1.msra.mxu0 %v22
  %199 = vmatprep.subr.mxu0 0.0
  %200 = vmatpush1.msra.mxu0 %v21
  %201 = vmatprep.subr.mxu0 0.0
  %202 = vmatpush1.msra.mxu0 %v20
  %203 = vmatprep.subr.mxu0 0.0
  %204 = vmatpush2.msra.mxu0 0.0
  %205 = vmatprep.subr.mxu0 0.0
  %206 = vmatpush2.msra.mxu0 0.0
  %207 = vmatprep.subr.mxu0 0.0
  %208 = vmatpush2.msra.mxu0 0.0
  %209 = vmatprep.subr.mxu0 0.0
  %210 = vmatpush2.msra.mxu0 0.0
  %211 = vmatprep.subr.mxu0 0.0
  %212 = vmatpush2.msra.mxu0 0.0
  %213 = vmatprep.subr.mxu0 0.0
  %214 = vmatpush2.msra.mxu0 0.0
  %215 = vmatprep.subr.mxu0 0.0
  %216 = vmatpush2.msra.mxu0 0.0
  %217 = vmatprep.subr.mxu0 0.0
  %218 = vmatpush2.msra.mxu0 0.0
  %219 = vmatprep.subr.mxu0 0.0
  %220 = vmatpush2.msra.mxu0 0.0
  %221 = vmatprep.subr.mxu0 0.0
  %222 = vmatpush2.msra.mxu0 0.0
  %223 = vmatprep.subr.mxu0 0.0
  %224 = vmatpush2.msra.mxu0 0.0
  %225 = vmatprep.subr.mxu0 0.0
  %226 = vmatpush2.msra.mxu0 0.0
  %227 = vmatprep.subr.mxu0 0.0
  %228 = vmatpush2.msra.mxu0 0.0
  %229 = vmatprep.subr.mxu0 0.0
  %230 = vmatpush2.msra.mxu0 0.0
  %231 = vmatprep.subr.mxu0 0.0
  %232 = vmatpush2.msra.mxu0 0.0
  %233 = vmatprep.subr.mxu0 0.0
  %234 = vmatpush2.msra.mxu0 0.0
  %235 = vmatprep.mubr.f32.mxu0 0.0
  %236 = vmatmul.mubr.f32.gmra.mxu0 %v169
  %v237 = vpop.f32.mrf.mxu0
  %v238 = vadd.f32 0.0, %v237
  %v239 = vpop.f32.mrf.mxu0
  %240 = vdwg.mxu0
  %v241 = vadd.f32 %v129, %v238
  %v242 = vxor.u32 %v241, 2147483648
  %v243 = vmul.f32 %v242, 1.442695
  %v244 = vpow.pop %v243
  %v245 = vadd.f32 %v244, 1.0
  %v246 = vrcp.pop %v245
  %v247 = vmul.f32 1.0, %v246
  %v248 = vtanh.pop %v241
  %v249 = vmul.f32 %v247, 0.0
  %251 = vrot.lane.b32.xlu0 %v248, 32
  %v252 = vpop.permute.xlu0 %251
  %v254 = vmul.f32 %v247, %v252
  %256 = vrot.lane.b32.xlu0 %v254, 32
  %v257 = vpop.permute.xlu0 %256
  %v259 = vadd.f32 %v249, %v257
  %v260 = vtanh.pop %v259
  %262 = vrot.lane.b32.xlu0 %v260, 32
  %v263 = vpop.permute.xlu0 %262
  %v265 = vmul.f32 %v247, %v263
  %267 = vrot.lane.b32.xlu0 %v265, 64
  %v268 = vpop.permute.xlu0 %267
  %270 = vst.msk [vmem:[#allocation2] sm:$0xff] %vm167, %v268
  %271 = vrot.lane.b32.xlu0 %v265, 96
  %v272 = vpop.permute.xlu0 %271
  %vm274 = vcmask 523520
  %275 = vst.msk [vmem:[#allocation2 + $0x38] sm:$0xff] %vm274, %v272
  %v276 = vsel %vm167, %v268, 0
  %278 = vmatprep.subr.mxu0 0.0
  %279 = vmatpush1.msra.mxu0 0.0
  %280 = vmatprep.subr.mxu0 0.0
  %281 = vmatpush1.msra.mxu0 0.0
  %282 = vmatprep.subr.mxu0 0.0
  %283 = vmatpush1.msra.mxu0 0.0
  %284 = vmatprep.subr.mxu0 0.0
  %285 = vmatpush1.msra.mxu0 0.0
  %286 = vmatprep.subr.mxu0 0.0
  %287 = vmatpush1.msra.mxu0 0.0
  %288 = vmatprep.subr.mxu0 0.0
  %289 = vmatpush1.msra.mxu0 0.0
  %290 = vmatprep.subr.mxu0 0.0
  %291 = vmatpush1.msra.mxu0 0.0
  %292 = vmatprep.subr.mxu0 0.0
  %293 = vmatpush1.msra.mxu0 0.0
  %294 = vmatprep.subr.mxu0 0.0
  %295 = vmatpush1.msra.mxu0 0.0
  %296 = vmatprep.subr.mxu0 0.0
  %297 = vmatpush1.msra.mxu0 0.0
  %298 = vmatprep.subr.mxu0 0.0
  %299 = vmatpush1.msra.mxu0 0.0
  %300 = vmatprep.subr.mxu0 0.0
  %301 = vmatpush1.msra.mxu0 0.0
  %302 = vmatprep.subr.mxu0 0.0
  %303 = vmatpush1.msra.mxu0 %v23
  %304 = vmatprep.subr.mxu0 0.0
  %305 = vmatpush1.msra.mxu0 %v22
  %306 = vmatprep.subr.mxu0 0.0
  %307 = vmatpush1.msra.mxu0 %v21
  %308 = vmatprep.subr.mxu0 0.0
  %309 = vmatpush1.msra.mxu0 %v20
  %310 = vmatprep.subr.mxu0 0.0
  %311 = vmatpush2.msra.mxu0 0.0
  %312 = vmatprep.subr.mxu0 0.0
  %313 = vmatpush2.msra.mxu0 0.0
  %314 = vmatprep.subr.mxu0 0.0
  %315 = vmatpush2.msra.mxu0 0.0
  %316 = vmatprep.subr.mxu0 0.0
  %317 = vmatpush2.msra.mxu0 0.0
  %318 = vmatprep.subr.mxu0 0.0
  %319 = vmatpush2.msra.mxu0 0.0
  %320 = vmatprep.subr.mxu0 0.0
  %321 = vmatpush2.msra.mxu0 0.0
  %322 = vmatprep.subr.mxu0 0.0
  %323 = vmatpush2.msra.mxu0 0.0
  %324 = vmatprep.subr.mxu0 0.0
  %325 = vmatpush2.msra.mxu0 0.0
  %326 = vmatprep.subr.mxu0 0.0
  %327 = vmatpush2.msra.mxu0 0.0
  %328 = vmatprep.subr.mxu0 0.0
  %329 = vmatpush2.msra.mxu0 0.0
  %330 = vmatprep.subr.mxu0 0.0
  %331 = vmatpush2.msra.mxu0 0.0
  %332 = vmatprep.subr.mxu0 0.0
  %333 = vmatpush2.msra.mxu0 0.0
  %334 = vmatprep.subr.mxu0 0.0
  %335 = vmatpush2.msra.mxu0 0.0
  %336 = vmatprep.subr.mxu0 0.0
  %337 = vmatpush2.msra.mxu0 0.0
  %338 = vmatprep.subr.mxu0 0.0
  %339 = vmatpush2.msra.mxu0 0.0
  %340 = vmatprep.subr.mxu0 0.0
  %341 = vmatpush2.msra.mxu0 0.0
  %342 = vmatprep.mubr.f32.mxu0 0.0
  %343 = vmatmul.mubr.f32.gmra.mxu0 %v276
  %v344 = vpop.f32.mrf.mxu0
  %v345 = vadd.f32 0.0, %v344
  %v346 = vpop.f32.mrf.mxu0
  %347 = vdwg.mxu0
  %v348 = vadd.f32 %v134, %v345
  %v349 = vxor.u32 %v348, 2147483648
  %v350 = vmul.f32 %v349, 1.442695
  %v351 = vpow.pop %v350
  %v352 = vadd.f32 %v351, 1.0
  %v353 = vrcp.pop %v352
  %v354 = vmul.f32 1.0, %v353
  %v355 = vtanh.pop %v348
  %v356 = vmul.f32 %v354, %v259
  %358 = vrot.lane.b32.xlu0 %v355, 32
  %v359 = vpop.permute.xlu0 %358
  %v361 = vmul.f32 %v354, %v359
  %363 = vrot.lane.b32.xlu0 %v361, 32
  %v364 = vpop.permute.xlu0 %363
  %v366 = vadd.f32 %v356, %v364
  %v367 = vtanh.pop %v366
  %369 = vrot.lane.b32.xlu0 %v367, 32
  %v370 = vpop.permute.xlu0 %369
  %v372 = vmul.f32 %v354, %v370
  %374 = vrot.lane.b32.xlu0 %v372, 64
  %v375 = vpop.permute.xlu0 %374
  %377 = vst.msk [vmem:[#allocation2 + $0x8] sm:$0xff] %vm167, %v375
  %378 = vrot.lane.b32.xlu0 %v372, 96
  %v379 = vpop.permute.xlu0 %378
  %381 = vst.msk [vmem:[#allocation2 + $0x30] sm:$0xff] %vm274, %v379
  %v382 = vsel %vm167, %v375, 0
  %384 = vmatprep.subr.mxu0 0.0
  %385 = vmatpush1.msra.mxu0 0.0
  %386 = vmatprep.subr.mxu0 0.0
  %387 = vmatpush1.msra.mxu0 0.0
  %388 = vmatprep.subr.mxu0 0.0
  %389 = vmatpush1.msra.mxu0 0.0
  %390 = vmatprep.subr.mxu0 0.0
  %391 = vmatpush1.msra.mxu0 0.0
  %392 = vmatprep.subr.mxu0 0.0
  %393 = vmatpush1.msra.mxu0 0.0
  %394 = vmatprep.subr.mxu0 0.0
  %395 = vmatpush1.msra.mxu0 0.0
  %396 = vmatprep.subr.mxu0 0.0
  %397 = vmatpush1.msra.mxu0 0.0
  %398 = vmatprep.subr.mxu0 0.0
  %399 = vmatpush1.msra.mxu0 0.0
  %400 = vmatprep.subr.mxu0 0.0
  %401 = vmatpush1.msra.mxu0 0.0
  %402 = vmatprep.subr.mxu0 0.0
  %403 = vmatpush1.msra.mxu0 0.0
  %404 = vmatprep.subr.mxu0 0.0
  %405 = vmatpush1.msra.mxu0 0.0
  %406 = vmatprep.subr.mxu0 0.0
  %407 = vmatpush1.msra.mxu0 0.0
  %408 = vmatprep.subr.mxu0 0.0
  %409 = vmatpush1.msra.mxu0 %v23
  %410 = vmatprep.subr.mxu0 0.0
  %411 = vmatpush1.msra.mxu0 %v22
  %412 = vmatprep.subr.mxu0 0.0
  %413 = vmatpush1.msra.mxu0 %v21
  %414 = vmatprep.subr.mxu0 0.0
  %415 = vmatpush1.msra.mxu0 %v20
  %416 = vmatprep.subr.mxu0 0.0
  %417 = vmatpush2.msra.mxu0 0.0
  %418 = vmatprep.subr.mxu0 0.0
  %419 = vmatpush2.msra.mxu0 0.0
  %420 = vmatprep.subr.mxu0 0.0
  %421 = vmatpush2.msra.mxu0 0.0
  %422 = vmatprep.subr.mxu0 0.0
  %423 = vmatpush2.msra.mxu0 0.0
  %424 = vmatprep.subr.mxu0 0.0
  %425 = vmatpush2.msra.mxu0 0.0
  %426 = vmatprep.subr.mxu0 0.0
  %427 = vmatpush2.msra.mxu0 0.0
  %428 = vmatprep.subr.mxu0 0.0
  %429 = vmatpush2.msra.mxu0 0.0
  %430 = vmatprep.subr.mxu0 0.0
  %431 = vmatpush2.msra.mxu0 0.0
  %432 = vmatprep.subr.mxu0 0.0
  %433 = vmatpush2.msra.mxu0 0.0
  %434 = vmatprep.subr.mxu0 0.0
  %435 = vmatpush2.msra.mxu0 0.0
  %436 = vmatprep.subr.mxu0 0.0
  %437 = vmatpush2.msra.mxu0 0.0
  %438 = vmatprep.subr.mxu0 0.0
  %439 = vmatpush2.msra.mxu0 0.0
  %440 = vmatprep.subr.mxu0 0.0
  %441 = vmatpush2.msra.mxu0 0.0
  %442 = vmatprep.subr.mxu0 0.0
  %443 = vmatpush2.msra.mxu0 0.0
  %444 = vmatprep.subr.mxu0 0.0
  %445 = vmatpush2.msra.mxu0 0.0
  %446 = vmatprep.subr.mxu0 0.0
  %447 = vmatpush2.msra.mxu0 0.0
  %448 = vmatprep.mubr.f32.mxu0 0.0
  %449 = vmatmul.mubr.f32.gmra.mxu0 %v382
  %v450 = vpop.f32.mrf.mxu0
  %v451 = vadd.f32 0.0, %v450
  %v452 = vpop.f32.mrf.mxu0
  %453 = vdwg.mxu0
  %v454 = vadd.f32 %v139, %v451
  %v455 = vxor.u32 %v454, 2147483648
  %v456 = vmul.f32 %v455, 1.442695
  %v457 = vpow.pop %v456
  %v458 = vadd.f32 %v457, 1.0
  %v459 = vrcp.pop %v458
  %v460 = vmul.f32 1.0, %v459
  %v461 = vtanh.pop %v454
  %v462 = vmul.f32 %v460, %v366
  %464 = vrot.lane.b32.xlu0 %v461, 32
  %v465 = vpop.permute.xlu0 %464
  %v467 = vmul.f32 %v460, %v465
  %469 = vrot.lane.b32.xlu0 %v467, 32
  %v470 = vpop.permute.xlu0 %469
  %v472 = vadd.f32 %v462, %v470
  %v473 = vtanh.pop %v472
  %475 = vrot.lane.b32.xlu0 %v473, 32
  %v476 = vpop.permute.xlu0 %475
  %v478 = vmul.f32 %v460, %v476
  %480 = vrot.lane.b32.xlu0 %v478, 64
  %v481 = vpop.permute.xlu0 %480
  %483 = vst.msk [vmem:[#allocation2 + $0x10] sm:$0xff] %vm167, %v481
  %484 = vrot.lane.b32.xlu0 %v478, 96
  %v485 = vpop.permute.xlu0 %484
  %487 = vst.msk [vmem:[#allocation2 + $0x28] sm:$0xff] %vm274, %v485
  %v488 = vsel %vm167, %v481, 0
  %490 = vmatprep.subr.mxu0 0.0
  %491 = vmatpush1.msra.mxu0 0.0
  %492 = vmatprep.subr.mxu0 0.0
  %493 = vmatpush1.msra.mxu0 0.0
  %494 = vmatprep.subr.mxu0 0.0
  %495 = vmatpush1.msra.mxu0 0.0
  %496 = vmatprep.subr.mxu0 0.0
  %497 = vmatpush1.msra.mxu0 0.0
  %498 = vmatprep.subr.mxu0 0.0
  %499 = vmatpush1.msra.mxu0 0.0
  %500 = vmatprep.subr.mxu0 0.0
  %501 = vmatpush1.msra.mxu0 0.0
  %502 = vmatprep.subr.mxu0 0.0
  %503 = vmatpush1.msra.mxu0 0.0
  %504 = vmatprep.subr.mxu0 0.0
  %505 = vmatpush1.msra.mxu0 0.0
  %506 = vmatprep.subr.mxu0 0.0
  %507 = vmatpush1.msra.mxu0 0.0
  %508 = vmatprep.subr.mxu0 0.0
  %509 = vmatpush1.msra.mxu0 0.0
  %510 = vmatprep.subr.mxu0 0.0
  %511 = vmatpush1.msra.mxu0 0.0
  %512 = vmatprep.subr.mxu0 0.0
  %513 = vmatpush1.msra.mxu0 0.0
  %514 = vmatprep.subr.mxu0 0.0
  %515 = vmatpush1.msra.mxu0 %v23
  %516 = vmatprep.subr.mxu0 0.0
  %517 = vmatpush1.msra.mxu0 %v22
  %518 = vmatprep.subr.mxu0 0.0
  %519 = vmatpush1.msra.mxu0 %v21
  %520 = vmatprep.subr.mxu0 0.0
  %521 = vmatpush1.msra.mxu0 %v20
  %522 = vmatprep.subr.mxu0 0.0
  %523 = vmatpush2.msra.mxu0 0.0
  %524 = vmatprep.subr.mxu0 0.0
  %525 = vmatpush2.msra.mxu0 0.0
  %526 = vmatprep.subr.mxu0 0.0
  %527 = vmatpush2.msra.mxu0 0.0
  %528 = vmatprep.subr.mxu0 0.0
  %529 = vmatpush2.msra.mxu0 0.0
  %530 = vmatprep.subr.mxu0 0.0
  %531 = vmatpush2.msra.mxu0 0.0
  %532 = vmatprep.subr.mxu0 0.0
  %533 = vmatpush2.msra.mxu0 0.0
  %534 = vmatprep.subr.mxu0 0.0
  %535 = vmatpush2.msra.mxu0 0.0
  %536 = vmatprep.subr.mxu0 0.0
  %537 = vmatpush2.msra.mxu0 0.0
  %538 = vmatprep.subr.mxu0 0.0
  %539 = vmatpush2.msra.mxu0 0.0
  %540 = vmatprep.subr.mxu0 0.0
  %541 = vmatpush2.msra.mxu0 0.0
  %542 = vmatprep.subr.mxu0 0.0
  %543 = vmatpush2.msra.mxu0 0.0
  %544 = vmatprep.subr.mxu0 0.0
  %545 = vmatpush2.msra.mxu0 0.0
  %546 = vmatprep.subr.mxu0 0.0
  %547 = vmatpush2.msra.mxu0 0.0
  %548 = vmatprep.subr.mxu0 0.0
  %549 = vmatpush2.msra.mxu0 0.0
  %550 = vmatprep.subr.mxu0 0.0
  %551 = vmatpush2.msra.mxu0 0.0
  %552 = vmatprep.subr.mxu0 0.0
  %553 = vmatpush2.msra.mxu0 0.0
  %554 = vmatprep.mubr.f32.mxu0 0.0
  %555 = vmatmul.mubr.f32.gmra.mxu0 %v488
  %v556 = vpop.f32.mrf.mxu0
  %v557 = vadd.f32 0.0, %v556
  %v558 = vpop.f32.mrf.mxu0
  %559 = vdwg.mxu0
  %v560 = vadd.f32 %v144, %v557
  %v561 = vxor.u32 %v560, 2147483648
  %v562 = vmul.f32 %v561, 1.442695
  %v563 = vpow.pop %v562
  %v564 = vadd.f32 %v563, 1.0
  %v565 = vrcp.pop %v564
  %v566 = vmul.f32 1.0, %v565
  %v567 = vtanh.pop %v560
  %v568 = vmul.f32 %v566, %v472
  %570 = vrot.lane.b32.xlu0 %v567, 32
  %v571 = vpop.permute.xlu0 %570
  %v573 = vmul.f32 %v566, %v571
  %575 = vrot.lane.b32.xlu0 %v573, 32
  %v576 = vpop.permute.xlu0 %575
  %v578 = vadd.f32 %v568, %v576
  %v579 = vtanh.pop %v578
  %581 = vrot.lane.b32.xlu0 %v579, 32
  %v582 = vpop.permute.xlu0 %581
  %v584 = vmul.f32 %v566, %v582
  %586 = vrot.lane.b32.xlu0 %v584, 64
  %v587 = vpop.permute.xlu0 %586
  %589 = vst.msk [vmem:[#allocation2 + $0x18] sm:$0xff] %vm167, %v587
  %590 = vrot.lane.b32.xlu0 %v584, 96
  %v591 = vpop.permute.xlu0 %590
  %593 = vst.msk [vmem:[#allocation2 + $0x20] sm:$0xff] %vm274, %v591
  %v594 = vsel %vm167, %v587, 0
  %596 = vmatprep.subr.mxu0 0.0
  %597 = vmatpush1.msra.mxu0 0.0
  %598 = vmatprep.subr.mxu0 0.0
  %599 = vmatpush1.msra.mxu0 0.0
  %600 = vmatprep.subr.mxu0 0.0
  %601 = vmatpush1.msra.mxu0 0.0
  %602 = vmatprep.subr.mxu0 0.0
  %603 = vmatpush1.msra.mxu0 0.0
  %604 = vmatprep.subr.mxu0 0.0
  %605 = vmatpush1.msra.mxu0 0.0
  %606 = vmatprep.subr.mxu0 0.0
  %607 = vmatpush1.msra.mxu0 0.0
  %608 = vmatprep.subr.mxu0 0.0
  %609 = vmatpush1.msra.mxu0 0.0
  %610 = vmatprep.subr.mxu0 0.0
  %611 = vmatpush1.msra.mxu0 0.0
  %612 = vmatprep.subr.mxu0 0.0
  %613 = vmatpush1.msra.mxu0 0.0
  %614 = vmatprep.subr.mxu0 0.0
  %615 = vmatpush1.msra.mxu0 0.0
  %616 = vmatprep.subr.mxu0 0.0
  %617 = vmatpush1.msra.mxu0 0.0
  %618 = vmatprep.subr.mxu0 0.0
  %619 = vmatpush1.msra.mxu0 0.0
  %620 = vmatprep.subr.mxu0 0.0
  %621 = vmatpush1.msra.mxu0 %v23
  %622 = vmatprep.subr.mxu0 0.0
  %623 = vmatpush1.msra.mxu0 %v22
  %624 = vmatprep.subr.mxu0 0.0
  %625 = vmatpush1.msra.mxu0 %v21
  %626 = vmatprep.subr.mxu0 0.0
  %627 = vmatpush1.msra.mxu0 %v20
  %628 = vmatprep.subr.mxu0 0.0
  %629 = vmatpush2.msra.mxu0 0.0
  %630 = vmatprep.subr.mxu0 0.0
  %631 = vmatpush2.msra.mxu0 0.0
  %632 = vmatprep.subr.mxu0 0.0
  %633 = vmatpush2.msra.mxu0 0.0
  %634 = vmatprep.subr.mxu0 0.0
  %635 = vmatpush2.msra.mxu0 0.0
  %636 = vmatprep.subr.mxu0 0.0
  %637 = vmatpush2.msra.mxu0 0.0
  %638 = vmatprep.subr.mxu0 0.0
  %639 = vmatpush2.msra.mxu0 0.0
  %640 = vmatprep.subr.mxu0 0.0
  %641 = vmatpush2.msra.mxu0 0.0
  %642 = vmatprep.subr.mxu0 0.0
  %643 = vmatpush2.msra.mxu0 0.0
  %644 = vmatprep.subr.mxu0 0.0
  %645 = vmatpush2.msra.mxu0 0.0
  %646 = vmatprep.subr.mxu0 0.0
  %647 = vmatpush2.msra.mxu0 0.0
  %648 = vmatprep.subr.mxu0 0.0
  %649 = vmatpush2.msra.mxu0 0.0
  %650 = vmatprep.subr.mxu0 0.0
  %651 = vmatpush2.msra.mxu0 0.0
  %652 = vmatprep.subr.mxu0 0.0
  %653 = vmatpush2.msra.mxu0 0.0
  %654 = vmatprep.subr.mxu0 0.0
  %655 = vmatpush2.msra.mxu0 0.0
  %656 = vmatprep.subr.mxu0 0.0
  %657 = vmatpush2.msra.mxu0 0.0
  %658 = vmatprep.subr.mxu0 0.0
  %659 = vmatpush2.msra.mxu0 0.0
  %660 = vmatprep.mubr.f32.mxu0 0.0
  %661 = vmatmul.mubr.f32.gmra.mxu0 %v594
  %v662 = vpop.f32.mrf.mxu0
  %v663 = vadd.f32 0.0, %v662
  %v664 = vpop.f32.mrf.mxu0
  %665 = vdwg.mxu0
  %v666 = vadd.f32 %v149, %v663
  %v667 = vxor.u32 %v666, 2147483648
  %v668 = vmul.f32 %v667, 1.442695
  %v669 = vpow.pop %v668
  %v670 = vadd.f32 %v669, 1.0
  %v671 = vrcp.pop %v670
  %v672 = vmul.f32 1.0, %v671
  %v673 = vtanh.pop %v666
  %v674 = vmul.f32 %v672, %v578
  %676 = vrot.lane.b32.xlu0 %v673, 32
  %v677 = vpop.permute.xlu0 %676
  %v679 = vmul.f32 %v672, %v677
  %681 = vrot.lane.b32.xlu0 %v679, 32
  %v682 = vpop.permute.xlu0 %681
  %v684 = vadd.f32 %v674, %v682
  %v685 = vtanh.pop %v684
  %687 = vrot.lane.b32.xlu0 %v685, 32
  %v688 = vpop.permute.xlu0 %687
  %v690 = vmul.f32 %v672, %v688
  %692 = vrot.lane.b32.xlu0 %v690, 64
  %v693 = vpop.permute.xlu0 %692
  %695 = vst.msk [vmem:[#allocation2 + $0x20] sm:$0xff] %vm167, %v693
  %696 = vrot.lane.b32.xlu0 %v690, 96
  %v697 = vpop.permute.xlu0 %696
  %699 = vst.msk [vmem:[#allocation2 + $0x18] sm:$0xff] %vm274, %v697
  %v700 = vsel %vm167, %v693, 0
  %702 = vmatprep.subr.mxu0 0.0
  %703 = vmatpush1.msra.mxu0 0.0
  %704 = vmatprep.subr.mxu0 0.0
  %705 = vmatpush1.msra.mxu0 0.0
  %706 = vmatprep.subr.mxu0 0.0
  %707 = vmatpush1.msra.mxu0 0.0
  %708 = vmatprep.subr.mxu0 0.0
  %709 = vmatpush1.msra.mxu0 0.0
  %710 = vmatprep.subr.mxu0 0.0
  %711 = vmatpush1.msra.mxu0 0.0
  %712 = vmatprep.subr.mxu0 0.0
  %713 = vmatpush1.msra.mxu0 0.0
  %714 = vmatprep.subr.mxu0 0.0
  %715 = vmatpush1.msra.mxu0 0.0
  %716 = vmatprep.subr.mxu0 0.0
  %717 = vmatpush1.msra.mxu0 0.0
  %718 = vmatprep.subr.mxu0 0.0
  %719 = vmatpush1.msra.mxu0 0.0
  %720 = vmatprep.subr.mxu0 0.0
  %721 = vmatpush1.msra.mxu0 0.0
  %722 = vmatprep.subr.mxu0 0.0
  %723 = vmatpush1.msra.mxu0 0.0
  %724 = vmatprep.subr.mxu0 0.0
  %725 = vmatpush1.msra.mxu0 0.0
  %726 = vmatprep.subr.mxu0 0.0
  %727 = vmatpush1.msra.mxu0 %v23
  %728 = vmatprep.subr.mxu0 0.0
  %729 = vmatpush1.msra.mxu0 %v22
  %730 = vmatprep.subr.mxu0 0.0
  %731 = vmatpush1.msra.mxu0 %v21
  %732 = vmatprep.subr.mxu0 0.0
  %733 = vmatpush1.msra.mxu0 %v20
  %734 = vmatprep.subr.mxu0 0.0
  %735 = vmatpush2.msra.mxu0 0.0
  %736 = vmatprep.subr.mxu0 0.0
  %737 = vmatpush2.msra.mxu0 0.0
  %738 = vmatprep.subr.mxu0 0.0
  %739 = vmatpush2.msra.mxu0 0.0
  %740 = vmatprep.subr.mxu0 0.0
  %741 = vmatpush2.msra.mxu0 0.0
  %742 = vmatprep.subr.mxu0 0.0
  %743 = vmatpush2.msra.mxu0 0.0
  %744 = vmatprep.subr.mxu0 0.0
  %745 = vmatpush2.msra.mxu0 0.0
  %746 = vmatprep.subr.mxu0 0.0
  %747 = vmatpush2.msra.mxu0 0.0
  %748 = vmatprep.subr.mxu0 0.0
  %749 = vmatpush2.msra.mxu0 0.0
  %750 = vmatprep.subr.mxu0 0.0
  %751 = vmatpush2.msra.mxu0 0.0
  %752 = vmatprep.subr.mxu0 0.0
  %753 = vmatpush2.msra.mxu0 0.0
  %754 = vmatprep.subr.mxu0 0.0
  %755 = vmatpush2.msra.mxu0 0.0
  %756 = vmatprep.subr.mxu0 0.0
  %757 = vmatpush2.msra.mxu0 0.0
  %758 = vmatprep.subr.mxu0 0.0
  %759 = vmatpush2.msra.mxu0 0.0
  %760 = vmatprep.subr.mxu0 0.0
  %761 = vmatpush2.msra.mxu0 0.0
  %762 = vmatprep.subr.mxu0 0.0
  %763 = vmatpush2.msra.mxu0 0.0
  %764 = vmatprep.subr.mxu0 0.0
  %765 = vmatpush2.msra.mxu0 0.0
  %766 = vmatprep.mubr.f32.mxu0 0.0
  %767 = vmatmul.mubr.f32.gmra.mxu0 %v700
  %v768 = vpop.f32.mrf.mxu0
  %v769 = vadd.f32 0.0, %v768
  %v770 = vpop.f32.mrf.mxu0
  %771 = vdwg.mxu0
  %v772 = vadd.f32 %v154, %v769
  %v773 = vxor.u32 %v772, 2147483648
  %v774 = vmul.f32 %v773, 1.442695
  %v775 = vpow.pop %v774
  %v776 = vadd.f32 %v775, 1.0
  %v777 = vrcp.pop %v776
  %v778 = vmul.f32 1.0, %v777
  %v779 = vtanh.pop %v772
  %v780 = vmul.f32 %v778, %v684
  %782 = vrot.lane.b32.xlu0 %v779, 32
  %v783 = vpop.permute.xlu0 %782
  %v785 = vmul.f32 %v778, %v783
  %787 = vrot.lane.b32.xlu0 %v785, 32
  %v788 = vpop.permute.xlu0 %787
  %v790 = vadd.f32 %v780, %v788
  %v791 = vtanh.pop %v790
  %793 = vrot.lane.b32.xlu0 %v791, 32
  %v794 = vpop.permute.xlu0 %793
  %v796 = vmul.f32 %v778, %v794
  %798 = vrot.lane.b32.xlu0 %v796, 64
  %v799 = vpop.permute.xlu0 %798
  %801 = vst.msk [vmem:[#allocation2 + $0x28] sm:$0xff] %vm167, %v799
  %802 = vrot.lane.b32.xlu0 %v796, 96
  %v803 = vpop.permute.xlu0 %802
  %805 = vst.msk [vmem:[#allocation2 + $0x10] sm:$0xff] %vm274, %v803
  %v806 = vsel %vm167, %v799, 0
  %808 = vmatprep.subr.mxu0 0.0
  %809 = vmatpush1.msra.mxu0 0.0
  %810 = vmatprep.subr.mxu0 0.0
  %811 = vmatpush1.msra.mxu0 0.0
  %812 = vmatprep.subr.mxu0 0.0
  %813 = vmatpush1.msra.mxu0 0.0
  %814 = vmatprep.subr.mxu0 0.0
  %815 = vmatpush1.msra.mxu0 0.0
  %816 = vmatprep.subr.mxu0 0.0
  %817 = vmatpush1.msra.mxu0 0.0
  %818 = vmatprep.subr.mxu0 0.0
  %819 = vmatpush1.msra.mxu0 0.0
  %820 = vmatprep.subr.mxu0 0.0
  %821 = vmatpush1.msra.mxu0 0.0
  %822 = vmatprep.subr.mxu0 0.0
  %823 = vmatpush1.msra.mxu0 0.0
  %824 = vmatprep.subr.mxu0 0.0
  %825 = vmatpush1.msra.mxu0 0.0
  %826 = vmatprep.subr.mxu0 0.0
  %827 = vmatpush1.msra.mxu0 0.0
  %828 = vmatprep.subr.mxu0 0.0
  %829 = vmatpush1.msra.mxu0 0.0
  %830 = vmatprep.subr.mxu0 0.0
  %831 = vmatpush1.msra.mxu0 0.0
  %832 = vmatprep.subr.mxu0 0.0
  %833 = vmatpush1.msra.mxu0 %v23
  %834 = vmatprep.subr.mxu0 0.0
  %835 = vmatpush1.msra.mxu0 %v22
  %836 = vmatprep.subr.mxu0 0.0
  %837 = vmatpush1.msra.mxu0 %v21
  %838 = vmatprep.subr.mxu0 0.0
  %839 = vmatpush1.msra.mxu0 %v20
  %840 = vmatprep.subr.mxu0 0.0
  %841 = vmatpush2.msra.mxu0 0.0
  %842 = vmatprep.subr.mxu0 0.0
  %843 = vmatpush2.msra.mxu0 0.0
  %844 = vmatprep.subr.mxu0 0.0
  %845 = vmatpush2.msra.mxu0 0.0
  %846 = vmatprep.subr.mxu0 0.0
  %847 = vmatpush2.msra.mxu0 0.0
  %848 = vmatprep.subr.mxu0 0.0
  %849 = vmatpush2.msra.mxu0 0.0
  %850 = vmatprep.subr.mxu0 0.0
  %851 = vmatpush2.msra.mxu0 0.0
  %852 = vmatprep.subr.mxu0 0.0
  %853 = vmatpush2.msra.mxu0 0.0
  %854 = vmatprep.subr.mxu0 0.0
  %855 = vmatpush2.msra.mxu0 0.0
  %856 = vmatprep.subr.mxu0 0.0
  %857 = vmatpush2.msra.mxu0 0.0
  %858 = vmatprep.subr.mxu0 0.0
  %859 = vmatpush2.msra.mxu0 0.0
  %860 = vmatprep.subr.mxu0 0.0
  %861 = vmatpush2.msra.mxu0 0.0
  %862 = vmatprep.subr.mxu0 0.0
  %863 = vmatpush2.msra.mxu0 0.0
  %864 = vmatprep.subr.mxu0 0.0
  %865 = vmatpush2.msra.mxu0 0.0
  %866 = vmatprep.subr.mxu0 0.0
  %867 = vmatpush2.msra.mxu0 0.0
  %868 = vmatprep.subr.mxu0 0.0
  %869 = vmatpush2.msra.mxu0 0.0
  %870 = vmatprep.subr.mxu0 0.0
  %871 = vmatpush2.msra.mxu0 0.0
  %872 = vmatprep.mubr.f32.mxu0 0.0
  %873 = vmatmul.mubr.f32.gmra.mxu0 %v806
  %v874 = vpop.f32.mrf.mxu0
  %v875 = vadd.f32 0.0, %v874
  %v876 = vpop.f32.mrf.mxu0
  %877 = vdwg.mxu0
  %v878 = vadd.f32 %v159, %v875
  %v879 = vxor.u32 %v878, 2147483648
  %v880 = vmul.f32 %v879, 1.442695
  %v881 = vpow.pop %v880
  %v882 = vadd.f32 %v881, 1.0
  %v883 = vrcp.pop %v882
  %v884 = vmul.f32 1.0, %v883
  %v885 = vtanh.pop %v878
  %v886 = vmul.f32 %v884, %v790
  %888 = vrot.lane.b32.xlu0 %v885, 32
  %v889 = vpop.permute.xlu0 %888
  %v891 = vmul.f32 %v884, %v889
  %893 = vrot.lane.b32.xlu0 %v891, 32
  %v894 = vpop.permute.xlu0 %893
  %v896 = vadd.f32 %v886, %v894
  %v897 = vtanh.pop %v896
  %899 = vrot.lane.b32.xlu0 %v897, 32
  %v900 = vpop.permute.xlu0 %899
  %v902 = vmul.f32 %v884, %v900
  %904 = vrot.lane.b32.xlu0 %v902, 64
  %v905 = vpop.permute.xlu0 %904
  %907 = vst.msk [vmem:[#allocation2 + $0x30] sm:$0xff] %vm167, %v905
  %908 = vrot.lane.b32.xlu0 %v902, 96
  %v909 = vpop.permute.xlu0 %908
  %911 = vst.msk [vmem:[#allocation2 + $0x8] sm:$0xff] %vm274, %v909
  %v912 = vsel %vm167, %v905, 0
  %914 = vmatprep.subr.mxu0 0.0
  %915 = vmatpush1.msra.mxu0 0.0
  %916 = vmatprep.subr.mxu0 0.0
  %917 = vmatpush1.msra.mxu0 0.0
  %918 = vmatprep.subr.mxu0 0.0
  %919 = vmatpush1.msra.mxu0 0.0
  %920 = vmatprep.subr.mxu0 0.0
  %921 = vmatpush1.msra.mxu0 0.0
  %922 = vmatprep.subr.mxu0 0.0
  %923 = vmatpush1.msra.mxu0 0.0
  %924 = vmatprep.subr.mxu0 0.0
  %925 = vmatpush1.msra.mxu0 0.0
  %926 = vmatprep.subr.mxu0 0.0
  %927 = vmatpush1.msra.mxu0 0.0
  %928 = vmatprep.subr.mxu0 0.0
  %929 = vmatpush1.msra.mxu0 0.0
  %930 = vmatprep.subr.mxu0 0.0
  %931 = vmatpush1.msra.mxu0 0.0
  %932 = vmatprep.subr.mxu0 0.0
  %933 = vmatpush1.msra.mxu0 0.0
  %934 = vmatprep.subr.mxu0 0.0
  %935 = vmatpush1.msra.mxu0 0.0
  %936 = vmatprep.subr.mxu0 0.0
  %937 = vmatpush1.msra.mxu0 0.0
  %938 = vmatprep.subr.mxu0 0.0
  %939 = vmatpush1.msra.mxu0 %v23
  %940 = vmatprep.subr.mxu0 0.0
  %941 = vmatpush1.msra.mxu0 %v22
  %942 = vmatprep.subr.mxu0 0.0
  %943 = vmatpush1.msra.mxu0 %v21
  %944 = vmatprep.subr.mxu0 0.0
  %945 = vmatpush1.msra.mxu0 %v20
  %946 = vmatprep.subr.mxu0 0.0
  %947 = vmatpush2.msra.mxu0 0.0
  %948 = vmatprep.subr.mxu0 0.0
  %949 = vmatpush2.msra.mxu0 0.0
  %950 = vmatprep.subr.mxu0 0.0
  %951 = vmatpush2.msra.mxu0 0.0
  %952 = vmatprep.subr.mxu0 0.0
  %953 = vmatpush2.msra.mxu0 0.0
  %954 = vmatprep.subr.mxu0 0.0
  %955 = vmatpush2.msra.mxu0 0.0
  %956 = vmatprep.subr.mxu0 0.0
  %957 = vmatpush2.msra.mxu0 0.0
  %958 = vmatprep.subr.mxu0 0.0
  %959 = vmatpush2.msra.mxu0 0.0
  %960 = vmatprep.subr.mxu0 0.0
  %961 = vmatpush2.msra.mxu0 0.0
  %962 = vmatprep.subr.mxu0 0.0
  %963 = vmatpush2.msra.mxu0 0.0
  %964 = vmatprep.subr.mxu0 0.0
  %965 = vmatpush2.msra.mxu0 0.0
  %966 = vmatprep.subr.mxu0 0.0
  %967 = vmatpush2.msra.mxu0 0.0
  %968 = vmatprep.subr.mxu0 0.0
  %969 = vmatpush2.msra.mxu0 0.0
  %970 = vmatprep.subr.mxu0 0.0
  %971 = vmatpush2.msra.mxu0 0.0
  %972 = vmatprep.subr.mxu0 0.0
  %973 = vmatpush2.msra.mxu0 0.0
  %974 = vmatprep.subr.mxu0 0.0
  %975 = vmatpush2.msra.mxu0 0.0
  %976 = vmatprep.subr.mxu0 0.0
  %977 = vmatpush2.msra.mxu0 0.0
  %978 = vmatprep.mubr.f32.mxu0 0.0
  %979 = vmatmul.mubr.f32.gmra.mxu0 %v912
  %v980 = vpop.f32.mrf.mxu0
  %v981 = vadd.f32 0.0, %v980
  %v982 = vpop.f32.mrf.mxu0
  %983 = vdwg.mxu0
  %v984 = vadd.f32 %v164, %v981
  %v985 = vxor.u32 %v984, 2147483648
  %v986 = vmul.f32 %v985, 1.442695
  %v987 = vpow.pop %v986
  %v988 = vadd.f32 %v987, 1.0
  %v989 = vrcp.pop %v988
  %v990 = vmul.f32 1.0, %v989
  %v991 = vtanh.pop %v984
  %v992 = vmul.f32 %v990, %v896
  %994 = vrot.lane.b32.xlu0 %v991, 32
  %v995 = vpop.permute.xlu0 %994
  %v997 = vmul.f32 %v990, %v995
  %999 = vrot.lane.b32.xlu0 %v997, 32
  %v1000 = vpop.permute.xlu0 %999
  %v1002 = vadd.f32 %v992, %v1000
  %v1003 = vtanh.pop %v1002
  %1005 = vrot.lane.b32.xlu0 %v1003, 32
  %v1006 = vpop.permute.xlu0 %1005
  %v1008 = vmul.f32 %v990, %v1006
  %1010 = vrot.lane.b32.xlu0 %v1008, 64
  %v1011 = vpop.permute.xlu0 %1010
  %1013 = vst.msk [vmem:[#allocation2 + $0x38] sm:$0xff] %vm167, %v1011
  %1014 = vrot.lane.b32.xlu0 %v1008, 96
  %v1015 = vpop.permute.xlu0 %1014
  %1017 = vst.msk [vmem:[#allocation2] sm:$0xff] %vm274, %v1015
  %v1018 = vld [vmem:[%s2] sm:$0xff]
  %v1019 = vld [vmem:[%s2 + $0x8] sm:$0xff]
  %v1020 = vld [vmem:[%s2 + $0x10] sm:$0xff]
  %v1021 = vld [vmem:[%s2 + $0x18] sm:$0xff]
  %v1022 = vld [vmem:[%s2 + $0x20] sm:$0xff]
  %v1023 = vld [vmem:[%s2 + $0x28] sm:$0xff]
  %v1024 = vld [vmem:[%s2 + $0x30] sm:$0xff]
  %v1025 = vld [vmem:[%s2 + $0x38] sm:$0xff]
  %v1026 = vld [vmem:[%s2 + $0x40] sm:$0xff]
  %v1027 = vld [vmem:[%s2 + $0x48] sm:$0xff]
  %v1028 = vld [vmem:[%s2 + $0x50] sm:$0xff]
  %v1029 = vld [vmem:[%s2 + $0x58] sm:$0xff]
  %v1030 = vld [vmem:[%s2 + $0x60] sm:$0x1]
  %v1031 = vld [vmem:[#allocation2] sm:$0xff]
  %v1032 = vld [vmem:[#allocation2 + $0x8] sm:$0xff]
  %v1033 = vld [vmem:[#allocation2 + $0x10] sm:$0xff]
  %v1034 = vld [vmem:[#allocation2 + $0x18] sm:$0xff]
  %v1035 = vld [vmem:[#allocation2 + $0x20] sm:$0xff]
  %v1036 = vld [vmem:[#allocation2 + $0x28] sm:$0xff]
  %v1037 = vld [vmem:[#allocation2 + $0x30] sm:$0xff]
  %v1038 = vld [vmem:[#allocation2 + $0x38] sm:$0xff]
  %v1039 = vlaneseq
  %v1040 = vshrl.u32 %v1039, 7
  %v1041 = vsub.s32 0, %v1040
  %v1042 = vrot.slane %v1030, %v1041
  %vm1043 = vcmask 523264
  %v1045 = vsel %vm1043, %v1031, 0
  %v1048 = vsel %vm1043, %v1032, 0
  %v1051 = vsel %vm1043, %v1033, 0
  %v1054 = vsel %vm1043, %v1034, 0
  %v1057 = vsel %vm1043, %v1035, 0
  %v1060 = vsel %vm1043, %v1036, 0
  %v1063 = vsel %vm1043, %v1037, 0
  %v1066 = vsel %vm1043, %v1038, 0
  %1068 = vmatprep.subr.mxu0 0.0
  %1069 = vmatpush1.msra.mxu0 0.0
  %1070 = vmatprep.subr.mxu0 0.0
  %1071 = vmatpush1.msra.mxu0 0.0
  %1072 = vmatprep.subr.mxu0 0.0
  %1073 = vmatpush1.msra.mxu0 0.0
  %1074 = vmatprep.subr.mxu0 0.0
  %1075 = vmatpush1.msra.mxu0 0.0
  %1076 = vmatprep.subr.mxu0 0.0
  %1077 = vmatpush1.msra.mxu0 0.0
  %1078 = vmatprep.subr.mxu0 0.0
  %1079 = vmatpush1.msra.mxu0 0.0
  %1080 = vmatprep.subr.mxu0 0.0
  %1081 = vmatpush1.msra.mxu0 0.0
  %1082 = vmatprep.subr.mxu0 0.0
  %1083 = vmatpush1.msra.mxu0 0.0
  %1084 = vmatprep.subr.mxu0 0.0
  %1085 = vmatpush1.msra.mxu0 %v1025
  %1086 = vmatprep.subr.mxu0 0.0
  %1087 = vmatpush1.msra.mxu0 %v1024
  %1088 = vmatprep.subr.mxu0 0.0
  %1089 = vmatpush1.msra.mxu0 %v1023
  %1090 = vmatprep.subr.mxu0 0.0
  %1091 = vmatpush1.msra.mxu0 %v1022
  %1092 = vmatprep.subr.mxu0 0.0
  %1093 = vmatpush1.msra.mxu0 %v1021
  %1094 = vmatprep.subr.mxu0 0.0
  %1095 = vmatpush1.msra.mxu0 %v1020
  %1096 = vmatprep.subr.mxu0 0.0
  %1097 = vmatpush1.msra.mxu0 %v1019
  %1098 = vmatprep.subr.mxu0 0.0
  %1099 = vmatpush1.msra.mxu0 %v1018
  %1100 = vmatprep.subr.mxu0 0.0
  %1101 = vmatpush2.msra.mxu0 0.0
  %1102 = vmatprep.subr.mxu0 0.0
  %1103 = vmatpush2.msra.mxu0 0.0
  %1104 = vmatprep.subr.mxu0 0.0
  %1105 = vmatpush2.msra.mxu0 0.0
  %1106 = vmatprep.subr.mxu0 0.0
  %1107 = vmatpush2.msra.mxu0 0.0
  %1108 = vmatprep.subr.mxu0 0.0
  %1109 = vmatpush2.msra.mxu0 0.0
  %1110 = vmatprep.subr.mxu0 0.0
  %1111 = vmatpush2.msra.mxu0 0.0
  %1112 = vmatprep.subr.mxu0 0.0
  %1113 = vmatpush2.msra.mxu0 0.0
  %1114 = vmatprep.subr.mxu0 0.0
  %1115 = vmatpush2.msra.mxu0 0.0
  %1116 = vmatprep.subr.mxu0 0.0
  %1117 = vmatpush2.msra.mxu0 0.0
  %1118 = vmatprep.subr.mxu0 0.0
  %1119 = vmatpush2.msra.mxu0 0.0
  %1120 = vmatprep.subr.mxu0 0.0
  %1121 = vmatpush2.msra.mxu0 0.0
  %1122 = vmatprep.subr.mxu0 0.0
  %1123 = vmatpush2.msra.mxu0 0.0
  %1124 = vmatprep.subr.mxu0 0.0
  %1125 = vmatpush2.msra.mxu0 0.0
  %1126 = vmatprep.subr.mxu0 0.0
  %1127 = vmatpush2.msra.mxu0 0.0
  %1128 = vmatprep.subr.mxu0 0.0
  %1129 = vmatpush2.msra.mxu0 0.0
  %1130 = vmatprep.subr.mxu0 0.0
  %1131 = vmatpush2.msra.mxu0 0.0
  %1132 = vmatprep.mubr.f32.mxu0 0.0
  %1133 = vmatmul.mubr.f32.gmra.mxu0 %v1045
  %v1134 = vpop.f32.mrf.mxu0
  %v1135 = vadd.f32 %v1042, %v1134
  %v1136 = vpop.f32.mrf.mxu0
  %1137 = vmatprep.mubr.f32.mxu0 0.0
  %1138 = vmatmul.mubr.f32.gmra.mxu0 %v1048
  %v1139 = vpop.f32.mrf.mxu0
  %v1140 = vadd.f32 %v1042, %v1139
  %v1141 = vpop.f32.mrf.mxu0
  %1142 = vmatprep.mubr.f32.mxu0 0.0
  %1143 = vmatmul.mubr.f32.gmra.mxu0 %v1051
  %v1144 = vpop.f32.mrf.mxu0
  %v1145 = vadd.f32 %v1042, %v1144
  %v1146 = vpop.f32.mrf.mxu0
  %1147 = vmatprep.mubr.f32.mxu0 0.0
  %1148 = vmatmul.mubr.f32.gmra.mxu0 %v1054
  %v1149 = vpop.f32.mrf.mxu0
  %v1150 = vadd.f32 %v1042, %v1149
  %v1151 = vpop.f32.mrf.mxu0
  %1152 = vmatprep.mubr.f32.mxu0 0.0
  %1153 = vmatmul.mubr.f32.gmra.mxu0 %v1057
  %v1154 = vpop.f32.mrf.mxu0
  %v1155 = vadd.f32 %v1042, %v1154
  %v1156 = vpop.f32.mrf.mxu0
  %1157 = vmatprep.mubr.f32.mxu0 0.0
  %1158 = vmatmul.mubr.f32.gmra.mxu0 %v1060
  %v1159 = vpop.f32.mrf.mxu0
  %v1160 = vadd.f32 %v1042, %v1159
  %v1161 = vpop.f32.mrf.mxu0
  %1162 = vmatprep.mubr.f32.mxu0 0.0
  %1163 = vmatmul.mubr.f32.gmra.mxu0 %v1063
  %v1164 = vpop.f32.mrf.mxu0
  %v1165 = vadd.f32 %v1042, %v1164
  %v1166 = vpop.f32.mrf.mxu0
  %1167 = vmatprep.mubr.f32.mxu0 0.0
  %1168 = vmatmul.mubr.f32.gmra.mxu0 %v1066
  %v1169 = vpop.f32.mrf.mxu0
  %v1170 = vadd.f32 %v1042, %v1169
  %v1171 = vpop.f32.mrf.mxu0
  %1172 = vdwg.mxu0
  %1173 = vmatprep.subr.mxu0 0.0
  %1174 = vmatpush1.msra.mxu0 0.0
  %1175 = vmatprep.subr.mxu0 0.0
  %1176 = vmatpush1.msra.mxu0 0.0
  %1177 = vmatprep.subr.mxu0 0.0
  %1178 = vmatpush1.msra.mxu0 0.0
  %1179 = vmatprep.subr.mxu0 0.0
  %1180 = vmatpush1.msra.mxu0 0.0
  %1181 = vmatprep.subr.mxu0 0.0
  %1182 = vmatpush1.msra.mxu0 0.0
  %1183 = vmatprep.subr.mxu0 0.0
  %1184 = vmatpush1.msra.mxu0 0.0
  %1185 = vmatprep.subr.mxu0 0.0
  %1186 = vmatpush1.msra.mxu0 0.0
  %1187 = vmatprep.subr.mxu0 0.0
  %1188 = vmatpush1.msra.mxu0 0.0
  %1189 = vmatprep.subr.mxu0 0.0
  %1190 = vmatpush1.msra.mxu0 0.0
  %1191 = vmatprep.subr.mxu0 0.0
  %1192 = vmatpush1.msra.mxu0 0.0
  %1193 = vmatprep.subr.mxu0 0.0
  %1194 = vmatpush1.msra.mxu0 0.0
  %1195 = vmatprep.subr.mxu0 0.0
  %1196 = vmatpush1.msra.mxu0 0.0
  %1197 = vmatprep.subr.mxu0 0.0
  %1198 = vmatpush1.msra.mxu0 %v1029
  %1199 = vmatprep.subr.mxu0 0.0
  %1200 = vmatpush1.msra.mxu0 %v1028
  %1201 = vmatprep.subr.mxu0 0.0
  %1202 = vmatpush1.msra.mxu0 %v1027
  %1203 = vmatprep.subr.mxu0 0.0
  %1204 = vmatpush1.msra.mxu0 %v1026
  %1205 = vmatprep.subr.mxu0 0.0
  %1206 = vmatpush2.msra.mxu0 0.0
  %1207 = vmatprep.subr.mxu0 0.0
  %1208 = vmatpush2.msra.mxu0 0.0
  %1209 = vmatprep.subr.mxu0 0.0
  %1210 = vmatpush2.msra.mxu0 0.0
  %1211 = vmatprep.subr.mxu0 0.0
  %1212 = vmatpush2.msra.mxu0 0.0
  %1213 = vmatprep.subr.mxu0 0.0
  %1214 = vmatpush2.msra.mxu0 0.0
  %1215 = vmatprep.subr.mxu0 0.0
  %1216 = vmatpush2.msra.mxu0 0.0
  %1217 = vmatprep.subr.mxu0 0.0
  %1218 = vmatpush2.msra.mxu0 0.0
  %1219 = vmatprep.subr.mxu0 0.0
  %1220 = vmatpush2.msra.mxu0 0.0
  %1221 = vmatprep.subr.mxu0 0.0
  %1222 = vmatpush2.msra.mxu0 0.0
  %1223 = vmatprep.subr.mxu0 0.0
  %1224 = vmatpush2.msra.mxu0 0.0
  %1225 = vmatprep.subr.mxu0 0.0
  %1226 = vmatpush2.msra.mxu0 0.0
  %1227 = vmatprep.subr.mxu0 0.0
  %1228 = vmatpush2.msra.mxu0 0.0
  %1229 = vmatprep.subr.mxu0 0.0
  %1230 = vmatpush2.msra.mxu0 0.0
  %1231 = vmatprep.subr.mxu0 0.0
  %1232 = vmatpush2.msra.mxu0 0.0
  %1233 = vmatprep.subr.mxu0 0.0
  %1234 = vmatpush2.msra.mxu0 0.0
  %1235 = vmatprep.subr.mxu0 0.0
  %1236 = vmatpush2.msra.mxu0 0.0
  %1237 = vmatprep.mubr.f32.mxu0 0.0
  %1238 = vmatmul.mubr.f32.gmra.mxu0 %v169
  %v1239 = vpop.f32.mrf.mxu0
  %v1240 = vadd.f32 0.0, %v1239
  %v1241 = vpop.f32.mrf.mxu0
  %1242 = vdwg.mxu0
  %v1243 = vadd.f32 %v1135, %v1240
  %v1244 = vxor.u32 %v1243, 2147483648
  %v1245 = vmul.f32 %v1244, 1.442695
  %v1246 = vpow.pop %v1245
  %v1247 = vadd.f32 %v1246, 1.0
  %v1248 = vrcp.pop %v1247
  %v1249 = vmul.f32 1.0, %v1248
  %v1250 = vtanh.pop %v1243
  %v1251 = vmul.f32 %v1249, 0.0
  %1253 = vrot.lane.b32.xlu0 %v1250, 32
  %v1254 = vpop.permute.xlu0 %1253
  %v1256 = vmul.f32 %v1249, %v1254
  %1258 = vrot.lane.b32.xlu0 %v1256, 32
  %v1259 = vpop.permute.xlu0 %1258
  %v1261 = vadd.f32 %v1251, %v1259
  %v1262 = vtanh.pop %v1261
  %1264 = vrot.lane.b32.xlu0 %v1262, 32
  %v1265 = vpop.permute.xlu0 %1264
  %v1267 = vmul.f32 %v1249, %v1265
  %1269 = vrot.lane.b32.xlu0 %v1267, 64
  %v1270 = vpop.permute.xlu0 %1269
  %1272 = vst.msk [vmem:[#allocation2] sm:$0xff] %vm167, %v1270
  %1273 = vrot.lane.b32.xlu0 %v1267, 96
  %v1274 = vpop.permute.xlu0 %1273
  %1276 = vst.msk [vmem:[#allocation2 + $0x38] sm:$0xff] %vm274, %v1274
  %v1277 = vsel %vm167, %v1270, 0
  %1279 = vmatprep.subr.mxu0 0.0
  %1280 = vmatpush1.msra.mxu0 0.0
  %1281 = vmatprep.subr.mxu0 0.0
  %1282 = vmatpush1.msra.mxu0 0.0
  %1283 = vmatprep.subr.mxu0 0.0
  %1284 = vmatpush1.msra.mxu0 0.0
  %1285 = vmatprep.subr.mxu0 0.0
  %1286 = vmatpush1.msra.mxu0 0.0
  %1287 = vmatprep.subr.mxu0 0.0
  %1288 = vmatpush1.msra.mxu0 0.0
  %1289 = vmatprep.subr.mxu0 0.0
  %1290 = vmatpush1.msra.mxu0 0.0
  %1291 = vmatprep.subr.mxu0 0.0
  %1292 = vmatpush1.msra.mxu0 0.0
  %1293 = vmatprep.subr.mxu0 0.0
  %1294 = vmatpush1.msra.mxu0 0.0
  %1295 = vmatprep.subr.mxu0 0.0
  %1296 = vmatpush1.msra.mxu0 0.0
  %1297 = vmatprep.subr.mxu0 0.0
  %1298 = vmatpush1.msra.mxu0 0.0
  %1299 = vmatprep.subr.mxu0 0.0
  %1300 = vmatpush1.msra.mxu0 0.0
  %1301 = vmatprep.subr.mxu0 0.0
  %1302 = vmatpush1.msra.mxu0 0.0
  %1303 = vmatprep.subr.mxu0 0.0
  %1304 = vmatpush1.msra.mxu0 %v1029
  %1305 = vmatprep.subr.mxu0 0.0
  %1306 = vmatpush1.msra.mxu0 %v1028
  %1307 = vmatprep.subr.mxu0 0.0
  %1308 = vmatpush1.msra.mxu0 %v1027
  %1309 = vmatprep.subr.mxu0 0.0
  %1310 = vmatpush1.msra.mxu0 %v1026
  %1311 = vmatprep.subr.mxu0 0.0
  %1312 = vmatpush2.msra.mxu0 0.0
  %1313 = vmatprep.subr.mxu0 0.0
  %1314 = vmatpush2.msra.mxu0 0.0
  %1315 = vmatprep.subr.mxu0 0.0
  %1316 = vmatpush2.msra.mxu0 0.0
  %1317 = vmatprep.subr.mxu0 0.0
  %1318 = vmatpush2.msra.mxu0 0.0
  %1319 = vmatprep.subr.mxu0 0.0
  %1320 = vmatpush2.msra.mxu0 0.0
  %1321 = vmatprep.subr.mxu0 0.0
  %1322 = vmatpush2.msra.mxu0 0.0
  %1323 = vmatprep.subr.mxu0 0.0
  %1324 = vmatpush2.msra.mxu0 0.0
  %1325 = vmatprep.subr.mxu0 0.0
  %1326 = vmatpush2.msra.mxu0 0.0
  %1327 = vmatprep.subr.mxu0 0.0
  %1328 = vmatpush2.msra.mxu0 0.0
  %1329 = vmatprep.subr.mxu0 0.0
  %1330 = vmatpush2.msra.mxu0 0.0
  %1331 = vmatprep.subr.mxu0 0.0
  %1332 = vmatpush2.msra.mxu0 0.0
  %1333 = vmatprep.subr.mxu0 0.0
  %1334 = vmatpush2.msra.mxu0 0.0
  %1335 = vmatprep.subr.mxu0 0.0
  %1336 = vmatpush2.msra.mxu0 0.0
  %1337 = vmatprep.subr.mxu0 0.0
  %1338 = vmatpush2.msra.mxu0 0.0
  %1339 = vmatprep.subr.mxu0 0.0
  %1340 = vmatpush2.msra.mxu0 0.0
  %1341 = vmatprep.subr.mxu0 0.0
  %1342 = vmatpush2.msra.mxu0 0.0
  %1343 = vmatprep.mubr.f32.mxu0 0.0
  %1344 = vmatmul.mubr.f32.gmra.mxu0 %v1277
  %v1345 = vpop.f32.mrf.mxu0
  %v1346 = vadd.f32 0.0, %v1345
  %v1347 = vpop.f32.mrf.mxu0
  %1348 = vdwg.mxu0
  %v1349 = vadd.f32 %v1140, %v1346
  %v1350 = vxor.u32 %v1349, 2147483648
  %v1351 = vmul.f32 %v1350, 1.442695
  %v1352 = vpow.pop %v1351
  %v1353 = vadd.f32 %v1352, 1.0
  %v1354 = vrcp.pop %v1353
  %v1355 = vmul.f32 1.0, %v1354
  %v1356 = vtanh.pop %v1349
  %v1357 = vmul.f32 %v1355, %v1261
  %1359 = vrot.lane.b32.xlu0 %v1356, 32
  %v1360 = vpop.permute.xlu0 %1359
  %v1362 = vmul.f32 %v1355, %v1360
  %1364 = vrot.lane.b32.xlu0 %v1362, 32
  %v1365 = vpop.permute.xlu0 %1364
  %v1367 = vadd.f32 %v1357, %v1365
  %v1368 = vtanh.pop %v1367
  %1370 = vrot.lane.b32.xlu0 %v1368, 32
  %v1371 = vpop.permute.xlu0 %1370
  %v1373 = vmul.f32 %v1355, %v1371
  %1375 = vrot.lane.b32.xlu0 %v1373, 64
  %v1376 = vpop.permute.xlu0 %1375
  %1378 = vst.msk [vmem:[#allocation2 + $0x8] sm:$0xff] %vm167, %v1376
  %1379 = vrot.lane.b32.xlu0 %v1373, 96
  %v1380 = vpop.permute.xlu0 %1379
  %1382 = vst.msk [vmem:[#allocation2 + $0x30] sm:$0xff] %vm274, %v1380
  %v1383 = vsel %vm167, %v1376, 0
  %1385 = vmatprep.subr.mxu0 0.0
  %1386 = vmatpush1.msra.mxu0 0.0
  %1387 = vmatprep.subr.mxu0 0.0
  %1388 = vmatpush1.msra.mxu0 0.0
  %1389 = vmatprep.subr.mxu0 0.0
  %1390 = vmatpush1.msra.mxu0 0.0
  %1391 = vmatprep.subr.mxu0 0.0
  %1392 = vmatpush1.msra.mxu0 0.0
  %1393 = vmatprep.subr.mxu0 0.0
  %1394 = vmatpush1.msra.mxu0 0.0
  %1395 = vmatprep.subr.mxu0 0.0
  %1396 = vmatpush1.msra.mxu0 0.0
  %1397 = vmatprep.subr.mxu0 0.0
  %1398 = vmatpush1.msra.mxu0 0.0
  %1399 = vmatprep.subr.mxu0 0.0
  %1400 = vmatpush1.msra.mxu0 0.0
  %1401 = vmatprep.subr.mxu0 0.0
  %1402 = vmatpush1.msra.mxu0 0.0
  %1403 = vmatprep.subr.mxu0 0.0
  %1404 = vmatpush1.msra.mxu0 0.0
  %1405 = vmatprep.subr.mxu0 0.0
  %1406 = vmatpush1.msra.mxu0 0.0
  %1407 = vmatprep.subr.mxu0 0.0
  %1408 = vmatpush1.msra.mxu0 0.0
  %1409 = vmatprep.subr.mxu0 0.0
  %1410 = vmatpush1.msra.mxu0 %v1029
  %1411 = vmatprep.subr.mxu0 0.0
  %1412 = vmatpush1.msra.mxu0 %v1028
  %1413 = vmatprep.subr.mxu0 0.0
  %1414 = vmatpush1.msra.mxu0 %v1027
  %1415 = vmatprep.subr.mxu0 0.0
  %1416 = vmatpush1.msra.mxu0 %v1026
  %1417 = vmatprep.subr.mxu0 0.0
  %1418 = vmatpush2.msra.mxu0 0.0
  %1419 = vmatprep.subr.mxu0 0.0
  %1420 = vmatpush2.msra.mxu0 0.0
  %1421 = vmatprep.subr.mxu0 0.0
  %1422 = vmatpush2.msra.mxu0 0.0
  %1423 = vmatprep.subr.mxu0 0.0
  %1424 = vmatpush2.msra.mxu0 0.0
  %1425 = vmatprep.subr.mxu0 0.0
  %1426 = vmatpush2.msra.mxu0 0.0
  %1427 = vmatprep.subr.mxu0 0.0
  %1428 = vmatpush2.msra.mxu0 0.0
  %1429 = vmatprep.subr.mxu0 0.0
  %1430 = vmatpush2.msra.mxu0 0.0
  %1431 = vmatprep.subr.mxu0 0.0
  %1432 = vmatpush2.msra.mxu0 0.0
  %1433 = vmatprep.subr.mxu0 0.0
  %1434 = vmatpush2.msra.mxu0 0.0
  %1435 = vmatprep.subr.mxu0 0.0
  %1436 = vmatpush2.msra.mxu0 0.0
  %1437 = vmatprep.subr.mxu0 0.0
  %1438 = vmatpush2.msra.mxu0 0.0
  %1439 = vmatprep.subr.mxu0 0.0
  %1440 = vmatpush2.msra.mxu0 0.0
  %1441 = vmatprep.subr.mxu0 0.0
  %1442 = vmatpush2.msra.mxu0 0.0
  %1443 = vmatprep.subr.mxu0 0.0
  %1444 = vmatpush2.msra.mxu0 0.0
  %1445 = vmatprep.subr.mxu0 0.0
  %1446 = vmatpush2.msra.mxu0 0.0
  %1447 = vmatprep.subr.mxu0 0.0
  %1448 = vmatpush2.msra.mxu0 0.0
  %1449 = vmatprep.mubr.f32.mxu0 0.0
  %1450 = vmatmul.mubr.f32.gmra.mxu0 %v1383
  %v1451 = vpop.f32.mrf.mxu0
  %v1452 = vadd.f32 0.0, %v1451
  %v1453 = vpop.f32.mrf.mxu0
  %1454 = vdwg.mxu0
  %v1455 = vadd.f32 %v1145, %v1452
  %v1456 = vxor.u32 %v1455, 2147483648
  %v1457 = vmul.f32 %v1456, 1.442695
  %v1458 = vpow.pop %v1457
  %v1459 = vadd.f32 %v1458, 1.0
  %v1460 = vrcp.pop %v1459
  %v1461 = vmul.f32 1.0, %v1460
  %v1462 = vtanh.pop %v1455
  %v1463 = vmul.f32 %v1461, %v1367
  %1465 = vrot.lane.b32.xlu0 %v1462, 32
  %v1466 = vpop.permute.xlu0 %1465
  %v1468 = vmul.f32 %v1461, %v1466
  %1470 = vrot.lane.b32.xlu0 %v1468, 32
  %v1471 = vpop.permute.xlu0 %1470
  %v1473 = vadd.f32 %v1463, %v1471
  %v1474 = vtanh.pop %v1473
  %1476 = vrot.lane.b32.xlu0 %v1474, 32
  %v1477 = vpop.permute.xlu0 %1476
  %v1479 = vmul.f32 %v1461, %v1477
  %1481 = vrot.lane.b32.xlu0 %v1479, 64
  %v1482 = vpop.permute.xlu0 %1481
  %1484 = vst.msk [vmem:[#allocation2 + $0x10] sm:$0xff] %vm167, %v1482
  %1485 = vrot.lane.b32.xlu0 %v1479, 96
  %v1486 = vpop.permute.xlu0 %1485
  %1488 = vst.msk [vmem:[#allocation2 + $0x28] sm:$0xff] %vm274, %v1486
  %v1489 = vsel %vm167, %v1482, 0
  %1491 = vmatprep.subr.mxu0 0.0
  %1492 = vmatpush1.msra.mxu0 0.0
  %1493 = vmatprep.subr.mxu0 0.0
  %1494 = vmatpush1.msra.mxu0 0.0
  %1495 = vmatprep.subr.mxu0 0.0
  %1496 = vmatpush1.msra.mxu0 0.0
  %1497 = vmatprep.subr.mxu0 0.0
  %1498 = vmatpush1.msra.mxu0 0.0
  %1499 = vmatprep.subr.mxu0 0.0
  %1500 = vmatpush1.msra.mxu0 0.0
  %1501 = vmatprep.subr.mxu0 0.0
  %1502 = vmatpush1.msra.mxu0 0.0
  %1503 = vmatprep.subr.mxu0 0.0
  %1504 = vmatpush1.msra.mxu0 0.0
  %1505 = vmatprep.subr.mxu0 0.0
  %1506 = vmatpush1.msra.mxu0 0.0
  %1507 = vmatprep.subr.mxu0 0.0
  %1508 = vmatpush1.msra.mxu0 0.0
  %1509 = vmatprep.subr.mxu0 0.0
  %1510 = vmatpush1.msra.mxu0 0.0
  %1511 = vmatprep.subr.mxu0 0.0
  %1512 = vmatpush1.msra.mxu0 0.0
  %1513 = vmatprep.subr.mxu0 0.0
  %1514 = vmatpush1.msra.mxu0 0.0
  %1515 = vmatprep.subr.mxu0 0.0
  %1516 = vmatpush1.msra.mxu0 %v1029
  %1517 = vmatprep.subr.mxu0 0.0
  %1518 = vmatpush1.msra.mxu0 %v1028
  %1519 = vmatprep.subr.mxu0 0.0
  %1520 = vmatpush1.msra.mxu0 %v1027
  %1521 = vmatprep.subr.mxu0 0.0
  %1522 = vmatpush1.msra.mxu0 %v1026
  %1523 = vmatprep.subr.mxu0 0.0
  %1524 = vmatpush2.msra.mxu0 0.0
  %1525 = vmatprep.subr.mxu0 0.0
  %1526 = vmatpush2.msra.mxu0 0.0
  %1527 = vmatprep.subr.mxu0 0.0
  %1528 = vmatpush2.msra.mxu0 0.0
  %1529 = vmatprep.subr.mxu0 0.0
  %1530 = vmatpush2.msra.mxu0 0.0
  %1531 = vmatprep.subr.mxu0 0.0
  %1532 = vmatpush2.msra.mxu0 0.0
  %1533 = vmatprep.subr.mxu0 0.0
  %1534 = vmatpush2.msra.mxu0 0.0
  %1535 = vmatprep.subr.mxu0 0.0
  %1536 = vmatpush2.msra.mxu0 0.0
  %1537 = vmatprep.subr.mxu0 0.0
  %1538 = vmatpush2.msra.mxu0 0.0
  %1539 = vmatprep.subr.mxu0 0.0
  %1540 = vmatpush2.msra.mxu0 0.0
  %1541 = vmatprep.subr.mxu0 0.0
  %1542 = vmatpush2.msra.mxu0 0.0
  %1543 = vmatprep.subr.mxu0 0.0
  %1544 = vmatpush2.msra.mxu0 0.0
  %1545 = vmatprep.subr.mxu0 0.0
  %1546 = vmatpush2.msra.mxu0 0.0
  %1547 = vmatprep.subr.mxu0 0.0
  %1548 = vmatpush2.msra.mxu0 0.0
  %1549 = vmatprep.subr.mxu0 0.0
  %1550 = vmatpush2.msra.mxu0 0.0
  %1551 = vmatprep.subr.mxu0 0.0
  %1552 = vmatpush2.msra.mxu0 0.0
  %1553 = vmatprep.subr.mxu0 0.0
  %1554 = vmatpush2.msra.mxu0 0.0
  %1555 = vmatprep.mubr.f32.mxu0 0.0
  %1556 = vmatmul.mubr.f32.gmra.mxu0 %v1489
  %v1557 = vpop.f32.mrf.mxu0
  %v1558 = vadd.f32 0.0, %v1557
  %v1559 = vpop.f32.mrf.mxu0
  %1560 = vdwg.mxu0
  %v1561 = vadd.f32 %v1150, %v1558
  %v1562 = vxor.u32 %v1561, 2147483648
  %v1563 = vmul.f32 %v1562, 1.442695
  %v1564 = vpow.pop %v1563
  %v1565 = vadd.f32 %v1564, 1.0
  %v1566 = vrcp.pop %v1565
  %v1567 = vmul.f32 1.0, %v1566
  %v1568 = vtanh.pop %v1561
  %v1569 = vmul.f32 %v1567, %v1473
  %1571 = vrot.lane.b32.xlu0 %v1568, 32
  %v1572 = vpop.permute.xlu0 %1571
  %v1574 = vmul.f32 %v1567, %v1572
  %1576 = vrot.lane.b32.xlu0 %v1574, 32
  %v1577 = vpop.permute.xlu0 %1576
  %v1579 = vadd.f32 %v1569, %v1577
  %v1580 = vtanh.pop %v1579
  %1582 = vrot.lane.b32.xlu0 %v1580, 32
  %v1583 = vpop.permute.xlu0 %1582
  %v1585 = vmul.f32 %v1567, %v1583
  %1587 = vrot.lane.b32.xlu0 %v1585, 64
  %v1588 = vpop.permute.xlu0 %1587
  %1590 = vst.msk [vmem:[#allocation2 + $0x18] sm:$0xff] %vm167, %v1588
  %1591 = vrot.lane.b32.xlu0 %v1585, 96
  %v1592 = vpop.permute.xlu0 %1591
  %1594 = vst.msk [vmem:[#allocation2 + $0x20] sm:$0xff] %vm274, %v1592
  %v1595 = vsel %vm167, %v1588, 0
  %1597 = vmatprep.subr.mxu0 0.0
  %1598 = vmatpush1.msra.mxu0 0.0
  %1599 = vmatprep.subr.mxu0 0.0
  %1600 = vmatpush1.msra.mxu0 0.0
  %1601 = vmatprep.subr.mxu0 0.0
  %1602 = vmatpush1.msra.mxu0 0.0
  %1603 = vmatprep.subr.mxu0 0.0
  %1604 = vmatpush1.msra.mxu0 0.0
  %1605 = vmatprep.subr.mxu0 0.0
  %1606 = vmatpush1.msra.mxu0 0.0
  %1607 = vmatprep.subr.mxu0 0.0
  %1608 = vmatpush1.msra.mxu0 0.0
  %1609 = vmatprep.subr.mxu0 0.0
  %1610 = vmatpush1.msra.mxu0 0.0
  %1611 = vmatprep.subr.mxu0 0.0
  %1612 = vmatpush1.msra.mxu0 0.0
  %1613 = vmatprep.subr.mxu0 0.0
  %1614 = vmatpush1.msra.mxu0 0.0
  %1615 = vmatprep.subr.mxu0 0.0
  %1616 = vmatpush1.msra.mxu0 0.0
  %1617 = vmatprep.subr.mxu0 0.0
  %1618 = vmatpush1.msra.mxu0 0.0
  %1619 = vmatprep.subr.mxu0 0.0
  %1620 = vmatpush1.msra.mxu0 0.0
  %1621 = vmatprep.subr.mxu0 0.0
  %1622 = vmatpush1.msra.mxu0 %v1029
  %1623 = vmatprep.subr.mxu0 0.0
  %1624 = vmatpush1.msra.mxu0 %v1028
  %1625 = vmatprep.subr.mxu0 0.0
  %1626 = vmatpush1.msra.mxu0 %v1027
  %1627 = vmatprep.subr.mxu0 0.0
  %1628 = vmatpush1.msra.mxu0 %v1026
  %1629 = vmatprep.subr.mxu0 0.0
  %1630 = vmatpush2.msra.mxu0 0.0
  %1631 = vmatprep.subr.mxu0 0.0
  %1632 = vmatpush2.msra.mxu0 0.0
  %1633 = vmatprep.subr.mxu0 0.0
  %1634 = vmatpush2.msra.mxu0 0.0
  %1635 = vmatprep.subr.mxu0 0.0
  %1636 = vmatpush2.msra.mxu0 0.0
  %1637 = vmatprep.subr.mxu0 0.0
  %1638 = vmatpush2.msra.mxu0 0.0
  %1639 = vmatprep.subr.mxu0 0.0
  %1640 = vmatpush2.msra.mxu0 0.0
  %1641 = vmatprep.subr.mxu0 0.0
  %1642 = vmatpush2.msra.mxu0 0.0
  %1643 = vmatprep.subr.mxu0 0.0
  %1644 = vmatpush2.msra.mxu0 0.0
  %1645 = vmatprep.subr.mxu0 0.0
  %1646 = vmatpush2.msra.mxu0 0.0
  %1647 = vmatprep.subr.mxu0 0.0
  %1648 = vmatpush2.msra.mxu0 0.0
  %1649 = vmatprep.subr.mxu0 0.0
  %1650 = vmatpush2.msra.mxu0 0.0
  %1651 = vmatprep.subr.mxu0 0.0
  %1652 = vmatpush2.msra.mxu0 0.0
  %1653 = vmatprep.subr.mxu0 0.0
  %1654 = vmatpush2.msra.mxu0 0.0
  %1655 = vmatprep.subr.mxu0 0.0
  %1656 = vmatpush2.msra.mxu0 0.0
  %1657 = vmatprep.subr.mxu0 0.0
  %1658 = vmatpush2.msra.mxu0 0.0
  %1659 = vmatprep.subr.mxu0 0.0
  %1660 = vmatpush2.msra.mxu0 0.0
  %1661 = vmatprep.mubr.f32.mxu0 0.0
  %1662 = vmatmul.mubr.f32.gmra.mxu0 %v1595
  %v1663 = vpop.f32.mrf.mxu0
  %v1664 = vadd.f32 0.0, %v1663
  %v1665 = vpop.f32.mrf.mxu0
  %1666 = vdwg.mxu0
  %v1667 = vadd.f32 %v1155, %v1664
  %v1668 = vxor.u32 %v1667, 2147483648
  %v1669 = vmul.f32 %v1668, 1.442695
  %v1670 = vpow.pop %v1669
  %v1671 = vadd.f32 %v1670, 1.0
  %v1672 = vrcp.pop %v1671
  %v1673 = vmul.f32 1.0, %v1672
  %v1674 = vtanh.pop %v1667
  %v1675 = vmul.f32 %v1673, %v1579
  %1677 = vrot.lane.b32.xlu0 %v1674, 32
  %v1678 = vpop.permute.xlu0 %1677
  %v1680 = vmul.f32 %v1673, %v1678
  %1682 = vrot.lane.b32.xlu0 %v1680, 32
  %v1683 = vpop.permute.xlu0 %1682
  %v1685 = vadd.f32 %v1675, %v1683
  %v1686 = vtanh.pop %v1685
  %1688 = vrot.lane.b32.xlu0 %v1686, 32
  %v1689 = vpop.permute.xlu0 %1688
  %v1691 = vmul.f32 %v1673, %v1689
  %1693 = vrot.lane.b32.xlu0 %v1691, 64
  %v1694 = vpop.permute.xlu0 %1693
  %1696 = vst.msk [vmem:[#allocation2 + $0x20] sm:$0xff] %vm167, %v1694
  %1697 = vrot.lane.b32.xlu0 %v1691, 96
  %v1698 = vpop.permute.xlu0 %1697
  %1700 = vst.msk [vmem:[#allocation2 + $0x18] sm:$0xff] %vm274, %v1698
  %v1701 = vsel %vm167, %v1694, 0
  %1703 = vmatprep.subr.mxu0 0.0
  %1704 = vmatpush1.msra.mxu0 0.0
  %1705 = vmatprep.subr.mxu0 0.0
  %1706 = vmatpush1.msra.mxu0 0.0
  %1707 = vmatprep.subr.mxu0 0.0
  %1708 = vmatpush1.msra.mxu0 0.0
  %1709 = vmatprep.subr.mxu0 0.0
  %1710 = vmatpush1.msra.mxu0 0.0
  %1711 = vmatprep.subr.mxu0 0.0
  %1712 = vmatpush1.msra.mxu0 0.0
  %1713 = vmatprep.subr.mxu0 0.0
  %1714 = vmatpush1.msra.mxu0 0.0
  %1715 = vmatprep.subr.mxu0 0.0
  %1716 = vmatpush1.msra.mxu0 0.0
  %1717 = vmatprep.subr.mxu0 0.0
  %1718 = vmatpush1.msra.mxu0 0.0
  %1719 = vmatprep.subr.mxu0 0.0
  %1720 = vmatpush1.msra.mxu0 0.0
  %1721 = vmatprep.subr.mxu0 0.0
  %1722 = vmatpush1.msra.mxu0 0.0
  %1723 = vmatprep.subr.mxu0 0.0
  %1724 = vmatpush1.msra.mxu0 0.0
  %1725 = vmatprep.subr.mxu0 0.0
  %1726 = vmatpush1.msra.mxu0 0.0
  %1727 = vmatprep.subr.mxu0 0.0
  %1728 = vmatpush1.msra.mxu0 %v1029
  %1729 = vmatprep.subr.mxu0 0.0
  %1730 = vmatpush1.msra.mxu0 %v1028
  %1731 = vmatprep.subr.mxu0 0.0
  %1732 = vmatpush1.msra.mxu0 %v1027
  %1733 = vmatprep.subr.mxu0 0.0
  %1734 = vmatpush1.msra.mxu0 %v1026
  %1735 = vmatprep.subr.mxu0 0.0
  %1736 = vmatpush2.msra.mxu0 0.0
  %1737 = vmatprep.subr.mxu0 0.0
  %1738 = vmatpush2.msra.mxu0 0.0
  %1739 = vmatprep.subr.mxu0 0.0
  %1740 = vmatpush2.msra.mxu0 0.0
  %1741 = vmatprep.subr.mxu0 0.0
  %1742 = vmatpush2.msra.mxu0 0.0
  %1743 = vmatprep.subr.mxu0 0.0
  %1744 = vmatpush2.msra.mxu0 0.0
  %1745 = vmatprep.subr.mxu0 0.0
  %1746 = vmatpush2.msra.mxu0 0.0
  %1747 = vmatprep.subr.mxu0 0.0
  %1748 = vmatpush2.msra.mxu0 0.0
  %1749 = vmatprep.subr.mxu0 0.0
  %1750 = vmatpush2.msra.mxu0 0.0
  %1751 = vmatprep.subr.mxu0 0.0
  %1752 = vmatpush2.msra.mxu0 0.0
  %1753 = vmatprep.subr.mxu0 0.0
  %1754 = vmatpush2.msra.mxu0 0.0
  %1755 = vmatprep.subr.mxu0 0.0
  %1756 = vmatpush2.msra.mxu0 0.0
  %1757 = vmatprep.subr.mxu0 0.0
  %1758 = vmatpush2.msra.mxu0 0.0
  %1759 = vmatprep.subr.mxu0 0.0
  %1760 = vmatpush2.msra.mxu0 0.0
  %1761 = vmatprep.subr.mxu0 0.0
  %1762 = vmatpush2.msra.mxu0 0.0
  %1763 = vmatprep.subr.mxu0 0.0
  %1764 = vmatpush2.msra.mxu0 0.0
  %1765 = vmatprep.subr.mxu0 0.0
  %1766 = vmatpush2.msra.mxu0 0.0
  %1767 = vmatprep.mubr.f32.mxu0 0.0
  %1768 = vmatmul.mubr.f32.gmra.mxu0 %v1701
  %v1769 = vpop.f32.mrf.mxu0
  %v1770 = vadd.f32 0.0, %v1769
  %v1771 = vpop.f32.mrf.mxu0
  %1772 = vdwg.mxu0
  %v1773 = vadd.f32 %v1160, %v1770
  %v1774 = vxor.u32 %v1773, 2147483648
  %v1775 = vmul.f32 %v1774, 1.442695
  %v1776 = vpow.pop %v1775
  %v1777 = vadd.f32 %v1776, 1.0
  %v1778 = vrcp.pop %v1777
  %v1779 = vmul.f32 1.0, %v1778
  %v1780 = vtanh.pop %v1773
  %v1781 = vmul.f32 %v1779, %v1685
  %1783 = vrot.lane.b32.xlu0 %v1780, 32
  %v1784 = vpop.permute.xlu0 %1783
  %v1786 = vmul.f32 %v1779, %v1784
  %1788 = vrot.lane.b32.xlu0 %v1786, 32
  %v1789 = vpop.permute.xlu0 %1788
  %v1791 = vadd.f32 %v1781, %v1789
  %v1792 = vtanh.pop %v1791
  %1794 = vrot.lane.b32.xlu0 %v1792, 32
  %v1795 = vpop.permute.xlu0 %1794
  %v1797 = vmul.f32 %v1779, %v1795
  %1799 = vrot.lane.b32.xlu0 %v1797, 64
  %v1800 = vpop.permute.xlu0 %1799
  %1802 = vst.msk [vmem:[#allocation2 + $0x28] sm:$0xff] %vm167, %v1800
  %1803 = vrot.lane.b32.xlu0 %v1797, 96
  %v1804 = vpop.permute.xlu0 %1803
  %1806 = vst.msk [vmem:[#allocation2 + $0x10] sm:$0xff] %vm274, %v1804
  %v1807 = vsel %vm167, %v1800, 0
  %1809 = vmatprep.subr.mxu0 0.0
  %1810 = vmatpush1.msra.mxu0 0.0
  %1811 = vmatprep.subr.mxu0 0.0
  %1812 = vmatpush1.msra.mxu0 0.0
  %1813 = vmatprep.subr.mxu0 0.0
  %1814 = vmatpush1.msra.mxu0 0.0
  %1815 = vmatprep.subr.mxu0 0.0
  %1816 = vmatpush1.msra.mxu0 0.0
  %1817 = vmatprep.subr.mxu0 0.0
  %1818 = vmatpush1.msra.mxu0 0.0
  %1819 = vmatprep.subr.mxu0 0.0
  %1820 = vmatpush1.msra.mxu0 0.0
  %1821 = vmatprep.subr.mxu0 0.0
  %1822 = vmatpush1.msra.mxu0 0.0
  %1823 = vmatprep.subr.mxu0 0.0
  %1824 = vmatpush1.msra.mxu0 0.0
  %1825 = vmatprep.subr.mxu0 0.0
  %1826 = vmatpush1.msra.mxu0 0.0
  %1827 = vmatprep.subr.mxu0 0.0
  %1828 = vmatpush1.msra.mxu0 0.0
  %1829 = vmatprep.subr.mxu0 0.0
  %1830 = vmatpush1.msra.mxu0 0.0
  %1831 = vmatprep.subr.mxu0 0.0
  %1832 = vmatpush1.msra.mxu0 0.0
  %1833 = vmatprep.subr.mxu0 0.0
  %1834 = vmatpush1.msra.mxu0 %v1029
  %1835 = vmatprep.subr.mxu0 0.0
  %1836 = vmatpush1.msra.mxu0 %v1028
  %1837 = vmatprep.subr.mxu0 0.0
  %1838 = vmatpush1.msra.mxu0 %v1027
  %1839 = vmatprep.subr.mxu0 0.0
  %1840 = vmatpush1.msra.mxu0 %v1026
  %1841 = vmatprep.subr.mxu0 0.0
  %1842 = vmatpush2.msra.mxu0 0.0
  %1843 = vmatprep.subr.mxu0 0.0
  %1844 = vmatpush2.msra.mxu0 0.0
  %1845 = vmatprep.subr.mxu0 0.0
  %1846 = vmatpush2.msra.mxu0 0.0
  %1847 = vmatprep.subr.mxu0 0.0
  %1848 = vmatpush2.msra.mxu0 0.0
  %1849 = vmatprep.subr.mxu0 0.0
  %1850 = vmatpush2.msra.mxu0 0.0
  %1851 = vmatprep.subr.mxu0 0.0
  %1852 = vmatpush2.msra.mxu0 0.0
  %1853 = vmatprep.subr.mxu0 0.0
  %1854 = vmatpush2.msra.mxu0 0.0
  %1855 = vmatprep.subr.mxu0 0.0
  %1856 = vmatpush2.msra.mxu0 0.0
  %1857 = vmatprep.subr.mxu0 0.0
  %1858 = vmatpush2.msra.mxu0 0.0
  %1859 = vmatprep.subr.mxu0 0.0
  %1860 = vmatpush2.msra.mxu0 0.0
  %1861 = vmatprep.subr.mxu0 0.0
  %1862 = vmatpush2.msra.mxu0 0.0
  %1863 = vmatprep.subr.mxu0 0.0
  %1864 = vmatpush2.msra.mxu0 0.0
  %1865 = vmatprep.subr.mxu0 0.0
  %1866 = vmatpush2.msra.mxu0 0.0
  %1867 = vmatprep.subr.mxu0 0.0
  %1868 = vmatpush2.msra.mxu0 0.0
  %1869 = vmatprep.subr.mxu0 0.0
  %1870 = vmatpush2.msra.mxu0 0.0
  %1871 = vmatprep.subr.mxu0 0.0
  %1872 = vmatpush2.msra.mxu0 0.0
  %1873 = vmatprep.mubr.f32.mxu0 0.0
  %1874 = vmatmul.mubr.f32.gmra.mxu0 %v1807
  %v1875 = vpop.f32.mrf.mxu0
  %v1876 = vadd.f32 0.0, %v1875
  %v1877 = vpop.f32.mrf.mxu0
  %1878 = vdwg.mxu0
  %v1879 = vadd.f32 %v1165, %v1876
  %v1880 = vxor.u32 %v1879, 2147483648
  %v1881 = vmul.f32 %v1880, 1.442695
  %v1882 = vpow.pop %v1881
  %v1883 = vadd.f32 %v1882, 1.0
  %v1884 = vrcp.pop %v1883
  %v1885 = vmul.f32 1.0, %v1884
  %v1886 = vtanh.pop %v1879
  %v1887 = vmul.f32 %v1885, %v1791
  %1889 = vrot.lane.b32.xlu0 %v1886, 32
  %v1890 = vpop.permute.xlu0 %1889
  %v1892 = vmul.f32 %v1885, %v1890
  %1894 = vrot.lane.b32.xlu0 %v1892, 32
  %v1895 = vpop.permute.xlu0 %1894
  %v1897 = vadd.f32 %v1887, %v1895
  %v1898 = vtanh.pop %v1897
  %1900 = vrot.lane.b32.xlu0 %v1898, 32
  %v1901 = vpop.permute.xlu0 %1900
  %v1903 = vmul.f32 %v1885, %v1901
  %1905 = vrot.lane.b32.xlu0 %v1903, 64
  %v1906 = vpop.permute.xlu0 %1905
  %1908 = vst.msk [vmem:[#allocation2 + $0x30] sm:$0xff] %vm167, %v1906
  %1909 = vrot.lane.b32.xlu0 %v1903, 96
  %v1910 = vpop.permute.xlu0 %1909
  %1912 = vst.msk [vmem:[#allocation2 + $0x8] sm:$0xff] %vm274, %v1910
  %v1913 = vsel %vm167, %v1906, 0
  %1915 = vmatprep.subr.mxu0 0.0
  %1916 = vmatpush1.msra.mxu0 0.0
  %1917 = vmatprep.subr.mxu0 0.0
  %1918 = vmatpush1.msra.mxu0 0.0
  %1919 = vmatprep.subr.mxu0 0.0
  %1920 = vmatpush1.msra.mxu0 0.0
  %1921 = vmatprep.subr.mxu0 0.0
  %1922 = vmatpush1.msra.mxu0 0.0
  %1923 = vmatprep.subr.mxu0 0.0
  %1924 = vmatpush1.msra.mxu0 0.0
  %1925 = vmatprep.subr.mxu0 0.0
  %1926 = vmatpush1.msra.mxu0 0.0
  %1927 = vmatprep.subr.mxu0 0.0
  %1928 = vmatpush1.msra.mxu0 0.0
  %1929 = vmatprep.subr.mxu0 0.0
  %1930 = vmatpush1.msra.mxu0 0.0
  %1931 = vmatprep.subr.mxu0 0.0
  %1932 = vmatpush1.msra.mxu0 0.0
  %1933 = vmatprep.subr.mxu0 0.0
  %1934 = vmatpush1.msra.mxu0 0.0
  %1935 = vmatprep.subr.mxu0 0.0
  %1936 = vmatpush1.msra.mxu0 0.0
  %1937 = vmatprep.subr.mxu0 0.0
  %1938 = vmatpush1.msra.mxu0 0.0
  %1939 = vmatprep.subr.mxu0 0.0
  %1940 = vmatpush1.msra.mxu0 %v1029
  %1941 = vmatprep.subr.mxu0 0.0
  %1942 = vmatpush1.msra.mxu0 %v1028
  %1943 = vmatprep.subr.mxu0 0.0
  %1944 = vmatpush1.msra.mxu0 %v1027
  %1945 = vmatprep.subr.mxu0 0.0
  %1946 = vmatpush1.msra.mxu0 %v1026
  %1947 = vmatprep.subr.mxu0 0.0
  %1948 = vmatpush2.msra.mxu0 0.0
  %1949 = vmatprep.subr.mxu0 0.0
  %1950 = vmatpush2.msra.mxu0 0.0
  %1951 = vmatprep.subr.mxu0 0.0
  %1952 = vmatpush2.msra.mxu0 0.0
  %1953 = vmatprep.subr.mxu0 0.0
  %1954 = vmatpush2.msra.mxu0 0.0
  %1955 = vmatprep.subr.mxu0 0.0
  %1956 = vmatpush2.msra.mxu0 0.0
  %1957 = vmatprep.subr.mxu0 0.0
  %1958 = vmatpush2.msra.mxu0 0.0
  %1959 = vmatprep.subr.mxu0 0.0
  %1960 = vmatpush2.msra.mxu0 0.0
  %1961 = vmatprep.subr.mxu0 0.0
  %1962 = vmatpush2.msra.mxu0 0.0
  %1963 = vmatprep.subr.mxu0 0.0
  %1964 = vmatpush2.msra.mxu0 0.0
  %1965 = vmatprep.subr.mxu0 0.0
  %1966 = vmatpush2.msra.mxu0 0.0
  %1967 = vmatprep.subr.mxu0 0.0
  %1968 = vmatpush2.msra.mxu0 0.0
  %1969 = vmatprep.subr.mxu0 0.0
  %1970 = vmatpush2.msra.mxu0 0.0
  %1971 = vmatprep.subr.mxu0 0.0
  %1972 = vmatpush2.msra.mxu0 0.0
  %1973 = vmatprep.subr.mxu0 0.0
  %1974 = vmatpush2.msra.mxu0 0.0
  %1975 = vmatprep.subr.mxu0 0.0
  %1976 = vmatpush2.msra.mxu0 0.0
  %1977 = vmatprep.subr.mxu0 0.0
  %1978 = vmatpush2.msra.mxu0 0.0
  %1979 = vmatprep.mubr.f32.mxu0 0.0
  %1980 = vmatmul.mubr.f32.gmra.mxu0 %v1913
  %v1981 = vpop.f32.mrf.mxu0
  %v1982 = vadd.f32 0.0, %v1981
  %v1983 = vpop.f32.mrf.mxu0
  %1984 = vdwg.mxu0
  %v1985 = vadd.f32 %v1170, %v1982
  %v1986 = vxor.u32 %v1985, 2147483648
  %v1987 = vmul.f32 %v1986, 1.442695
  %v1988 = vpow.pop %v1987
  %v1989 = vadd.f32 %v1988, 1.0
  %v1990 = vrcp.pop %v1989
  %v1991 = vmul.f32 1.0, %v1990
  %v1992 = vtanh.pop %v1985
  %v1993 = vmul.f32 %v1991, %v1897
  %1995 = vrot.lane.b32.xlu0 %v1992, 32
  %v1996 = vpop.permute.xlu0 %1995
  %v1998 = vmul.f32 %v1991, %v1996
  %2000 = vrot.lane.b32.xlu0 %v1998, 32
  %v2001 = vpop.permute.xlu0 %2000
  %v2003 = vadd.f32 %v1993, %v2001
  %v2004 = vtanh.pop %v2003
  %2006 = vrot.lane.b32.xlu0 %v2004, 32
  %v2007 = vpop.permute.xlu0 %2006
  %v2009 = vmul.f32 %v1991, %v2007
  %2011 = vrot.lane.b32.xlu0 %v2009, 64
  %v2012 = vpop.permute.xlu0 %2011
  %2014 = vst.msk [vmem:[#allocation2 + $0x38] sm:$0xff] %vm167, %v2012
  %2015 = vrot.lane.b32.xlu0 %v2009, 96
  %v2016 = vpop.permute.xlu0 %2015
  %2018 = vst.msk [vmem:[#allocation2] sm:$0xff] %vm274, %v2016
  %s2019 = scalar_lea.vmem %s2, 104
  %v2020 = vld [vmem:[%s2019] sm:$0xff]
  %v2021 = vld [vmem:[%s2019 + $0x8] sm:$0xff]
  %v2022 = vld [vmem:[%s2019 + $0x10] sm:$0xff]
  %v2023 = vld [vmem:[%s2019 + $0x18] sm:$0xff]
  %v2024 = vld [vmem:[%s2019 + $0x20] sm:$0xff]
  %v2025 = vld [vmem:[%s2019 + $0x28] sm:$0xff]
  %v2026 = vld [vmem:[%s2019 + $0x30] sm:$0xff]
  %v2027 = vld [vmem:[%s2019 + $0x38] sm:$0xff]
  %v2028 = vld [vmem:[%s2019 + $0x40] sm:$0xff]
  %v2029 = vld [vmem:[%s2019 + $0x48] sm:$0xff]
  %v2030 = vld [vmem:[%s2019 + $0x50] sm:$0xff]
  %v2031 = vld [vmem:[%s2019 + $0x58] sm:$0xff]
  %v2032 = vld [vmem:[%s2019 + $0x60] sm:$0x1]
  %v2033 = vld [vmem:[#allocation2] sm:$0xff]
  %v2034 = vld [vmem:[#allocation2 + $0x8] sm:$0xff]
  %v2035 = vld [vmem:[#allocation2 + $0x10] sm:$0xff]
  %v2036 = vld [vmem:[#allocation2 + $0x18] sm:$0xff]
  %v2037 = vld [vmem:[#allocation2 + $0x20] sm:$0xff]
  %v2038 = vld [vmem:[#allocation2 + $0x28] sm:$0xff]
  %v2039 = vld [vmem:[#allocation2 + $0x30] sm:$0xff]
  %v2040 = vld [vmem:[#allocation2 + $0x38] sm:$0xff]
  %v2041 = vlaneseq
  %v2042 = vshrl.u32 %v2041, 7
  %v2043 = vsub.s32 0, %v2042
  %v2044 = vrot.slane %v2032, %v2043
  %v2046 = vsel %vm1043, %v2033, 0
  %v2049 = vsel %vm1043, %v2034, 0
  %v2052 = vsel %vm1043, %v2035, 0
  %v2055 = vsel %vm1043, %v2036, 0
  %v2058 = vsel %vm1043, %v2037, 0
  %v2061 = vsel %vm1043, %v2038, 0
  %v2064 = vsel %vm1043, %v2039, 0
  %v2067 = vsel %vm1043, %v2040, 0
  %2069 = vmatprep.subr.mxu0 0.0
  %2070 = vmatpush1.msra.mxu0 0.0
  %2071 = vmatprep.subr.mxu0 0.0
  %2072 = vmatpush1.msra.mxu0 0.0
  %2073 = vmatprep.subr.mxu0 0.0
  %2074 = vmatpush1.msra.mxu0 0.0
  %2075 = vmatprep.subr.mxu0 0.0
  %2076 = vmatpush1.msra.mxu0 0.0
  %2077 = vmatprep.subr.mxu0 0.0
  %2078 = vmatpush1.msra.mxu0 0.0
  %2079 = vmatprep.subr.mxu0 0.0
  %2080 = vmatpush1.msra.mxu0 0.0
  %2081 = vmatprep.subr.mxu0 0.0
  %2082 = vmatpush1.msra.mxu0 0.0
  %2083 = vmatprep.subr.mxu0 0.0
  %2084 = vmatpush1.msra.mxu0 0.0
  %2085 = vmatprep.subr.mxu0 0.0
  %2086 = vmatpush1.msra.mxu0 %v2027
  %2087 = vmatprep.subr.mxu0 0.0
  %2088 = vmatpush1.msra.mxu0 %v2026
  %2089 = vmatprep.subr.mxu0 0.0
  %2090 = vmatpush1.msra.mxu0 %v2025
  %2091 = vmatprep.subr.mxu0 0.0
  %2092 = vmatpush1.msra.mxu0 %v2024
  %2093 = vmatprep.subr.mxu0 0.0
  %2094 = vmatpush1.msra.mxu0 %v2023
  %2095 = vmatprep.subr.mxu0 0.0
  %2096 = vmatpush1.msra.mxu0 %v2022
  %2097 = vmatprep.subr.mxu0 0.0
  %2098 = vmatpush1.msra.mxu0 %v2021
  %2099 = vmatprep.subr.mxu0 0.0
  %2100 = vmatpush1.msra.mxu0 %v2020
  %2101 = vmatprep.subr.mxu0 0.0
  %2102 = vmatpush2.msra.mxu0 0.0
  %2103 = vmatprep.subr.mxu0 0.0
  %2104 = vmatpush2.msra.mxu0 0.0
  %2105 = vmatprep.subr.mxu0 0.0
  %2106 = vmatpush2.msra.mxu0 0.0
  %2107 = vmatprep.subr.mxu0 0.0
  %2108 = vmatpush2.msra.mxu0 0.0
  %2109 = vmatprep.subr.mxu0 0.0
  %2110 = vmatpush2.msra.mxu0 0.0
  %2111 = vmatprep.subr.mxu0 0.0
  %2112 = vmatpush2.msra.mxu0 0.0
  %2113 = vmatprep.subr.mxu0 0.0
  %2114 = vmatpush2.msra.mxu0 0.0
  %2115 = vmatprep.subr.mxu0 0.0
  %2116 = vmatpush2.msra.mxu0 0.0
  %2117 = vmatprep.subr.mxu0 0.0
  %2118 = vmatpush2.msra.mxu0 0.0
  %2119 = vmatprep.subr.mxu0 0.0
  %2120 = vmatpush2.msra.mxu0 0.0
  %2121 = vmatprep.subr.mxu0 0.0
  %2122 = vmatpush2.msra.mxu0 0.0
  %2123 = vmatprep.subr.mxu0 0.0
  %2124 = vmatpush2.msra.mxu0 0.0
  %2125 = vmatprep.subr.mxu0 0.0
  %2126 = vmatpush2.msra.mxu0 0.0
  %2127 = vmatprep.subr.mxu0 0.0
  %2128 = vmatpush2.msra.mxu0 0.0
  %2129 = vmatprep.subr.mxu0 0.0
  %2130 = vmatpush2.msra.mxu0 0.0
  %2131 = vmatprep.subr.mxu0 0.0
  %2132 = vmatpush2.msra.mxu0 0.0
  %2133 = vmatprep.mubr.f32.mxu0 0.0
  %2134 = vmatmul.mubr.f32.gmra.mxu0 %v2046
  %v2135 = vpop.f32.mrf.mxu0
  %v2136 = vadd.f32 %v2044, %v2135
  %v2137 = vpop.f32.mrf.mxu0
  %2138 = vmatprep.mubr.f32.mxu0 0.0
  %2139 = vmatmul.mubr.f32.gmra.mxu0 %v2049
  %v2140 = vpop.f32.mrf.mxu0
  %v2141 = vadd.f32 %v2044, %v2140
  %v2142 = vpop.f32.mrf.mxu0
  %2143 = vmatprep.mubr.f32.mxu0 0.0
  %2144 = vmatmul.mubr.f32.gmra.mxu0 %v2052
  %v2145 = vpop.f32.mrf.mxu0
  %v2146 = vadd.f32 %v2044, %v2145
  %v2147 = vpop.f32.mrf.mxu0
  %2148 = vmatprep.mubr.f32.mxu0 0.0
  %2149 = vmatmul.mubr.f32.gmra.mxu0 %v2055
  %v2150 = vpop.f32.mrf.mxu0
  %v2151 = vadd.f32 %v2044, %v2150
  %v2152 = vpop.f32.mrf.mxu0
  %2153 = vmatprep.mubr.f32.mxu0 0.0
  %2154 = vmatmul.mubr.f32.gmra.mxu0 %v2058
  %v2155 = vpop.f32.mrf.mxu0
  %v2156 = vadd.f32 %v2044, %v2155
  %v2157 = vpop.f32.mrf.mxu0
  %2158 = vmatprep.mubr.f32.mxu0 0.0
  %2159 = vmatmul.mubr.f32.gmra.mxu0 %v2061
  %v2160 = vpop.f32.mrf.mxu0
  %v2161 = vadd.f32 %v2044, %v2160
  %v2162 = vpop.f32.mrf.mxu0
  %2163 = vmatprep.mubr.f32.mxu0 0.0
  %2164 = vmatmul.mubr.f32.gmra.mxu0 %v2064
  %v2165 = vpop.f32.mrf.mxu0
  %v2166 = vadd.f32 %v2044, %v2165
  %v2167 = vpop.f32.mrf.mxu0
  %2168 = vmatprep.mubr.f32.mxu0 0.0
  %2169 = vmatmul.mubr.f32.gmra.mxu0 %v2067
  %v2170 = vpop.f32.mrf.mxu0
  %v2171 = vadd.f32 %v2044, %v2170
  %v2172 = vpop.f32.mrf.mxu0
  %2173 = vdwg.mxu0
  %2174 = vmatprep.subr.mxu0 0.0
  %2175 = vmatpush1.msra.mxu0 0.0
  %2176 = vmatprep.subr.mxu0 0.0
  %2177 = vmatpush1.msra.mxu0 0.0
  %2178 = vmatprep.subr.mxu0 0.0
  %2179 = vmatpush1.msra.mxu0 0.0
  %2180 = vmatprep.subr.mxu0 0.0
  %2181 = vmatpush1.msra.mxu0 0.0
  %2182 = vmatprep.subr.mxu0 0.0
  %2183 = vmatpush1.msra.mxu0 0.0
  %2184 = vmatprep.subr.mxu0 0.0
  %2185 = vmatpush1.msra.mxu0 0.0
  %2186 = vmatprep.subr.mxu0 0.0
  %2187 = vmatpush1.msra.mxu0 0.0
  %2188 = vmatprep.subr.mxu0 0.0
  %2189 = vmatpush1.msra.mxu0 0.0
  %2190 = vmatprep.subr.mxu0 0.0
  %2191 = vmatpush1.msra.mxu0 0.0
  %2192 = vmatprep.subr.mxu0 0.0
  %2193 = vmatpush1.msra.mxu0 0.0
  %2194 = vmatprep.subr.mxu0 0.0
  %2195 = vmatpush1.msra.mxu0 0.0
  %2196 = vmatprep.subr.mxu0 0.0
  %2197 = vmatpush1.msra.mxu0 0.0
  %2198 = vmatprep.subr.mxu0 0.0
  %2199 = vmatpush1.msra.mxu0 %v2031
  %2200 = vmatprep.subr.mxu0 0.0
  %2201 = vmatpush1.msra.mxu0 %v2030
  %2202 = vmatprep.subr.mxu0 0.0
  %2203 = vmatpush1.msra.mxu0 %v2029
  %2204 = vmatprep.subr.mxu0 0.0
  %2205 = vmatpush1.msra.mxu0 %v2028
  %2206 = vmatprep.subr.mxu0 0.0
  %2207 = vmatpush2.msra.mxu0 0.0
  %2208 = vmatprep.subr.mxu0 0.0
  %2209 = vmatpush2.msra.mxu0 0.0
  %2210 = vmatprep.subr.mxu0 0.0
  %2211 = vmatpush2.msra.mxu0 0.0
  %2212 = vmatprep.subr.mxu0 0.0
  %2213 = vmatpush2.msra.mxu0 0.0
  %2214 = vmatprep.subr.mxu0 0.0
  %2215 = vmatpush2.msra.mxu0 0.0
  %2216 = vmatprep.subr.mxu0 0.0
  %2217 = vmatpush2.msra.mxu0 0.0
  %2218 = vmatprep.subr.mxu0 0.0
  %2219 = vmatpush2.msra.mxu0 0.0
  %2220 = vmatprep.subr.mxu0 0.0
  %2221 = vmatpush2.msra.mxu0 0.0
  %2222 = vmatprep.subr.mxu0 0.0
  %2223 = vmatpush2.msra.mxu0 0.0
  %2224 = vmatprep.subr.mxu0 0.0
  %2225 = vmatpush2.msra.mxu0 0.0
  %2226 = vmatprep.subr.mxu0 0.0
  %2227 = vmatpush2.msra.mxu0 0.0
  %2228 = vmatprep.subr.mxu0 0.0
  %2229 = vmatpush2.msra.mxu0 0.0
  %2230 = vmatprep.subr.mxu0 0.0
  %2231 = vmatpush2.msra.mxu0 0.0
  %2232 = vmatprep.subr.mxu0 0.0
  %2233 = vmatpush2.msra.mxu0 0.0
  %2234 = vmatprep.subr.mxu0 0.0
  %2235 = vmatpush2.msra.mxu0 0.0
  %2236 = vmatprep.subr.mxu0 0.0
  %2237 = vmatpush2.msra.mxu0 0.0
  %2238 = vmatprep.mubr.f32.mxu0 0.0
  %2239 = vmatmul.mubr.f32.gmra.mxu0 %v169
  %v2240 = vpop.f32.mrf.mxu0
  %v2241 = vadd.f32 0.0, %v2240
  %v2242 = vpop.f32.mrf.mxu0
  %2243 = vdwg.mxu0
  %v2244 = vadd.f32 %v2136, %v2241
  %v2245 = vxor.u32 %v2244, 2147483648
  %v2246 = vmul.f32 %v2245, 1.442695
  %v2247 = vpow.pop %v2246
  %v2248 = vadd.f32 %v2247, 1.0
  %v2249 = vrcp.pop %v2248
  %v2250 = vmul.f32 1.0, %v2249
  %v2251 = vtanh.pop %v2244
  %v2252 = vmul.f32 %v2250, 0.0
  %2254 = vrot.lane.b32.xlu0 %v2251, 32
  %v2255 = vpop.permute.xlu0 %2254
  %v2257 = vmul.f32 %v2250, %v2255
  %2259 = vrot.lane.b32.xlu0 %v2257, 32
  %v2260 = vpop.permute.xlu0 %2259
  %v2262 = vadd.f32 %v2252, %v2260
  %v2263 = vtanh.pop %v2262
  %2265 = vrot.lane.b32.xlu0 %v2263, 32
  %v2266 = vpop.permute.xlu0 %2265
  %v2268 = vmul.f32 %v2250, %v2266
  %v2269 = vadd.f32 %v2268, 0.0
  %2271 = vrot.lane.b32.xlu0 %v2268, 64
  %v2272 = vpop.permute.xlu0 %2271
  %v2273 = vsel %vm167, %v2272, 0
  %2275 = vmatprep.subr.mxu0 0.0
  %2276 = vmatpush1.msra.mxu0 0.0
  %2277 = vmatprep.subr.mxu0 0.0
  %2278 = vmatpush1.msra.mxu0 0.0
  %2279 = vmatprep.subr.mxu0 0.0
  %2280 = vmatpush1.msra.mxu0 0.0
  %2281 = vmatprep.subr.mxu0 0.0
  %2282 = vmatpush1.msra.mxu0 0.0
  %2283 = vmatprep.subr.mxu0 0.0
  %2284 = vmatpush1.msra.mxu0 0.0
  %2285 = vmatprep.subr.mxu0 0.0
  %2286 = vmatpush1.msra.mxu0 0.0
  %2287 = vmatprep.subr.mxu0 0.0
  %2288 = vmatpush1.msra.mxu0 0.0
  %2289 = vmatprep.subr.mxu0 0.0
  %2290 = vmatpush1.msra.mxu0 0.0
  %2291 = vmatprep.subr.mxu0 0.0
  %2292 = vmatpush1.msra.mxu0 0.0
  %2293 = vmatprep.subr.mxu0 0.0
  %2294 = vmatpush1.msra.mxu0 0.0
  %2295 = vmatprep.subr.mxu0 0.0
  %2296 = vmatpush1.msra.mxu0 0.0
  %2297 = vmatprep.subr.mxu0 0.0
  %2298 = vmatpush1.msra.mxu0 0.0
  %2299 = vmatprep.subr.mxu0 0.0
  %2300 = vmatpush1.msra.mxu0 %v2031
  %2301 = vmatprep.subr.mxu0 0.0
  %2302 = vmatpush1.msra.mxu0 %v2030
  %2303 = vmatprep.subr.mxu0 0.0
  %2304 = vmatpush1.msra.mxu0 %v2029
  %2305 = vmatprep.subr.mxu0 0.0
  %2306 = vmatpush1.msra.mxu0 %v2028
  %2307 = vmatprep.subr.mxu0 0.0
  %2308 = vmatpush2.msra.mxu0 0.0
  %2309 = vmatprep.subr.mxu0 0.0
  %2310 = vmatpush2.msra.mxu0 0.0
  %2311 = vmatprep.subr.mxu0 0.0
  %2312 = vmatpush2.msra.mxu0 0.0
  %2313 = vmatprep.subr.mxu0 0.0
  %2314 = vmatpush2.msra.mxu0 0.0
  %2315 = vmatprep.subr.mxu0 0.0
  %2316 = vmatpush2.msra.mxu0 0.0
  %2317 = vmatprep.subr.mxu0 0.0
  %2318 = vmatpush2.msra.mxu0 0.0
  %2319 = vmatprep.subr.mxu0 0.0
  %2320 = vmatpush2.msra.mxu0 0.0
  %2321 = vmatprep.subr.mxu0 0.0
  %2322 = vmatpush2.msra.mxu0 0.0
  %2323 = vmatprep.subr.mxu0 0.0
  %2324 = vmatpush2.msra.mxu0 0.0
  %2325 = vmatprep.subr.mxu0 0.0
  %2326 = vmatpush2.msra.mxu0 0.0
  %2327 = vmatprep.subr.mxu0 0.0
  %2328 = vmatpush2.msra.mxu0 0.0
  %2329 = vmatprep.subr.mxu0 0.0
  %2330 = vmatpush2.msra.mxu0 0.0
  %2331 = vmatprep.subr.mxu0 0.0
  %2332 = vmatpush2.msra.mxu0 0.0
  %2333 = vmatprep.subr.mxu0 0.0
  %2334 = vmatpush2.msra.mxu0 0.0
  %2335 = vmatprep.subr.mxu0 0.0
  %2336 = vmatpush2.msra.mxu0 0.0
  %2337 = vmatprep.subr.mxu0 0.0
  %2338 = vmatpush2.msra.mxu0 0.0
  %2339 = vmatprep.mubr.f32.mxu0 0.0
  %2340 = vmatmul.mubr.f32.gmra.mxu0 %v2273
  %v2341 = vpop.f32.mrf.mxu0
  %v2342 = vadd.f32 0.0, %v2341
  %v2343 = vpop.f32.mrf.mxu0
  %2344 = vdwg.mxu0
  %v2345 = vadd.f32 %v2141, %v2342
  %v2346 = vxor.u32 %v2345, 2147483648
  %v2347 = vmul.f32 %v2346, 1.442695
  %v2348 = vpow.pop %v2347
  %v2349 = vadd.f32 %v2348, 1.0
  %v2350 = vrcp.pop %v2349
  %v2351 = vmul.f32 1.0, %v2350
  %v2352 = vtanh.pop %v2345
  %v2353 = vmul.f32 %v2351, %v2262
  %2355 = vrot.lane.b32.xlu0 %v2352, 32
  %v2356 = vpop.permute.xlu0 %2355
  %v2358 = vmul.f32 %v2351, %v2356
  %2360 = vrot.lane.b32.xlu0 %v2358, 32
  %v2361 = vpop.permute.xlu0 %2360
  %v2363 = vadd.f32 %v2353, %v2361
  %v2364 = vtanh.pop %v2363
  %2366 = vrot.lane.b32.xlu0 %v2364, 32
  %v2367 = vpop.permute.xlu0 %2366
  %v2369 = vmul.f32 %v2351, %v2367
  %v2370 = vadd.f32 %v2269, %v2369
  %2372 = vrot.lane.b32.xlu0 %v2369, 64
  %v2373 = vpop.permute.xlu0 %2372
  %v2374 = vsel %vm167, %v2373, 0
  %2376 = vmatprep.subr.mxu0 0.0
  %2377 = vmatpush1.msra.mxu0 0.0
  %2378 = vmatprep.subr.mxu0 0.0
  %2379 = vmatpush1.msra.mxu0 0.0
  %2380 = vmatprep.subr.mxu0 0.0
  %2381 = vmatpush1.msra.mxu0 0.0
  %2382 = vmatprep.subr.mxu0 0.0
  %2383 = vmatpush1.msra.mxu0 0.0
  %2384 = vmatprep.subr.mxu0 0.0
  %2385 = vmatpush1.msra.mxu0 0.0
  %2386 = vmatprep.subr.mxu0 0.0
  %2387 = vmatpush1.msra.mxu0 0.0
  %2388 = vmatprep.subr.mxu0 0.0
  %2389 = vmatpush1.msra.mxu0 0.0
  %2390 = vmatprep.subr.mxu0 0.0
  %2391 = vmatpush1.msra.mxu0 0.0
  %2392 = vmatprep.subr.mxu0 0.0
  %2393 = vmatpush1.msra.mxu0 0.0
  %2394 = vmatprep.subr.mxu0 0.0
  %2395 = vmatpush1.msra.mxu0 0.0
  %2396 = vmatprep.subr.mxu0 0.0
  %2397 = vmatpush1.msra.mxu0 0.0
  %2398 = vmatprep.subr.mxu0 0.0
  %2399 = vmatpush1.msra.mxu0 0.0
  %2400 = vmatprep.subr.mxu0 0.0
  %2401 = vmatpush1.msra.mxu0 %v2031
  %2402 = vmatprep.subr.mxu0 0.0
  %2403 = vmatpush1.msra.mxu0 %v2030
  %2404 = vmatprep.subr.mxu0 0.0
  %2405 = vmatpush1.msra.mxu0 %v2029
  %2406 = vmatprep.subr.mxu0 0.0
  %2407 = vmatpush1.msra.mxu0 %v2028
  %2408 = vmatprep.subr.mxu0 0.0
  %2409 = vmatpush2.msra.mxu0 0.0
  %2410 = vmatprep.subr.mxu0 0.0
  %2411 = vmatpush2.msra.mxu0 0.0
  %2412 = vmatprep.subr.mxu0 0.0
  %2413 = vmatpush2.msra.mxu0 0.0
  %2414 = vmatprep.subr.mxu0 0.0
  %2415 = vmatpush2.msra.mxu0 0.0
  %2416 = vmatprep.subr.mxu0 0.0
  %2417 = vmatpush2.msra.mxu0 0.0
  %2418 = vmatprep.subr.mxu0 0.0
  %2419 = vmatpush2.msra.mxu0 0.0
  %2420 = vmatprep.subr.mxu0 0.0
  %2421 = vmatpush2.msra.mxu0 0.0
  %2422 = vmatprep.subr.mxu0 0.0
  %2423 = vmatpush2.msra.mxu0 0.0
  %2424 = vmatprep.subr.mxu0 0.0
  %2425 = vmatpush2.msra.mxu0 0.0
  %2426 = vmatprep.subr.mxu0 0.0
  %2427 = vmatpush2.msra.mxu0 0.0
  %2428 = vmatprep.subr.mxu0 0.0
  %2429 = vmatpush2.msra.mxu0 0.0
  %2430 = vmatprep.subr.mxu0 0.0
  %2431 = vmatpush2.msra.mxu0 0.0
  %2432 = vmatprep.subr.mxu0 0.0
  %2433 = vmatpush2.msra.mxu0 0.0
  %2434 = vmatprep.subr.mxu0 0.0
  %2435 = vmatpush2.msra.mxu0 0.0
  %2436 = vmatprep.subr.mxu0 0.0
  %2437 = vmatpush2.msra.mxu0 0.0
  %2438 = vmatprep.subr.mxu0 0.0
  %2439 = vmatpush2.msra.mxu0 0.0
  %2440 = vmatprep.mubr.f32.mxu0 0.0
  %2441 = vmatmul.mubr.f32.gmra.mxu0 %v2374
  %v2442 = vpop.f32.mrf.mxu0
  %v2443 = vadd.f32 0.0, %v2442
  %v2444 = vpop.f32.mrf.mxu0
  %2445 = vdwg.mxu0
  %v2446 = vadd.f32 %v2146, %v2443
  %v2447 = vxor.u32 %v2446, 2147483648
  %v2448 = vmul.f32 %v2447, 1.442695
  %v2449 = vpow.pop %v2448
  %v2450 = vadd.f32 %v2449, 1.0
  %v2451 = vrcp.pop %v2450
  %v2452 = vmul.f32 1.0, %v2451
  %v2453 = vtanh.pop %v2446
  %v2454 = vmul.f32 %v2452, %v2363
  %2456 = vrot.lane.b32.xlu0 %v2453, 32
  %v2457 = vpop.permute.xlu0 %2456
  %v2459 = vmul.f32 %v2452, %v2457
  %2461 = vrot.lane.b32.xlu0 %v2459, 32
  %v2462 = vpop.permute.xlu0 %2461
  %v2464 = vadd.f32 %v2454, %v2462
  %v2465 = vtanh.pop %v2464
  %2467 = vrot.lane.b32.xlu0 %v2465, 32
  %v2468 = vpop.permute.xlu0 %2467
  %v2470 = vmul.f32 %v2452, %v2468
  %v2471 = vadd.f32 %v2370, %v2470
  %2473 = vrot.lane.b32.xlu0 %v2470, 64
  %v2474 = vpop.permute.xlu0 %2473
  %v2475 = vsel %vm167, %v2474, 0
  %2477 = vmatprep.subr.mxu0 0.0
  %2478 = vmatpush1.msra.mxu0 0.0
  %2479 = vmatprep.subr.mxu0 0.0
  %2480 = vmatpush1.msra.mxu0 0.0
  %2481 = vmatprep.subr.mxu0 0.0
  %2482 = vmatpush1.msra.mxu0 0.0
  %2483 = vmatprep.subr.mxu0 0.0
  %2484 = vmatpush1.msra.mxu0 0.0
  %2485 = vmatprep.subr.mxu0 0.0
  %2486 = vmatpush1.msra.mxu0 0.0
  %2487 = vmatprep.subr.mxu0 0.0
  %2488 = vmatpush1.msra.mxu0 0.0
  %2489 = vmatprep.subr.mxu0 0.0
  %2490 = vmatpush1.msra.mxu0 0.0
  %2491 = vmatprep.subr.mxu0 0.0
  %2492 = vmatpush1.msra.mxu0 0.0
  %2493 = vmatprep.subr.mxu0 0.0
  %2494 = vmatpush1.msra.mxu0 0.0
  %2495 = vmatprep.subr.mxu0 0.0
  %2496 = vmatpush1.msra.mxu0 0.0
  %2497 = vmatprep.subr.mxu0 0.0
  %2498 = vmatpush1.msra.mxu0 0.0
  %2499 = vmatprep.subr.mxu0 0.0
  %2500 = vmatpush1.msra.mxu0 0.0
  %2501 = vmatprep.subr.mxu0 0.0
  %2502 = vmatpush1.msra.mxu0 %v2031
  %2503 = vmatprep.subr.mxu0 0.0
  %2504 = vmatpush1.msra.mxu0 %v2030
  %2505 = vmatprep.subr.mxu0 0.0
  %2506 = vmatpush1.msra.mxu0 %v2029
  %2507 = vmatprep.subr.mxu0 0.0
  %2508 = vmatpush1.msra.mxu0 %v2028
  %2509 = vmatprep.subr.mxu0 0.0
  %2510 = vmatpush2.msra.mxu0 0.0
  %2511 = vmatprep.subr.mxu0 0.0
  %2512 = vmatpush2.msra.mxu0 0.0
  %2513 = vmatprep.subr.mxu0 0.0
  %2514 = vmatpush2.msra.mxu0 0.0
  %2515 = vmatprep.subr.mxu0 0.0
  %2516 = vmatpush2.msra.mxu0 0.0
  %2517 = vmatprep.subr.mxu0 0.0
  %2518 = vmatpush2.msra.mxu0 0.0
  %2519 = vmatprep.subr.mxu0 0.0
  %2520 = vmatpush2.msra.mxu0 0.0
  %2521 = vmatprep.subr.mxu0 0.0
  %2522 = vmatpush2.msra.mxu0 0.0
  %2523 = vmatprep.subr.mxu0 0.0
  %2524 = vmatpush2.msra.mxu0 0.0
  %2525 = vmatprep.subr.mxu0 0.0
  %2526 = vmatpush2.msra.mxu0 0.0
  %2527 = vmatprep.subr.mxu0 0.0
  %2528 = vmatpush2.msra.mxu0 0.0
  %2529 = vmatprep.subr.mxu0 0.0
  %2530 = vmatpush2.msra.mxu0 0.0
  %2531 = vmatprep.subr.mxu0 0.0
  %2532 = vmatpush2.msra.mxu0 0.0
  %2533 = vmatprep.subr.mxu0 0.0
  %2534 = vmatpush2.msra.mxu0 0.0
  %2535 = vmatprep.subr.mxu0 0.0
  %2536 = vmatpush2.msra.mxu0 0.0
  %2537 = vmatprep.subr.mxu0 0.0
  %2538 = vmatpush2.msra.mxu0 0.0
  %2539 = vmatprep.subr.mxu0 0.0
  %2540 = vmatpush2.msra.mxu0 0.0
  %2541 = vmatprep.mubr.f32.mxu0 0.0
  %2542 = vmatmul.mubr.f32.gmra.mxu0 %v2475
  %v2543 = vpop.f32.mrf.mxu0
  %v2544 = vadd.f32 0.0, %v2543
  %v2545 = vpop.f32.mrf.mxu0
  %2546 = vdwg.mxu0
  %v2547 = vadd.f32 %v2151, %v2544
  %v2548 = vxor.u32 %v2547, 2147483648
  %v2549 = vmul.f32 %v2548, 1.442695
  %v2550 = vpow.pop %v2549
  %v2551 = vadd.f32 %v2550, 1.0
  %v2552 = vrcp.pop %v2551
  %v2553 = vmul.f32 1.0, %v2552
  %v2554 = vtanh.pop %v2547
  %v2555 = vmul.f32 %v2553, %v2464
  %2557 = vrot.lane.b32.xlu0 %v2554, 32
  %v2558 = vpop.permute.xlu0 %2557
  %v2560 = vmul.f32 %v2553, %v2558
  %2562 = vrot.lane.b32.xlu0 %v2560, 32
  %v2563 = vpop.permute.xlu0 %2562
  %v2565 = vadd.f32 %v2555, %v2563
  %v2566 = vtanh.pop %v2565
  %2568 = vrot.lane.b32.xlu0 %v2566, 32
  %v2569 = vpop.permute.xlu0 %2568
  %v2571 = vmul.f32 %v2553, %v2569
  %v2572 = vadd.f32 %v2471, %v2571
  %2574 = vrot.lane.b32.xlu0 %v2571, 64
  %v2575 = vpop.permute.xlu0 %2574
  %v2576 = vsel %vm167, %v2575, 0
  %2578 = vmatprep.subr.mxu0 0.0
  %2579 = vmatpush1.msra.mxu0 0.0
  %2580 = vmatprep.subr.mxu0 0.0
  %2581 = vmatpush1.msra.mxu0 0.0
  %2582 = vmatprep.subr.mxu0 0.0
  %2583 = vmatpush1.msra.mxu0 0.0
  %2584 = vmatprep.subr.mxu0 0.0
  %2585 = vmatpush1.msra.mxu0 0.0
  %2586 = vmatprep.subr.mxu0 0.0
  %2587 = vmatpush1.msra.mxu0 0.0
  %2588 = vmatprep.subr.mxu0 0.0
  %2589 = vmatpush1.msra.mxu0 0.0
  %2590 = vmatprep.subr.mxu0 0.0
  %2591 = vmatpush1.msra.mxu0 0.0
  %2592 = vmatprep.subr.mxu0 0.0
  %2593 = vmatpush1.msra.mxu0 0.0
  %2594 = vmatprep.subr.mxu0 0.0
  %2595 = vmatpush1.msra.mxu0 0.0
  %2596 = vmatprep.subr.mxu0 0.0
  %2597 = vmatpush1.msra.mxu0 0.0
  %2598 = vmatprep.subr.mxu0 0.0
  %2599 = vmatpush1.msra.mxu0 0.0
  %2600 = vmatprep.subr.mxu0 0.0
  %2601 = vmatpush1.msra.mxu0 0.0
  %2602 = vmatprep.subr.mxu0 0.0
  %2603 = vmatpush1.msra.mxu0 %v2031
  %2604 = vmatprep.subr.mxu0 0.0
  %2605 = vmatpush1.msra.mxu0 %v2030
  %2606 = vmatprep.subr.mxu0 0.0
  %2607 = vmatpush1.msra.mxu0 %v2029
  %2608 = vmatprep.subr.mxu0 0.0
  %2609 = vmatpush1.msra.mxu0 %v2028
  %2610 = vmatprep.subr.mxu0 0.0
  %2611 = vmatpush2.msra.mxu0 0.0
  %2612 = vmatprep.subr.mxu0 0.0
  %2613 = vmatpush2.msra.mxu0 0.0
  %2614 = vmatprep.subr.mxu0 0.0
  %2615 = vmatpush2.msra.mxu0 0.0
  %2616 = vmatprep.subr.mxu0 0.0
  %2617 = vmatpush2.msra.mxu0 0.0
  %2618 = vmatprep.subr.mxu0 0.0
  %2619 = vmatpush2.msra.mxu0 0.0
  %2620 = vmatprep.subr.mxu0 0.0
  %2621 = vmatpush2.msra.mxu0 0.0
  %2622 = vmatprep.subr.mxu0 0.0
  %2623 = vmatpush2.msra.mxu0 0.0
  %2624 = vmatprep.subr.mxu0 0.0
  %2625 = vmatpush2.msra.mxu0 0.0
  %2626 = vmatprep.subr.mxu0 0.0
  %2627 = vmatpush2.msra.mxu0 0.0
  %2628 = vmatprep.subr.mxu0 0.0
  %2629 = vmatpush2.msra.mxu0 0.0
  %2630 = vmatprep.subr.mxu0 0.0
  %2631 = vmatpush2.msra.mxu0 0.0
  %2632 = vmatprep.subr.mxu0 0.0
  %2633 = vmatpush2.msra.mxu0 0.0
  %2634 = vmatprep.subr.mxu0 0.0
  %2635 = vmatpush2.msra.mxu0 0.0
  %2636 = vmatprep.subr.mxu0 0.0
  %2637 = vmatpush2.msra.mxu0 0.0
  %2638 = vmatprep.subr.mxu0 0.0
  %2639 = vmatpush2.msra.mxu0 0.0
  %2640 = vmatprep.subr.mxu0 0.0
  %2641 = vmatpush2.msra.mxu0 0.0
  %2642 = vmatprep.mubr.f32.mxu0 0.0
  %2643 = vmatmul.mubr.f32.gmra.mxu0 %v2576
  %v2644 = vpop.f32.mrf.mxu0
  %v2645 = vadd.f32 0.0, %v2644
  %v2646 = vpop.f32.mrf.mxu0
  %2647 = vdwg.mxu0
  %v2648 = vadd.f32 %v2156, %v2645
  %v2649 = vxor.u32 %v2648, 2147483648
  %v2650 = vmul.f32 %v2649, 1.442695
  %v2651 = vpow.pop %v2650
  %v2652 = vadd.f32 %v2651, 1.0
  %v2653 = vrcp.pop %v2652
  %v2654 = vmul.f32 1.0, %v2653
  %v2655 = vtanh.pop %v2648
  %v2656 = vmul.f32 %v2654, %v2565
  %2658 = vrot.lane.b32.xlu0 %v2655, 32
  %v2659 = vpop.permute.xlu0 %2658
  %v2661 = vmul.f32 %v2654, %v2659
  %2663 = vrot.lane.b32.xlu0 %v2661, 32
  %v2664 = vpop.permute.xlu0 %2663
  %v2666 = vadd.f32 %v2656, %v2664
  %v2667 = vtanh.pop %v2666
  %2669 = vrot.lane.b32.xlu0 %v2667, 32
  %v2670 = vpop.permute.xlu0 %2669
  %v2672 = vmul.f32 %v2654, %v2670
  %v2673 = vadd.f32 %v2572, %v2672
  %2675 = vrot.lane.b32.xlu0 %v2672, 64
  %v2676 = vpop.permute.xlu0 %2675
  %v2677 = vsel %vm167, %v2676, 0
  %2679 = vmatprep.subr.mxu0 0.0
  %2680 = vmatpush1.msra.mxu0 0.0
  %2681 = vmatprep.subr.mxu0 0.0
  %2682 = vmatpush1.msra.mxu0 0.0
  %2683 = vmatprep.subr.mxu0 0.0
  %2684 = vmatpush1.msra.mxu0 0.0
  %2685 = vmatprep.subr.mxu0 0.0
  %2686 = vmatpush1.msra.mxu0 0.0
  %2687 = vmatprep.subr.mxu0 0.0
  %2688 = vmatpush1.msra.mxu0 0.0
  %2689 = vmatprep.subr.mxu0 0.0
  %2690 = vmatpush1.msra.mxu0 0.0
  %2691 = vmatprep.subr.mxu0 0.0
  %2692 = vmatpush1.msra.mxu0 0.0
  %2693 = vmatprep.subr.mxu0 0.0
  %2694 = vmatpush1.msra.mxu0 0.0
  %2695 = vmatprep.subr.mxu0 0.0
  %2696 = vmatpush1.msra.mxu0 0.0
  %2697 = vmatprep.subr.mxu0 0.0
  %2698 = vmatpush1.msra.mxu0 0.0
  %2699 = vmatprep.subr.mxu0 0.0
  %2700 = vmatpush1.msra.mxu0 0.0
  %2701 = vmatprep.subr.mxu0 0.0
  %2702 = vmatpush1.msra.mxu0 0.0
  %2703 = vmatprep.subr.mxu0 0.0
  %2704 = vmatpush1.msra.mxu0 %v2031
  %2705 = vmatprep.subr.mxu0 0.0
  %2706 = vmatpush1.msra.mxu0 %v2030
  %2707 = vmatprep.subr.mxu0 0.0
  %2708 = vmatpush1.msra.mxu0 %v2029
  %2709 = vmatprep.subr.mxu0 0.0
  %2710 = vmatpush1.msra.mxu0 %v2028
  %2711 = vmatprep.subr.mxu0 0.0
  %2712 = vmatpush2.msra.mxu0 0.0
  %2713 = vmatprep.subr.mxu0 0.0
  %2714 = vmatpush2.msra.mxu0 0.0
  %2715 = vmatprep.subr.mxu0 0.0
  %2716 = vmatpush2.msra.mxu0 0.0
  %2717 = vmatprep.subr.mxu0 0.0
  %2718 = vmatpush2.msra.mxu0 0.0
  %2719 = vmatprep.subr.mxu0 0.0
  %2720 = vmatpush2.msra.mxu0 0.0
  %2721 = vmatprep.subr.mxu0 0.0
  %2722 = vmatpush2.msra.mxu0 0.0
  %2723 = vmatprep.subr.mxu0 0.0
  %2724 = vmatpush2.msra.mxu0 0.0
  %2725 = vmatprep.subr.mxu0 0.0
  %2726 = vmatpush2.msra.mxu0 0.0
  %2727 = vmatprep.subr.mxu0 0.0
  %2728 = vmatpush2.msra.mxu0 0.0
  %2729 = vmatprep.subr.mxu0 0.0
  %2730 = vmatpush2.msra.mxu0 0.0
  %2731 = vmatprep.subr.mxu0 0.0
  %2732 = vmatpush2.msra.mxu0 0.0
  %2733 = vmatprep.subr.mxu0 0.0
  %2734 = vmatpush2.msra.mxu0 0.0
  %2735 = vmatprep.subr.mxu0 0.0
  %2736 = vmatpush2.msra.mxu0 0.0
  %2737 = vmatprep.subr.mxu0 0.0
  %2738 = vmatpush2.msra.mxu0 0.0
  %2739 = vmatprep.subr.mxu0 0.0
  %2740 = vmatpush2.msra.mxu0 0.0
  %2741 = vmatprep.subr.mxu0 0.0
  %2742 = vmatpush2.msra.mxu0 0.0
  %2743 = vmatprep.mubr.f32.mxu0 0.0
  %2744 = vmatmul.mubr.f32.gmra.mxu0 %v2677
  %v2745 = vpop.f32.mrf.mxu0
  %v2746 = vadd.f32 0.0, %v2745
  %v2747 = vpop.f32.mrf.mxu0
  %2748 = vdwg.mxu0
  %v2749 = vadd.f32 %v2161, %v2746
  %v2750 = vxor.u32 %v2749, 2147483648
  %v2751 = vmul.f32 %v2750, 1.442695
  %v2752 = vpow.pop %v2751
  %v2753 = vadd.f32 %v2752, 1.0
  %v2754 = vrcp.pop %v2753
  %v2755 = vmul.f32 1.0, %v2754
  %v2756 = vtanh.pop %v2749
  %v2757 = vmul.f32 %v2755, %v2666
  %2759 = vrot.lane.b32.xlu0 %v2756, 32
  %v2760 = vpop.permute.xlu0 %2759
  %v2762 = vmul.f32 %v2755, %v2760
  %2764 = vrot.lane.b32.xlu0 %v2762, 32
  %v2765 = vpop.permute.xlu0 %2764
  %v2767 = vadd.f32 %v2757, %v2765
  %v2768 = vtanh.pop %v2767
  %2770 = vrot.lane.b32.xlu0 %v2768, 32
  %v2771 = vpop.permute.xlu0 %2770
  %v2773 = vmul.f32 %v2755, %v2771
  %v2774 = vadd.f32 %v2673, %v2773
  %2776 = vrot.lane.b32.xlu0 %v2773, 64
  %v2777 = vpop.permute.xlu0 %2776
  %v2778 = vsel %vm167, %v2777, 0
  %2780 = vmatprep.subr.mxu0 0.0
  %2781 = vmatpush1.msra.mxu0 0.0
  %2782 = vmatprep.subr.mxu0 0.0
  %2783 = vmatpush1.msra.mxu0 0.0
  %2784 = vmatprep.subr.mxu0 0.0
  %2785 = vmatpush1.msra.mxu0 0.0
  %2786 = vmatprep.subr.mxu0 0.0
  %2787 = vmatpush1.msra.mxu0 0.0
  %2788 = vmatprep.subr.mxu0 0.0
  %2789 = vmatpush1.msra.mxu0 0.0
  %2790 = vmatprep.subr.mxu0 0.0
  %2791 = vmatpush1.msra.mxu0 0.0
  %2792 = vmatprep.subr.mxu0 0.0
  %2793 = vmatpush1.msra.mxu0 0.0
  %2794 = vmatprep.subr.mxu0 0.0
  %2795 = vmatpush1.msra.mxu0 0.0
  %2796 = vmatprep.subr.mxu0 0.0
  %2797 = vmatpush1.msra.mxu0 0.0
  %2798 = vmatprep.subr.mxu0 0.0
  %2799 = vmatpush1.msra.mxu0 0.0
  %2800 = vmatprep.subr.mxu0 0.0
  %2801 = vmatpush1.msra.mxu0 0.0
  %2802 = vmatprep.subr.mxu0 0.0
  %2803 = vmatpush1.msra.mxu0 0.0
  %2804 = vmatprep.subr.mxu0 0.0
  %2805 = vmatpush1.msra.mxu0 %v2031
  %2806 = vmatprep.subr.mxu0 0.0
  %2807 = vmatpush1.msra.mxu0 %v2030
  %2808 = vmatprep.subr.mxu0 0.0
  %2809 = vmatpush1.msra.mxu0 %v2029
  %2810 = vmatprep.subr.mxu0 0.0
  %2811 = vmatpush1.msra.mxu0 %v2028
  %2812 = vmatprep.subr.mxu0 0.0
  %2813 = vmatpush2.msra.mxu0 0.0
  %2814 = vmatprep.subr.mxu0 0.0
  %2815 = vmatpush2.msra.mxu0 0.0
  %2816 = vmatprep.subr.mxu0 0.0
  %2817 = vmatpush2.msra.mxu0 0.0
  %2818 = vmatprep.subr.mxu0 0.0
  %2819 = vmatpush2.msra.mxu0 0.0
  %2820 = vmatprep.subr.mxu0 0.0
  %2821 = vmatpush2.msra.mxu0 0.0
  %2822 = vmatprep.subr.mxu0 0.0
  %2823 = vmatpush2.msra.mxu0 0.0
  %2824 = vmatprep.subr.mxu0 0.0
  %2825 = vmatpush2.msra.mxu0 0.0
  %2826 = vmatprep.subr.mxu0 0.0
  %2827 = vmatpush2.msra.mxu0 0.0
  %2828 = vmatprep.subr.mxu0 0.0
  %2829 = vmatpush2.msra.mxu0 0.0
  %2830 = vmatprep.subr.mxu0 0.0
  %2831 = vmatpush2.msra.mxu0 0.0
  %2832 = vmatprep.subr.mxu0 0.0
  %2833 = vmatpush2.msra.mxu0 0.0
  %2834 = vmatprep.subr.mxu0 0.0
  %2835 = vmatpush2.msra.mxu0 0.0
  %2836 = vmatprep.subr.mxu0 0.0
  %2837 = vmatpush2.msra.mxu0 0.0
  %2838 = vmatprep.subr.mxu0 0.0
  %2839 = vmatpush2.msra.mxu0 0.0
  %2840 = vmatprep.subr.mxu0 0.0
  %2841 = vmatpush2.msra.mxu0 0.0
  %2842 = vmatprep.subr.mxu0 0.0
  %2843 = vmatpush2.msra.mxu0 0.0
  %2844 = vmatprep.mubr.f32.mxu0 0.0
  %2845 = vmatmul.mubr.f32.gmra.mxu0 %v2778
  %v2846 = vpop.f32.mrf.mxu0
  %v2847 = vadd.f32 0.0, %v2846
  %v2848 = vpop.f32.mrf.mxu0
  %2849 = vdwg.mxu0
  %v2850 = vadd.f32 %v2166, %v2847
  %v2851 = vxor.u32 %v2850, 2147483648
  %v2852 = vmul.f32 %v2851, 1.442695
  %v2853 = vpow.pop %v2852
  %v2854 = vadd.f32 %v2853, 1.0
  %v2855 = vrcp.pop %v2854
  %v2856 = vmul.f32 1.0, %v2855
  %v2857 = vtanh.pop %v2850
  %v2858 = vmul.f32 %v2856, %v2767
  %2860 = vrot.lane.b32.xlu0 %v2857, 32
  %v2861 = vpop.permute.xlu0 %2860
  %v2863 = vmul.f32 %v2856, %v2861
  %2865 = vrot.lane.b32.xlu0 %v2863, 32
  %v2866 = vpop.permute.xlu0 %2865
  %v2868 = vadd.f32 %v2858, %v2866
  %v2869 = vtanh.pop %v2868
  %2871 = vrot.lane.b32.xlu0 %v2869, 32
  %v2872 = vpop.permute.xlu0 %2871
  %v2874 = vmul.f32 %v2856, %v2872
  %v2875 = vadd.f32 %v2774, %v2874
  %2877 = vrot.lane.b32.xlu0 %v2874, 64
  %v2878 = vpop.permute.xlu0 %2877
  %v2879 = vsel %vm167, %v2878, 0
  %2881 = vmatprep.subr.mxu0 0.0
  %2882 = vmatpush1.msra.mxu0 0.0
  %2883 = vmatprep.subr.mxu0 0.0
  %2884 = vmatpush1.msra.mxu0 0.0
  %2885 = vmatprep.subr.mxu0 0.0
  %2886 = vmatpush1.msra.mxu0 0.0
  %2887 = vmatprep.subr.mxu0 0.0
  %2888 = vmatpush1.msra.mxu0 0.0
  %2889 = vmatprep.subr.mxu0 0.0
  %2890 = vmatpush1.msra.mxu0 0.0
  %2891 = vmatprep.subr.mxu0 0.0
  %2892 = vmatpush1.msra.mxu0 0.0
  %2893 = vmatprep.subr.mxu0 0.0
  %2894 = vmatpush1.msra.mxu0 0.0
  %2895 = vmatprep.subr.mxu0 0.0
  %2896 = vmatpush1.msra.mxu0 0.0
  %2897 = vmatprep.subr.mxu0 0.0
  %2898 = vmatpush1.msra.mxu0 0.0
  %2899 = vmatprep.subr.mxu0 0.0
  %2900 = vmatpush1.msra.mxu0 0.0
  %2901 = vmatprep.subr.mxu0 0.0
  %2902 = vmatpush1.msra.mxu0 0.0
  %2903 = vmatprep.subr.mxu0 0.0
  %2904 = vmatpush1.msra.mxu0 0.0
  %2905 = vmatprep.subr.mxu0 0.0
  %2906 = vmatpush1.msra.mxu0 %v2031
  %2907 = vmatprep.subr.mxu0 0.0
  %2908 = vmatpush1.msra.mxu0 %v2030
  %2909 = vmatprep.subr.mxu0 0.0
  %2910 = vmatpush1.msra.mxu0 %v2029
  %2911 = vmatprep.subr.mxu0 0.0
  %2912 = vmatpush1.msra.mxu0 %v2028
  %2913 = vmatprep.subr.mxu0 0.0
  %2914 = vmatpush2.msra.mxu0 0.0
  %2915 = vmatprep.subr.mxu0 0.0
  %2916 = vmatpush2.msra.mxu0 0.0
  %2917 = vmatprep.subr.mxu0 0.0
  %2918 = vmatpush2.msra.mxu0 0.0
  %2919 = vmatprep.subr.mxu0 0.0
  %2920 = vmatpush2.msra.mxu0 0.0
  %2921 = vmatprep.subr.mxu0 0.0
  %2922 = vmatpush2.msra.mxu0 0.0
  %2923 = vmatprep.subr.mxu0 0.0
  %2924 = vmatpush2.msra.mxu0 0.0
  %2925 = vmatprep.subr.mxu0 0.0
  %2926 = vmatpush2.msra.mxu0 0.0
  %2927 = vmatprep.subr.mxu0 0.0
  %2928 = vmatpush2.msra.mxu0 0.0
  %2929 = vmatprep.subr.mxu0 0.0
  %2930 = vmatpush2.msra.mxu0 0.0
  %2931 = vmatprep.subr.mxu0 0.0
  %2932 = vmatpush2.msra.mxu0 0.0
  %2933 = vmatprep.subr.mxu0 0.0
  %2934 = vmatpush2.msra.mxu0 0.0
  %2935 = vmatprep.subr.mxu0 0.0
  %2936 = vmatpush2.msra.mxu0 0.0
  %2937 = vmatprep.subr.mxu0 0.0
  %2938 = vmatpush2.msra.mxu0 0.0
  %2939 = vmatprep.subr.mxu0 0.0
  %2940 = vmatpush2.msra.mxu0 0.0
  %2941 = vmatprep.subr.mxu0 0.0
  %2942 = vmatpush2.msra.mxu0 0.0
  %2943 = vmatprep.subr.mxu0 0.0
  %2944 = vmatpush2.msra.mxu0 0.0
  %2945 = vmatprep.mubr.f32.mxu0 0.0
  %2946 = vmatmul.mubr.f32.gmra.mxu0 %v2879
  %v2947 = vpop.f32.mrf.mxu0
  %v2948 = vadd.f32 0.0, %v2947
  %v2949 = vpop.f32.mrf.mxu0
  %2950 = vdwg.mxu0
  %v2951 = vadd.f32 %v2171, %v2948
  %v2952 = vxor.u32 %v2951, 2147483648
  %v2953 = vmul.f32 %v2952, 1.442695
  %v2954 = vpow.pop %v2953
  %v2955 = vadd.f32 %v2954, 1.0
  %v2956 = vrcp.pop %v2955
  %v2957 = vmul.f32 1.0, %v2956
  %v2958 = vtanh.pop %v2951
  %v2959 = vmul.f32 %v2957, %v2868
  %2961 = vrot.lane.b32.xlu0 %v2958, 32
  %v2962 = vpop.permute.xlu0 %2961
  %v2964 = vmul.f32 %v2957, %v2962
  %2966 = vrot.lane.b32.xlu0 %v2964, 32
  %v2967 = vpop.permute.xlu0 %2966
  %v2969 = vadd.f32 %v2959, %v2967
  %v2970 = vtanh.pop %v2969
  %2972 = vrot.lane.b32.xlu0 %v2970, 32
  %v2973 = vpop.permute.xlu0 %2972
  %v2975 = vmul.f32 %v2957, %v2973
  %v2976 = vadd.f32 %v2875, %v2975
  %v2977 = vld [vmem:[%s3] sm:$0xff]
  %v2978 = vld [vmem:[%s3 + $0x8] sm:$0xff]
  %v2979 = vld [vmem:[%s3 + $0x10] sm:$0xff]
  %v2980 = vld [vmem:[%s3 + $0x18] sm:$0xff]
  %2982 = vrot.lane.b32.xlu0 %v2976, 64
  %v2983 = vpop.permute.xlu0 %2982
  %v2984 = vsel %vm167, %v2983, 0
  %2986 = vmatprep.subr.mxu0 0.0
  %2987 = vmatpush1.msra.mxu0 0.0
  %2988 = vmatprep.subr.mxu0 0.0
  %2989 = vmatpush1.msra.mxu0 0.0
  %2990 = vmatprep.subr.mxu0 0.0
  %2991 = vmatpush1.msra.mxu0 0.0
  %2992 = vmatprep.subr.mxu0 0.0
  %2993 = vmatpush1.msra.mxu0 0.0
  %2994 = vmatprep.subr.mxu0 0.0
  %2995 = vmatpush1.msra.mxu0 0.0
  %2996 = vmatprep.subr.mxu0 0.0
  %2997 = vmatpush1.msra.mxu0 0.0
  %2998 = vmatprep.subr.mxu0 0.0
  %2999 = vmatpush1.msra.mxu0 0.0
  %3000 = vmatprep.subr.mxu0 0.0
  %3001 = vmatpush1.msra.mxu0 0.0
  %3002 = vmatprep.subr.mxu0 0.0
  %3003 = vmatpush1.msra.mxu0 0.0
  %3004 = vmatprep.subr.mxu0 0.0
  %3005 = vmatpush1.msra.mxu0 0.0
  %3006 = vmatprep.subr.mxu0 0.0
  %3007 = vmatpush1.msra.mxu0 0.0
  %3008 = vmatprep.subr.mxu0 0.0
  %3009 = vmatpush1.msra.mxu0 0.0
  %3010 = vmatprep.subr.mxu0 0.0
  %3011 = vmatpush1.msra.mxu0 %v2980
  %3012 = vmatprep.subr.mxu0 0.0
  %3013 = vmatpush1.msra.mxu0 %v2979
  %3014 = vmatprep.subr.mxu0 0.0
  %3015 = vmatpush1.msra.mxu0 %v2978
  %3016 = vmatprep.subr.mxu0 0.0
  %3017 = vmatpush1.msra.mxu0 %v2977
  %3018 = vmatprep.subr.mxu0 0.0
  %3019 = vmatpush2.msra.mxu0 0.0
  %3020 = vmatprep.subr.mxu0 0.0
  %3021 = vmatpush2.msra.mxu0 0.0
  %3022 = vmatprep.subr.mxu0 0.0
  %3023 = vmatpush2.msra.mxu0 0.0
  %3024 = vmatprep.subr.mxu0 0.0
  %3025 = vmatpush2.msra.mxu0 0.0
  %3026 = vmatprep.subr.mxu0 0.0
  %3027 = vmatpush2.msra.mxu0 0.0
  %3028 = vmatprep.subr.mxu0 0.0
  %3029 = vmatpush2.msra.mxu0 0.0
  %3030 = vmatprep.subr.mxu0 0.0
  %3031 = vmatpush2.msra.mxu0 0.0
  %3032 = vmatprep.subr.mxu0 0.0
  %3033 = vmatpush2.msra.mxu0 0.0
  %3034 = vmatprep.subr.mxu0 0.0
  %3035 = vmatpush2.msra.mxu0 0.0
  %3036 = vmatprep.subr.mxu0 0.0
  %3037 = vmatpush2.msra.mxu0 0.0
  %3038 = vmatprep.subr.mxu0 0.0
  %3039 = vmatpush2.msra.mxu0 0.0
  %3040 = vmatprep.subr.mxu0 0.0
  %3041 = vmatpush2.msra.mxu0 0.0
  %3042 = vmatprep.subr.mxu0 0.0
  %3043 = vmatpush2.msra.mxu0 0.0
  %3044 = vmatprep.subr.mxu0 0.0
  %3045 = vmatpush2.msra.mxu0 0.0
  %3046 = vmatprep.subr.mxu0 0.0
  %3047 = vmatpush2.msra.mxu0 0.0
  %3048 = vmatprep.subr.mxu0 0.0
  %3049 = vmatpush2.msra.mxu0 0.0
  %3050 = vmatprep.mubr.f32.mxu0 0.0
  %3051 = vmatmul.mubr.f32.gmra.mxu0 %v2984
  %v3052 = vpop.f32.mrf.mxu0
  %v3053 = vadd.f32 0.0, %v3052
  %v3054 = vpop.f32.mrf.mxu0
  %3055 = vdwg.mxu0
  %v3056 = vmul.f32 %v3053, 0.125
  %v3057 = vld [vmem:[%s3 + $0x20] sm:$0x1]
  %v3058 = vlaneseq
  %v3059 = vshrl.u32 %v3058, 7
  %v3060 = vsub.s32 0, %v3059
  %v3061 = vrot.slane %v3057, %v3060
  %v3062 = vadd.f32 %v3056, %v3061
  %v3063 = vxor.u32 %v3062, 2147483648
  %v3064 = vmul.f32 %v3063, 1.442695
  %v3065 = vpow.pop %v3064
  %v3066 = vadd.f32 %v3065, 1.0
  %v3067 = vrcp.pop %v3066
  %v3068 = vmul.f32 1.0, %v3067
  %vm3069 = vcmask 7168
  %3070 = vst.msk [vmem:[%s4] sm:$0xff] %vm3069, %v3068
  // Predicated region
  $region18: #{lstm_model_forward.1} parent=0 // pred_check
    _
  $region19: #{lstm_model_forward.1} parent=0 // pred_check_branch
    %3072 = sbr.rel (0) target = $region21
  $region20: #{lstm_model_forward.1} parent=0 // pred_region
    _
  $region21: #{lstm_model_forward.1} parent=0 // pred_fallthru
    _
  // Predicated region
  $region22: #{lstm_model_forward.1} parent=0 // pred_check
    _
  $region23: #{lstm_model_forward.1} parent=0 // pred_check_branch
    %3074 = sbr.rel (0) target = $region25
  $region24: #{lstm_model_forward.1} parent=0 // pred_region
    _
  $region25: #{lstm_model_forward.1} parent=0 // pred_fallthru
    _

</llo_original>
